<compile_context>
chip_gen: v7x
topology: tpu7x:2x2x1
jax: 0.10.0
libtpu: 0.0.40
codegen_flags: <defaults>
</compile_context>

<pallas_src>
import jax
import jax.numpy as jnp
from jax.experimental import pallas as pl
from jax.experimental.pallas import tpu as pltpu


def _imdb_rnn_kernel(tok_ref,                      # (T*Bp, 1) int32 token ids, t-major
                     cap_ref,                      # (Bp, T)  f32 capture weights
                     emb_ref,                      # (V, E)   f32 embedding table
                     w_ih_ref,                     # (L, E, H) f32  W_ih^T per layer
                     w_hh_ref,                     # (L, H, H) f32  W_hh^T per layer
                     w_fc1_ref,                    # (H, F)   f32
                     w_fc2_ref,                    # (F, Op)  f32 (lane-padded)
                     logits_ref):                  # (Bp, Op) f32 output
    TB = tok_ref.shape[0]
    V = emb_ref.shape[0]
    L = w_ih_ref.shape[0]
    H = w_hh_ref.shape[1]
    Bp, T = cap_ref.shape

    # --- Embedding gather + ReLU for ALL timesteps at once: one-hot @ table (MXU).
    onehot = (tok_ref[...] ==
              jax.lax.broadcasted_iota(jnp.int32, (TB, V), 1)).astype(jnp.float32)
    x_all = jnp.maximum(
        jnp.dot(onehot, emb_ref[...], preferred_element_type=jnp.float32), 0.0)

    # --- Unrolled recurrence; hidden state carried as values (vregs).
    h = [jnp.zeros((Bp, H), jnp.float32) for _ in range(L)]
    out = jnp.zeros((Bp, H), jnp.float32)
    for t in range(T):                              # static, fully unrolled
        x = x_all[t * Bp:(t + 1) * Bp, :]           # (Bp, E) aligned sublane slice
        for l in range(L):
            x = jnp.maximum(
                jnp.dot(x, w_ih_ref[l], preferred_element_type=jnp.float32)
                + jnp.dot(h[l], w_hh_ref[l], preferred_element_type=jnp.float32),
                0.0)
            h[l] = x
        # output[:, -1, :] of pad_packed_sequence: take h_top at the (dynamic)
        # last timestep for full-length rows, zero otherwise -> capture weights.
        out = out + cap_ref[:, pl.ds(t, 1)] * x

    # --- FC head, lane-dense (Op = 128) output store.
    z = jnp.maximum(
        jnp.dot(out, w_fc1_ref[...], preferred_element_type=jnp.float32), 0.0)
    logits_ref[...] = jnp.dot(z, w_fc2_ref[...], preferred_element_type=jnp.float32)


def imdb_rnn_forward(text, text_lengths, emb_table, w_ih, w_hh, w_fc1, w_fc2):
    """text: (B, T) int32 token ids, padded with pad_idx past each length,
    lengths sorted descending (pack_padded_sequence convention).
    text_lengths: (B,) int32.
    emb_table: (V, E) f32, row pad_idx zeroed (nn.Embedding padding_idx).
    w_ih: (L, E, H) = stack_l(W_ih_l^T);  w_hh: (L, H, H) = stack_l(W_hh_l^T).
    w_fc1: (H, F) f32 (pre-transposed);   w_fc2: (F, O) f32 (pre-transposed).
    Returns logits (B, O)."""
    B, T = text.shape
    V, E = emb_table.shape
    L, _, H = w_hh.shape
    Fd = w_fc1.shape[1]
    O = w_fc2.shape[1]
    assert w_ih.shape == (L, E, H)
    if L > 1:
        assert E == H, "stacked layers feed H-wide inputs to layers >= 1"

    Bp = ((B + 7) // 8) * 8                        # sublane-aligned batch
    Op = max(((O + 127) // 128) * 128, 128)        # lane-dense logits

    text_p = jnp.pad(text.astype(jnp.int32), ((0, Bp - B), (0, 0)))   # pad rows -> tok 0
    lens_p = jnp.pad(text_lengths.astype(jnp.int32), (0, Bp - B))     # pad rows -> len 0
    t_max = jnp.max(text_lengths)                  # traced: no host sync / recompile

    # pad_packed_sequence zero-pads, so output[:, -1] is h_top[t_max-1] only for
    # rows with length == t_max.  Fold the (dynamic) timestep selection + the
    # length mask into one per-(row, step) weight so the kernel stays static.
    capture = ((lens_p == t_max)[:, None]
               & (jnp.arange(T, dtype=jnp.int32)[None, :] == (t_max - 1))
               ).astype(jnp.float32)               # (Bp, T)

    tokens = text_p.T.reshape(T * Bp, 1)           # t-major rows, (T*Bp, 1)
    w_fc2_p = jnp.pad(w_fc2, ((0, 0), (0, Op - O)))

    flops = (2 * T * Bp * V * E + 2 * T * L * Bp * (E + H) * H
             + 2 * Bp * H * Fd + 2 * Bp * Fd * Op)
    bytes_accessed = 4 * (tokens.size + capture.size + emb_table.size
                          + w_ih.size + w_hh.size + w_fc1.size + w_fc2_p.size
                          + Bp * Op)

    # TODO(synk): for a realistic IMDB vocab (25k x 100-300, f32) the embedding
    # table should not be VMEM-resident on v7x (64 MiB): do the lookup in XLA or
    # DMA rows from pl.ANY instead; at V=128 it is 16 KB and residency is free.
    logits_p = pl.pallas_call(
        _imdb_rnn_kernel,
        out_shape=jax.ShapeDtypeStruct((Bp, Op), jnp.float32),
        grid=(1,),
        in_specs=[
            pl.BlockSpec((T * Bp, 1), lambda i: (0, 0)),      # tokens (resident)
            pl.BlockSpec((Bp, T), lambda i: (0, 0)),          # capture mask
            pl.BlockSpec((V, E), lambda i: (0, 0)),           # embedding table
            pl.BlockSpec((L, E, H), lambda i: (0, 0, 0)),     # W_ih^T stack
            pl.BlockSpec((L, H, H), lambda i: (0, 0, 0)),     # W_hh^T stack
            pl.BlockSpec((H, Fd), lambda i: (0, 0)),          # fc1
            pl.BlockSpec((Fd, Op), lambda i: (0, 0)),         # fc2 (lane-padded)
        ],
        out_specs=pl.BlockSpec((Bp, Op), lambda i: (0, 0)),
        compiler_params=pltpu.CompilerParams(
            dimension_semantics=("arbitrary",)),
        cost_estimate=pl.CostEstimate(flops=flops, transcendentals=0,
                                      bytes_accessed=bytes_accessed),
    )(tokens, capture, emb_table, w_ih, w_hh, w_fc1, w_fc2_p)

    return logits_p[:B, :O]


def _reference(text, text_lengths, emb_table, w_ih, w_hh, w_fc1, w_fc2):
    """Pure-JAX reference of the same forward math (packed-RNN semantics)."""
    B, _ = text.shape
    L, _, H = w_hh.shape
    t_max = int(jnp.max(text_lengths))
    emb = jnp.maximum(emb_table[text], 0.0)                   # relu(embedding)
    h = [jnp.zeros((B, H), jnp.float32) for _ in range(L)]
    for t in range(t_max):
        x = emb[:, t, :]
        for l in range(L):
            x = jnp.maximum(x @ w_ih[l] + h[l] @ w_hh[l], 0.0)
            h[l] = x
    out = jnp.where((text_lengths == t_max)[:, None], h[-1], 0.0)
    z = jnp.maximum(out @ w_fc1, 0.0)
    return z @ w_fc2


if __name__ == "__main__":
    # Small shapes consistent with the module.
    vocab_size = 128        # input_dim
    emb_dim = 32
    rnn_hidden_dim = 32     # == emb_dim so stacked layers share the input width
    fc_dim = 64
    output_dim = 2
    pad_idx = 0
    num_layers = 2
    batch = 4
    seq_len = 8

    key = jax.random.PRNGKey(0)
    ks = jax.random.split(key, 6)

    # Token ids with descending lengths (pack_padded_sequence requirement);
    # positions past each length are pad_idx.
    lengths = jnp.array([seq_len, seq_len, 6, 5], dtype=jnp.int32)
    text = jax.random.randint(ks[0], (batch, seq_len), 1, vocab_size, dtype=jnp.int32)
    text = jnp.where(jnp.arange(seq_len)[None, :] < lengths[:, None], text, pad_idx)

    # Embedding table (padding_idx row zeroed, as nn.Embedding does).
    emb_table = jax.random.normal(ks[1], (vocab_size, emb_dim), dtype=jnp.float32)
    emb_table = emb_table.at[pad_idx].set(0.0)

    # RNN weights (bias=False), pre-transposed per layer: W_ih^T (E,H), W_hh^T (H,H).
    b_rnn = 1.0 / (rnn_hidden_dim ** 0.5)
    w_ih = jax.random.uniform(ks[2], (num_layers, emb_dim, rnn_hidden_dim),
                              minval=-b_rnn, maxval=b_rnn, dtype=jnp.float32)
    w_hh = jax.random.uniform(ks[3], (num_layers, rnn_hidden_dim, rnn_hidden_dim),
                              minval=-b_rnn, maxval=b_rnn, dtype=jnp.float32)

    # FC heads (bias=False), pre-transposed to (in, out).
    b_fc1 = 1.0 / (rnn_hidden_dim ** 0.5)
    w_fc1 = jax.random.uniform(ks[4], (rnn_hidden_dim, fc_dim),
                               minval=-b_fc1, maxval=b_fc1, dtype=jnp.float32)
    b_fc2 = 1.0 / (fc_dim ** 0.5)
    w_fc2 = jax.random.uniform(ks[5], (fc_dim, output_dim),
                               minval=-b_fc2, maxval=b_fc2, dtype=jnp.float32)

    logits = imdb_rnn_forward(text, lengths, emb_table, w_ih, w_hh, w_fc1, w_fc2)
    jax.block_until_ready(logits)

    logits_ref = _reference(text, lengths, emb_table, w_ih, w_hh, w_fc1, w_fc2)
    assert logits.shape == (batch, output_dim)
    assert jnp.allclose(logits, logits_ref, atol=1e-4, rtol=1e-4), (
        float(jnp.max(jnp.abs(logits - logits_ref))))

    print("KERNEL_OK")
</pallas_src>

<mosaic_0001>
module attributes {stable_mosaic.version = 11 : i64} {
  func.func @_imdb_rnn_kernel(%arg0: i32, %arg1: memref<64x1xi32, #tpu.memory_space<vmem>>, %arg2: memref<8x8xf32, #tpu.memory_space<vmem>>, %arg3: memref<128x32xf32, #tpu.memory_space<vmem>>, %arg4: memref<2x32x32xf32, #tpu.memory_space<vmem>>, %arg5: memref<2x32x32xf32, #tpu.memory_space<vmem>>, %arg6: memref<32x64xf32, #tpu.memory_space<vmem>>, %arg7: memref<64x128xf32, #tpu.memory_space<vmem>>, %arg8: memref<8x128xf32, #tpu.memory_space<vmem>>) attributes {dimension_semantics = [#tpu.dimension_semantics<arbitrary>], iteration_bounds = array<i64: 1>, scalar_prefetch = 0 : i64, scratch_operands = 0 : i64, tpu.core_type = #tpu.core_type<tc>, window_params = [{pipeline_mode = #tpu.pipeline_mode<synchronous>, transform_indices = @transform_0, window_bounds = array<i64: 64, 1>}, {pipeline_mode = #tpu.pipeline_mode<synchronous>, transform_indices = @transform_1, window_bounds = array<i64: 8, 8>}, {pipeline_mode = #tpu.pipeline_mode<synchronous>, transform_indices = @transform_2, window_bounds = array<i64: 128, 32>}, {pipeline_mode = #tpu.pipeline_mode<synchronous>, transform_indices = @transform_3, window_bounds = array<i64: 2, 32, 32>}, {pipeline_mode = #tpu.pipeline_mode<synchronous>, transform_indices = @transform_4, window_bounds = array<i64: 2, 32, 32>}, {pipeline_mode = #tpu.pipeline_mode<synchronous>, transform_indices = @transform_5, window_bounds = array<i64: 32, 64>}, {pipeline_mode = #tpu.pipeline_mode<synchronous>, transform_indices = @transform_6, window_bounds = array<i64: 64, 128>}, {pipeline_mode = #tpu.pipeline_mode<synchronous>, transform_indices = @transform_7, window_bounds = array<i64: 8, 128>}]} {
    %c0 = arith.constant 0 : index
    %c0_0 = arith.constant 0 : index
    %0 = vector.load %arg1[%c0, %c0_0] : memref<64x1xi32, #tpu.memory_space<vmem>>, vector<64x1xi32>
    %1 = tpu.iota {dimensions = array<i32: 1>} : vector<64x128xi32>
    %2 = vector.broadcast %0 : vector<64x1xi32> to vector<64x128xi32>
    %3 = arith.cmpi eq, %2, %1 : vector<64x128xi32>
    %4 = arith.extui %3 : vector<64x128xi1> to vector<64x128xi32>
    %5 = arith.sitofp %4 : vector<64x128xi32> to vector<64x128xf32>
    %c0_1 = arith.constant 0 : index
    %c0_2 = arith.constant 0 : index
    %6 = vector.load %arg3[%c0_1, %c0_2] : memref<128x32xf32, #tpu.memory_space<vmem>>, vector<128x32xf32>
    %cst = arith.constant dense<0.000000e+00> : vector<64x32xf32>
    %7 = tpu.matmul %5, %6, %cst {dimension_numbers = #tpu.dot_dimension_numbers<[1], [0], [0], [1], [0, 0, 1, 1], [], []>} : vector<64x128xf32>, vector<128x32xf32>, vector<64x32xf32> -> vector<64x32xf32>
    %cst_3 = arith.constant 0.000000e+00 : f32
    %8 = vector.broadcast %cst_3 : f32 to vector<64x32xf32>
    %9 = arith.maximumf %7, %8 : vector<64x32xf32>
    %cst_4 = arith.constant 0.000000e+00 : f32
    %10 = vector.broadcast %cst_4 : f32 to vector<8x32xf32>
    %cst_5 = arith.constant 0.000000e+00 : f32
    %11 = vector.broadcast %cst_5 : f32 to vector<8x32xf32>
    %cst_6 = arith.constant 0.000000e+00 : f32
    %12 = vector.broadcast %cst_6 : f32 to vector<8x32xf32>
    %13 = vector.extract_strided_slice %9 {offsets = [0, 0], sizes = [8, 32], strides = [1, 1]} : vector<64x32xf32> to vector<8x32xf32>
    %c0_7 = arith.constant 0 : index
    %c0_8 = arith.constant 0 : index
    %c0_9 = arith.constant 0 : index
    %14 = vector.load %arg4[%c0_7, %c0_8, %c0_9] : memref<2x32x32xf32, #tpu.memory_space<vmem>>, vector<1x32x32xf32>
    %15 = vector.shape_cast %14 : vector<1x32x32xf32> to vector<32x32xf32>
    %cst_10 = arith.constant dense<0.000000e+00> : vector<8x32xf32>
    %16 = tpu.matmul %13, %15, %cst_10 {dimension_numbers = #tpu.dot_dimension_numbers<[1], [0], [0], [1], [0, 0, 1, 1], [], []>} : vector<8x32xf32>, vector<32x32xf32>, vector<8x32xf32> -> vector<8x32xf32>
    %c0_11 = arith.constant 0 : index
    %c0_12 = arith.constant 0 : index
    %c0_13 = arith.constant 0 : index
    %17 = vector.load %arg5[%c0_11, %c0_12, %c0_13] : memref<2x32x32xf32, #tpu.memory_space<vmem>>, vector<1x32x32xf32>
    %18 = vector.shape_cast %17 : vector<1x32x32xf32> to vector<32x32xf32>
    %cst_14 = arith.constant dense<0.000000e+00> : vector<8x32xf32>
    %19 = tpu.matmul %10, %18, %cst_14 {dimension_numbers = #tpu.dot_dimension_numbers<[1], [0], [0], [1], [0, 0, 1, 1], [], []>} : vector<8x32xf32>, vector<32x32xf32>, vector<8x32xf32> -> vector<8x32xf32>
    %20 = arith.addf %16, %19 : vector<8x32xf32>
    %cst_15 = arith.constant 0.000000e+00 : f32
    %21 = vector.broadcast %cst_15 : f32 to vector<8x32xf32>
    %22 = arith.maximumf %20, %21 : vector<8x32xf32>
    %c1 = arith.constant 1 : index
    %c0_16 = arith.constant 0 : index
    %c0_17 = arith.constant 0 : index
    %23 = vector.load %arg4[%c1, %c0_16, %c0_17] : memref<2x32x32xf32, #tpu.memory_space<vmem>>, vector<1x32x32xf32>
    %24 = vector.shape_cast %23 : vector<1x32x32xf32> to vector<32x32xf32>
    %cst_18 = arith.constant dense<0.000000e+00> : vector<8x32xf32>
    %25 = tpu.matmul %22, %24, %cst_18 {dimension_numbers = #tpu.dot_dimension_numbers<[1], [0], [0], [1], [0, 0, 1, 1], [], []>} : vector<8x32xf32>, vector<32x32xf32>, vector<8x32xf32> -> vector<8x32xf32>
    %c1_19 = arith.constant 1 : index
    %c0_20 = arith.constant 0 : index
    %c0_21 = arith.constant 0 : index
    %26 = vector.load %arg5[%c1_19, %c0_20, %c0_21] : memref<2x32x32xf32, #tpu.memory_space<vmem>>, vector<1x32x32xf32>
    %27 = vector.shape_cast %26 : vector<1x32x32xf32> to vector<32x32xf32>
    %cst_22 = arith.constant dense<0.000000e+00> : vector<8x32xf32>
    %28 = tpu.matmul %11, %27, %cst_22 {dimension_numbers = #tpu.dot_dimension_numbers<[1], [0], [0], [1], [0, 0, 1, 1], [], []>} : vector<8x32xf32>, vector<32x32xf32>, vector<8x32xf32> -> vector<8x32xf32>
    %29 = arith.addf %25, %28 : vector<8x32xf32>
    %cst_23 = arith.constant 0.000000e+00 : f32
    %30 = vector.broadcast %cst_23 : f32 to vector<8x32xf32>
    %31 = arith.maximumf %29, %30 : vector<8x32xf32>
    %c0_24 = arith.constant 0 : index
    %c0_25 = arith.constant 0 : index
    %32 = vector.load %arg2[%c0_24, %c0_25] : memref<8x8xf32, #tpu.memory_space<vmem>>, vector<8x1xf32>
    %33 = vector.broadcast %32 : vector<8x1xf32> to vector<8x32xf32>
    %34 = arith.mulf %33, %31 : vector<8x32xf32>
    %35 = arith.addf %12, %34 : vector<8x32xf32>
    %36 = vector.extract_strided_slice %9 {offsets = [8, 0], sizes = [8, 32], strides = [1, 1]} : vector<64x32xf32> to vector<8x32xf32>
    %c0_26 = arith.constant 0 : index
    %c0_27 = arith.constant 0 : index
    %c0_28 = arith.constant 0 : index
    %37 = vector.load %arg4[%c0_26, %c0_27, %c0_28] : memref<2x32x32xf32, #tpu.memory_space<vmem>>, vector<1x32x32xf32>
    %38 = vector.shape_cast %37 : vector<1x32x32xf32> to vector<32x32xf32>
    %cst_29 = arith.constant dense<0.000000e+00> : vector<8x32xf32>
    %39 = tpu.matmul %36, %38, %cst_29 {dimension_numbers = #tpu.dot_dimension_numbers<[1], [0], [0], [1], [0, 0, 1, 1], [], []>} : vector<8x32xf32>, vector<32x32xf32>, vector<8x32xf32> -> vector<8x32xf32>
    %c0_30 = arith.constant 0 : index
    %c0_31 = arith.constant 0 : index
    %c0_32 = arith.constant 0 : index
    %40 = vector.load %arg5[%c0_30, %c0_31, %c0_32] : memref<2x32x32xf32, #tpu.memory_space<vmem>>, vector<1x32x32xf32>
    %41 = vector.shape_cast %40 : vector<1x32x32xf32> to vector<32x32xf32>
    %cst_33 = arith.constant dense<0.000000e+00> : vector<8x32xf32>
    %42 = tpu.matmul %22, %41, %cst_33 {dimension_numbers = #tpu.dot_dimension_numbers<[1], [0], [0], [1], [0, 0, 1, 1], [], []>} : vector<8x32xf32>, vector<32x32xf32>, vector<8x32xf32> -> vector<8x32xf32>
    %43 = arith.addf %39, %42 : vector<8x32xf32>
    %cst_34 = arith.constant 0.000000e+00 : f32
    %44 = vector.broadcast %cst_34 : f32 to vector<8x32xf32>
    %45 = arith.maximumf %43, %44 : vector<8x32xf32>
    %c1_35 = arith.constant 1 : index
    %c0_36 = arith.constant 0 : index
    %c0_37 = arith.constant 0 : index
    %46 = vector.load %arg4[%c1_35, %c0_36, %c0_37] : memref<2x32x32xf32, #tpu.memory_space<vmem>>, vector<1x32x32xf32>
    %47 = vector.shape_cast %46 : vector<1x32x32xf32> to vector<32x32xf32>
    %cst_38 = arith.constant dense<0.000000e+00> : vector<8x32xf32>
    %48 = tpu.matmul %45, %47, %cst_38 {dimension_numbers = #tpu.dot_dimension_numbers<[1], [0], [0], [1], [0, 0, 1, 1], [], []>} : vector<8x32xf32>, vector<32x32xf32>, vector<8x32xf32> -> vector<8x32xf32>
    %c1_39 = arith.constant 1 : index
    %c0_40 = arith.constant 0 : index
    %c0_41 = arith.constant 0 : index
    %49 = vector.load %arg5[%c1_39, %c0_40, %c0_41] : memref<2x32x32xf32, #tpu.memory_space<vmem>>, vector<1x32x32xf32>
    %50 = vector.shape_cast %49 : vector<1x32x32xf32> to vector<32x32xf32>
    %cst_42 = arith.constant dense<0.000000e+00> : vector<8x32xf32>
    %51 = tpu.matmul %31, %50, %cst_42 {dimension_numbers = #tpu.dot_dimension_numbers<[1], [0], [0], [1], [0, 0, 1, 1], [], []>} : vector<8x32xf32>, vector<32x32xf32>, vector<8x32xf32> -> vector<8x32xf32>
    %52 = arith.addf %48, %51 : vector<8x32xf32>
    %cst_43 = arith.constant 0.000000e+00 : f32
    %53 = vector.broadcast %cst_43 : f32 to vector<8x32xf32>
    %54 = arith.maximumf %52, %53 : vector<8x32xf32>
    %c0_44 = arith.constant 0 : index
    %c1_45 = arith.constant 1 : index
    %55 = vector.load %arg2[%c0_44, %c1_45] : memref<8x8xf32, #tpu.memory_space<vmem>>, vector<8x1xf32>
    %56 = vector.broadcast %55 : vector<8x1xf32> to vector<8x32xf32>
    %57 = arith.mulf %56, %54 : vector<8x32xf32>
    %58 = arith.addf %35, %57 : vector<8x32xf32>
    %59 = vector.extract_strided_slice %9 {offsets = [16, 0], sizes = [8, 32], strides = [1, 1]} : vector<64x32xf32> to vector<8x32xf32>
    %c0_46 = arith.constant 0 : index
    %c0_47 = arith.constant 0 : index
    %c0_48 = arith.constant 0 : index
    %60 = vector.load %arg4[%c0_46, %c0_47, %c0_48] : memref<2x32x32xf32, #tpu.memory_space<vmem>>, vector<1x32x32xf32>
    %61 = vector.shape_cast %60 : vector<1x32x32xf32> to vector<32x32xf32>
    %cst_49 = arith.constant dense<0.000000e+00> : vector<8x32xf32>
    %62 = tpu.matmul %59, %61, %cst_49 {dimension_numbers = #tpu.dot_dimension_numbers<[1], [0], [0], [1], [0, 0, 1, 1], [], []>} : vector<8x32xf32>, vector<32x32xf32>, vector<8x32xf32> -> vector<8x32xf32>
    %c0_50 = arith.constant 0 : index
    %c0_51 = arith.constant 0 : index
    %c0_52 = arith.constant 0 : index
    %63 = vector.load %arg5[%c0_50, %c0_51, %c0_52] : memref<2x32x32xf32, #tpu.memory_space<vmem>>, vector<1x32x32xf32>
    %64 = vector.shape_cast %63 : vector<1x32x32xf32> to vector<32x32xf32>
    %cst_53 = arith.constant dense<0.000000e+00> : vector<8x32xf32>
    %65 = tpu.matmul %45, %64, %cst_53 {dimension_numbers = #tpu.dot_dimension_numbers<[1], [0], [0], [1], [0, 0, 1, 1], [], []>} : vector<8x32xf32>, vector<32x32xf32>, vector<8x32xf32> -> vector<8x32xf32>
    %66 = arith.addf %62, %65 : vector<8x32xf32>
    %cst_54 = arith.constant 0.000000e+00 : f32
    %67 = vector.broadcast %cst_54 : f32 to vector<8x32xf32>
    %68 = arith.maximumf %66, %67 : vector<8x32xf32>
    %c1_55 = arith.constant 1 : index
    %c0_56 = arith.constant 0 : index
    %c0_57 = arith.constant 0 : index
    %69 = vector.load %arg4[%c1_55, %c0_56, %c0_57] : memref<2x32x32xf32, #tpu.memory_space<vmem>>, vector<1x32x32xf32>
    %70 = vector.shape_cast %69 : vector<1x32x32xf32> to vector<32x32xf32>
    %cst_58 = arith.constant dense<0.000000e+00> : vector<8x32xf32>
    %71 = tpu.matmul %68, %70, %cst_58 {dimension_numbers = #tpu.dot_dimension_numbers<[1], [0], [0], [1], [0, 0, 1, 1], [], []>} : vector<8x32xf32>, vector<32x32xf32>, vector<8x32xf32> -> vector<8x32xf32>
    %c1_59 = arith.constant 1 : index
    %c0_60 = arith.constant 0 : index
    %c0_61 = arith.constant 0 : index
    %72 = vector.load %arg5[%c1_59, %c0_60, %c0_61] : memref<2x32x32xf32, #tpu.memory_space<vmem>>, vector<1x32x32xf32>
    %73 = vector.shape_cast %72 : vector<1x32x32xf32> to vector<32x32xf32>
    %cst_62 = arith.constant dense<0.000000e+00> : vector<8x32xf32>
    %74 = tpu.matmul %54, %73, %cst_62 {dimension_numbers = #tpu.dot_dimension_numbers<[1], [0], [0], [1], [0, 0, 1, 1], [], []>} : vector<8x32xf32>, vector<32x32xf32>, vector<8x32xf32> -> vector<8x32xf32>
    %75 = arith.addf %71, %74 : vector<8x32xf32>
    %cst_63 = arith.constant 0.000000e+00 : f32
    %76 = vector.broadcast %cst_63 : f32 to vector<8x32xf32>
    %77 = arith.maximumf %75, %76 : vector<8x32xf32>
    %c0_64 = arith.constant 0 : index
    %c2 = arith.constant 2 : index
    %78 = vector.load %arg2[%c0_64, %c2] : memref<8x8xf32, #tpu.memory_space<vmem>>, vector<8x1xf32>
    %79 = vector.broadcast %78 : vector<8x1xf32> to vector<8x32xf32>
    %80 = arith.mulf %79, %77 : vector<8x32xf32>
    %81 = arith.addf %58, %80 : vector<8x32xf32>
    %82 = vector.extract_strided_slice %9 {offsets = [24, 0], sizes = [8, 32], strides = [1, 1]} : vector<64x32xf32> to vector<8x32xf32>
    %c0_65 = arith.constant 0 : index
    %c0_66 = arith.constant 0 : index
    %c0_67 = arith.constant 0 : index
    %83 = vector.load %arg4[%c0_65, %c0_66, %c0_67] : memref<2x32x32xf32, #tpu.memory_space<vmem>>, vector<1x32x32xf32>
    %84 = vector.shape_cast %83 : vector<1x32x32xf32> to vector<32x32xf32>
    %cst_68 = arith.constant dense<0.000000e+00> : vector<8x32xf32>
    %85 = tpu.matmul %82, %84, %cst_68 {dimension_numbers = #tpu.dot_dimension_numbers<[1], [0], [0], [1], [0, 0, 1, 1], [], []>} : vector<8x32xf32>, vector<32x32xf32>, vector<8x32xf32> -> vector<8x32xf32>
    %c0_69 = arith.constant 0 : index
    %c0_70 = arith.constant 0 : index
    %c0_71 = arith.constant 0 : index
    %86 = vector.load %arg5[%c0_69, %c0_70, %c0_71] : memref<2x32x32xf32, #tpu.memory_space<vmem>>, vector<1x32x32xf32>
    %87 = vector.shape_cast %86 : vector<1x32x32xf32> to vector<32x32xf32>
    %cst_72 = arith.constant dense<0.000000e+00> : vector<8x32xf32>
    %88 = tpu.matmul %68, %87, %cst_72 {dimension_numbers = #tpu.dot_dimension_numbers<[1], [0], [0], [1], [0, 0, 1, 1], [], []>} : vector<8x32xf32>, vector<32x32xf32>, vector<8x32xf32> -> vector<8x32xf32>
    %89 = arith.addf %85, %88 : vector<8x32xf32>
    %cst_73 = arith.constant 0.000000e+00 : f32
    %90 = vector.broadcast %cst_73 : f32 to vector<8x32xf32>
    %91 = arith.maximumf %89, %90 : vector<8x32xf32>
    %c1_74 = arith.constant 1 : index
    %c0_75 = arith.constant 0 : index
    %c0_76 = arith.constant 0 : index
    %92 = vector.load %arg4[%c1_74, %c0_75, %c0_76] : memref<2x32x32xf32, #tpu.memory_space<vmem>>, vector<1x32x32xf32>
    %93 = vector.shape_cast %92 : vector<1x32x32xf32> to vector<32x32xf32>
    %cst_77 = arith.constant dense<0.000000e+00> : vector<8x32xf32>
    %94 = tpu.matmul %91, %93, %cst_77 {dimension_numbers = #tpu.dot_dimension_numbers<[1], [0], [0], [1], [0, 0, 1, 1], [], []>} : vector<8x32xf32>, vector<32x32xf32>, vector<8x32xf32> -> vector<8x32xf32>
    %c1_78 = arith.constant 1 : index
    %c0_79 = arith.constant 0 : index
    %c0_80 = arith.constant 0 : index
    %95 = vector.load %arg5[%c1_78, %c0_79, %c0_80] : memref<2x32x32xf32, #tpu.memory_space<vmem>>, vector<1x32x32xf32>
    %96 = vector.shape_cast %95 : vector<1x32x32xf32> to vector<32x32xf32>
    %cst_81 = arith.constant dense<0.000000e+00> : vector<8x32xf32>
    %97 = tpu.matmul %77, %96, %cst_81 {dimension_numbers = #tpu.dot_dimension_numbers<[1], [0], [0], [1], [0, 0, 1, 1], [], []>} : vector<8x32xf32>, vector<32x32xf32>, vector<8x32xf32> -> vector<8x32xf32>
    %98 = arith.addf %94, %97 : vector<8x32xf32>
    %cst_82 = arith.constant 0.000000e+00 : f32
    %99 = vector.broadcast %cst_82 : f32 to vector<8x32xf32>
    %100 = arith.maximumf %98, %99 : vector<8x32xf32>
    %c0_83 = arith.constant 0 : index
    %c3 = arith.constant 3 : index
    %101 = vector.load %arg2[%c0_83, %c3] : memref<8x8xf32, #tpu.memory_space<vmem>>, vector<8x1xf32>
    %102 = vector.broadcast %101 : vector<8x1xf32> to vector<8x32xf32>
    %103 = arith.mulf %102, %100 : vector<8x32xf32>
    %104 = arith.addf %81, %103 : vector<8x32xf32>
    %105 = vector.extract_strided_slice %9 {offsets = [32, 0], sizes = [8, 32], strides = [1, 1]} : vector<64x32xf32> to vector<8x32xf32>
    %c0_84 = arith.constant 0 : index
    %c0_85 = arith.constant 0 : index
    %c0_86 = arith.constant 0 : index
    %106 = vector.load %arg4[%c0_84, %c0_85, %c0_86] : memref<2x32x32xf32, #tpu.memory_space<vmem>>, vector<1x32x32xf32>
    %107 = vector.shape_cast %106 : vector<1x32x32xf32> to vector<32x32xf32>
    %cst_87 = arith.constant dense<0.000000e+00> : vector<8x32xf32>
    %108 = tpu.matmul %105, %107, %cst_87 {dimension_numbers = #tpu.dot_dimension_numbers<[1], [0], [0], [1], [0, 0, 1, 1], [], []>} : vector<8x32xf32>, vector<32x32xf32>, vector<8x32xf32> -> vector<8x32xf32>
    %c0_88 = arith.constant 0 : index
    %c0_89 = arith.constant 0 : index
    %c0_90 = arith.constant 0 : index
    %109 = vector.load %arg5[%c0_88, %c0_89, %c0_90] : memref<2x32x32xf32, #tpu.memory_space<vmem>>, vector<1x32x32xf32>
    %110 = vector.shape_cast %109 : vector<1x32x32xf32> to vector<32x32xf32>
    %cst_91 = arith.constant dense<0.000000e+00> : vector<8x32xf32>
    %111 = tpu.matmul %91, %110, %cst_91 {dimension_numbers = #tpu.dot_dimension_numbers<[1], [0], [0], [1], [0, 0, 1, 1], [], []>} : vector<8x32xf32>, vector<32x32xf32>, vector<8x32xf32> -> vector<8x32xf32>
    %112 = arith.addf %108, %111 : vector<8x32xf32>
    %cst_92 = arith.constant 0.000000e+00 : f32
    %113 = vector.broadcast %cst_92 : f32 to vector<8x32xf32>
    %114 = arith.maximumf %112, %113 : vector<8x32xf32>
    %c1_93 = arith.constant 1 : index
    %c0_94 = arith.constant 0 : index
    %c0_95 = arith.constant 0 : index
    %115 = vector.load %arg4[%c1_93, %c0_94, %c0_95] : memref<2x32x32xf32, #tpu.memory_space<vmem>>, vector<1x32x32xf32>
    %116 = vector.shape_cast %115 : vector<1x32x32xf32> to vector<32x32xf32>
    %cst_96 = arith.constant dense<0.000000e+00> : vector<8x32xf32>
    %117 = tpu.matmul %114, %116, %cst_96 {dimension_numbers = #tpu.dot_dimension_numbers<[1], [0], [0], [1], [0, 0, 1, 1], [], []>} : vector<8x32xf32>, vector<32x32xf32>, vector<8x32xf32> -> vector<8x32xf32>
    %c1_97 = arith.constant 1 : index
    %c0_98 = arith.constant 0 : index
    %c0_99 = arith.constant 0 : index
    %118 = vector.load %arg5[%c1_97, %c0_98, %c0_99] : memref<2x32x32xf32, #tpu.memory_space<vmem>>, vector<1x32x32xf32>
    %119 = vector.shape_cast %118 : vector<1x32x32xf32> to vector<32x32xf32>
    %cst_100 = arith.constant dense<0.000000e+00> : vector<8x32xf32>
    %120 = tpu.matmul %100, %119, %cst_100 {dimension_numbers = #tpu.dot_dimension_numbers<[1], [0], [0], [1], [0, 0, 1, 1], [], []>} : vector<8x32xf32>, vector<32x32xf32>, vector<8x32xf32> -> vector<8x32xf32>
    %121 = arith.addf %117, %120 : vector<8x32xf32>
    %cst_101 = arith.constant 0.000000e+00 : f32
    %122 = vector.broadcast %cst_101 : f32 to vector<8x32xf32>
    %123 = arith.maximumf %121, %122 : vector<8x32xf32>
    %c0_102 = arith.constant 0 : index
    %c4 = arith.constant 4 : index
    %124 = vector.load %arg2[%c0_102, %c4] : memref<8x8xf32, #tpu.memory_space<vmem>>, vector<8x1xf32>
    %125 = vector.broadcast %124 : vector<8x1xf32> to vector<8x32xf32>
    %126 = arith.mulf %125, %123 : vector<8x32xf32>
    %127 = arith.addf %104, %126 : vector<8x32xf32>
    %128 = vector.extract_strided_slice %9 {offsets = [40, 0], sizes = [8, 32], strides = [1, 1]} : vector<64x32xf32> to vector<8x32xf32>
    %c0_103 = arith.constant 0 : index
    %c0_104 = arith.constant 0 : index
    %c0_105 = arith.constant 0 : index
    %129 = vector.load %arg4[%c0_103, %c0_104, %c0_105] : memref<2x32x32xf32, #tpu.memory_space<vmem>>, vector<1x32x32xf32>
    %130 = vector.shape_cast %129 : vector<1x32x32xf32> to vector<32x32xf32>
    %cst_106 = arith.constant dense<0.000000e+00> : vector<8x32xf32>
    %131 = tpu.matmul %128, %130, %cst_106 {dimension_numbers = #tpu.dot_dimension_numbers<[1], [0], [0], [1], [0, 0, 1, 1], [], []>} : vector<8x32xf32>, vector<32x32xf32>, vector<8x32xf32> -> vector<8x32xf32>
    %c0_107 = arith.constant 0 : index
    %c0_108 = arith.constant 0 : index
    %c0_109 = arith.constant 0 : index
    %132 = vector.load %arg5[%c0_107, %c0_108, %c0_109] : memref<2x32x32xf32, #tpu.memory_space<vmem>>, vector<1x32x32xf32>
    %133 = vector.shape_cast %132 : vector<1x32x32xf32> to vector<32x32xf32>
    %cst_110 = arith.constant dense<0.000000e+00> : vector<8x32xf32>
    %134 = tpu.matmul %114, %133, %cst_110 {dimension_numbers = #tpu.dot_dimension_numbers<[1], [0], [0], [1], [0, 0, 1, 1], [], []>} : vector<8x32xf32>, vector<32x32xf32>, vector<8x32xf32> -> vector<8x32xf32>
    %135 = arith.addf %131, %134 : vector<8x32xf32>
    %cst_111 = arith.constant 0.000000e+00 : f32
    %136 = vector.broadcast %cst_111 : f32 to vector<8x32xf32>
    %137 = arith.maximumf %135, %136 : vector<8x32xf32>
    %c1_112 = arith.constant 1 : index
    %c0_113 = arith.constant 0 : index
    %c0_114 = arith.constant 0 : index
    %138 = vector.load %arg4[%c1_112, %c0_113, %c0_114] : memref<2x32x32xf32, #tpu.memory_space<vmem>>, vector<1x32x32xf32>
    %139 = vector.shape_cast %138 : vector<1x32x32xf32> to vector<32x32xf32>
    %cst_115 = arith.constant dense<0.000000e+00> : vector<8x32xf32>
    %140 = tpu.matmul %137, %139, %cst_115 {dimension_numbers = #tpu.dot_dimension_numbers<[1], [0], [0], [1], [0, 0, 1, 1], [], []>} : vector<8x32xf32>, vector<32x32xf32>, vector<8x32xf32> -> vector<8x32xf32>
    %c1_116 = arith.constant 1 : index
    %c0_117 = arith.constant 0 : index
    %c0_118 = arith.constant 0 : index
    %141 = vector.load %arg5[%c1_116, %c0_117, %c0_118] : memref<2x32x32xf32, #tpu.memory_space<vmem>>, vector<1x32x32xf32>
    %142 = vector.shape_cast %141 : vector<1x32x32xf32> to vector<32x32xf32>
    %cst_119 = arith.constant dense<0.000000e+00> : vector<8x32xf32>
    %143 = tpu.matmul %123, %142, %cst_119 {dimension_numbers = #tpu.dot_dimension_numbers<[1], [0], [0], [1], [0, 0, 1, 1], [], []>} : vector<8x32xf32>, vector<32x32xf32>, vector<8x32xf32> -> vector<8x32xf32>
    %144 = arith.addf %140, %143 : vector<8x32xf32>
    %cst_120 = arith.constant 0.000000e+00 : f32
    %145 = vector.broadcast %cst_120 : f32 to vector<8x32xf32>
    %146 = arith.maximumf %144, %145 : vector<8x32xf32>
    %c0_121 = arith.constant 0 : index
    %c5 = arith.constant 5 : index
    %147 = vector.load %arg2[%c0_121, %c5] : memref<8x8xf32, #tpu.memory_space<vmem>>, vector<8x1xf32>
    %148 = vector.broadcast %147 : vector<8x1xf32> to vector<8x32xf32>
    %149 = arith.mulf %148, %146 : vector<8x32xf32>
    %150 = arith.addf %127, %149 : vector<8x32xf32>
    %151 = vector.extract_strided_slice %9 {offsets = [48, 0], sizes = [8, 32], strides = [1, 1]} : vector<64x32xf32> to vector<8x32xf32>
    %c0_122 = arith.constant 0 : index
    %c0_123 = arith.constant 0 : index
    %c0_124 = arith.constant 0 : index
    %152 = vector.load %arg4[%c0_122, %c0_123, %c0_124] : memref<2x32x32xf32, #tpu.memory_space<vmem>>, vector<1x32x32xf32>
    %153 = vector.shape_cast %152 : vector<1x32x32xf32> to vector<32x32xf32>
    %cst_125 = arith.constant dense<0.000000e+00> : vector<8x32xf32>
    %154 = tpu.matmul %151, %153, %cst_125 {dimension_numbers = #tpu.dot_dimension_numbers<[1], [0], [0], [1], [0, 0, 1, 1], [], []>} : vector<8x32xf32>, vector<32x32xf32>, vector<8x32xf32> -> vector<8x32xf32>
    %c0_126 = arith.constant 0 : index
    %c0_127 = arith.constant 0 : index
    %c0_128 = arith.constant 0 : index
    %155 = vector.load %arg5[%c0_126, %c0_127, %c0_128] : memref<2x32x32xf32, #tpu.memory_space<vmem>>, vector<1x32x32xf32>
    %156 = vector.shape_cast %155 : vector<1x32x32xf32> to vector<32x32xf32>
    %cst_129 = arith.constant dense<0.000000e+00> : vector<8x32xf32>
    %157 = tpu.matmul %137, %156, %cst_129 {dimension_numbers = #tpu.dot_dimension_numbers<[1], [0], [0], [1], [0, 0, 1, 1], [], []>} : vector<8x32xf32>, vector<32x32xf32>, vector<8x32xf32> -> vector<8x32xf32>
    %158 = arith.addf %154, %157 : vector<8x32xf32>
    %cst_130 = arith.constant 0.000000e+00 : f32
    %159 = vector.broadcast %cst_130 : f32 to vector<8x32xf32>
    %160 = arith.maximumf %158, %159 : vector<8x32xf32>
    %c1_131 = arith.constant 1 : index
    %c0_132 = arith.constant 0 : index
    %c0_133 = arith.constant 0 : index
    %161 = vector.load %arg4[%c1_131, %c0_132, %c0_133] : memref<2x32x32xf32, #tpu.memory_space<vmem>>, vector<1x32x32xf32>
    %162 = vector.shape_cast %161 : vector<1x32x32xf32> to vector<32x32xf32>
    %cst_134 = arith.constant dense<0.000000e+00> : vector<8x32xf32>
    %163 = tpu.matmul %160, %162, %cst_134 {dimension_numbers = #tpu.dot_dimension_numbers<[1], [0], [0], [1], [0, 0, 1, 1], [], []>} : vector<8x32xf32>, vector<32x32xf32>, vector<8x32xf32> -> vector<8x32xf32>
    %c1_135 = arith.constant 1 : index
    %c0_136 = arith.constant 0 : index
    %c0_137 = arith.constant 0 : index
    %164 = vector.load %arg5[%c1_135, %c0_136, %c0_137] : memref<2x32x32xf32, #tpu.memory_space<vmem>>, vector<1x32x32xf32>
    %165 = vector.shape_cast %164 : vector<1x32x32xf32> to vector<32x32xf32>
    %cst_138 = arith.constant dense<0.000000e+00> : vector<8x32xf32>
    %166 = tpu.matmul %146, %165, %cst_138 {dimension_numbers = #tpu.dot_dimension_numbers<[1], [0], [0], [1], [0, 0, 1, 1], [], []>} : vector<8x32xf32>, vector<32x32xf32>, vector<8x32xf32> -> vector<8x32xf32>
    %167 = arith.addf %163, %166 : vector<8x32xf32>
    %cst_139 = arith.constant 0.000000e+00 : f32
    %168 = vector.broadcast %cst_139 : f32 to vector<8x32xf32>
    %169 = arith.maximumf %167, %168 : vector<8x32xf32>
    %c0_140 = arith.constant 0 : index
    %c6 = arith.constant 6 : index
    %170 = vector.load %arg2[%c0_140, %c6] : memref<8x8xf32, #tpu.memory_space<vmem>>, vector<8x1xf32>
    %171 = vector.broadcast %170 : vector<8x1xf32> to vector<8x32xf32>
    %172 = arith.mulf %171, %169 : vector<8x32xf32>
    %173 = arith.addf %150, %172 : vector<8x32xf32>
    %174 = vector.extract_strided_slice %9 {offsets = [56, 0], sizes = [8, 32], strides = [1, 1]} : vector<64x32xf32> to vector<8x32xf32>
    %c0_141 = arith.constant 0 : index
    %c0_142 = arith.constant 0 : index
    %c0_143 = arith.constant 0 : index
    %175 = vector.load %arg4[%c0_141, %c0_142, %c0_143] : memref<2x32x32xf32, #tpu.memory_space<vmem>>, vector<1x32x32xf32>
    %176 = vector.shape_cast %175 : vector<1x32x32xf32> to vector<32x32xf32>
    %cst_144 = arith.constant dense<0.000000e+00> : vector<8x32xf32>
    %177 = tpu.matmul %174, %176, %cst_144 {dimension_numbers = #tpu.dot_dimension_numbers<[1], [0], [0], [1], [0, 0, 1, 1], [], []>} : vector<8x32xf32>, vector<32x32xf32>, vector<8x32xf32> -> vector<8x32xf32>
    %c0_145 = arith.constant 0 : index
    %c0_146 = arith.constant 0 : index
    %c0_147 = arith.constant 0 : index
    %178 = vector.load %arg5[%c0_145, %c0_146, %c0_147] : memref<2x32x32xf32, #tpu.memory_space<vmem>>, vector<1x32x32xf32>
    %179 = vector.shape_cast %178 : vector<1x32x32xf32> to vector<32x32xf32>
    %cst_148 = arith.constant dense<0.000000e+00> : vector<8x32xf32>
    %180 = tpu.matmul %160, %179, %cst_148 {dimension_numbers = #tpu.dot_dimension_numbers<[1], [0], [0], [1], [0, 0, 1, 1], [], []>} : vector<8x32xf32>, vector<32x32xf32>, vector<8x32xf32> -> vector<8x32xf32>
    %181 = arith.addf %177, %180 : vector<8x32xf32>
    %cst_149 = arith.constant 0.000000e+00 : f32
    %182 = vector.broadcast %cst_149 : f32 to vector<8x32xf32>
    %183 = arith.maximumf %181, %182 : vector<8x32xf32>
    %c1_150 = arith.constant 1 : index
    %c0_151 = arith.constant 0 : index
    %c0_152 = arith.constant 0 : index
    %184 = vector.load %arg4[%c1_150, %c0_151, %c0_152] : memref<2x32x32xf32, #tpu.memory_space<vmem>>, vector<1x32x32xf32>
    %185 = vector.shape_cast %184 : vector<1x32x32xf32> to vector<32x32xf32>
    %cst_153 = arith.constant dense<0.000000e+00> : vector<8x32xf32>
    %186 = tpu.matmul %183, %185, %cst_153 {dimension_numbers = #tpu.dot_dimension_numbers<[1], [0], [0], [1], [0, 0, 1, 1], [], []>} : vector<8x32xf32>, vector<32x32xf32>, vector<8x32xf32> -> vector<8x32xf32>
    %c1_154 = arith.constant 1 : index
    %c0_155 = arith.constant 0 : index
    %c0_156 = arith.constant 0 : index
    %187 = vector.load %arg5[%c1_154, %c0_155, %c0_156] : memref<2x32x32xf32, #tpu.memory_space<vmem>>, vector<1x32x32xf32>
    %188 = vector.shape_cast %187 : vector<1x32x32xf32> to vector<32x32xf32>
    %cst_157 = arith.constant dense<0.000000e+00> : vector<8x32xf32>
    %189 = tpu.matmul %169, %188, %cst_157 {dimension_numbers = #tpu.dot_dimension_numbers<[1], [0], [0], [1], [0, 0, 1, 1], [], []>} : vector<8x32xf32>, vector<32x32xf32>, vector<8x32xf32> -> vector<8x32xf32>
    %190 = arith.addf %186, %189 : vector<8x32xf32>
    %cst_158 = arith.constant 0.000000e+00 : f32
    %191 = vector.broadcast %cst_158 : f32 to vector<8x32xf32>
    %192 = arith.maximumf %190, %191 : vector<8x32xf32>
    %c0_159 = arith.constant 0 : index
    %c7 = arith.constant 7 : index
    %193 = vector.load %arg2[%c0_159, %c7] : memref<8x8xf32, #tpu.memory_space<vmem>>, vector<8x1xf32>
    %194 = vector.broadcast %193 : vector<8x1xf32> to vector<8x32xf32>
    %195 = arith.mulf %194, %192 : vector<8x32xf32>
    %196 = arith.addf %173, %195 : vector<8x32xf32>
    %c0_160 = arith.constant 0 : index
    %c0_161 = arith.constant 0 : index
    %197 = vector.load %arg6[%c0_160, %c0_161] : memref<32x64xf32, #tpu.memory_space<vmem>>, vector<32x64xf32>
    %cst_162 = arith.constant dense<0.000000e+00> : vector<8x64xf32>
    %198 = tpu.matmul %196, %197, %cst_162 {dimension_numbers = #tpu.dot_dimension_numbers<[1], [0], [0], [1], [0, 0, 1, 1], [], []>} : vector<8x32xf32>, vector<32x64xf32>, vector<8x64xf32> -> vector<8x64xf32>
    %cst_163 = arith.constant 0.000000e+00 : f32
    %199 = vector.broadcast %cst_163 : f32 to vector<8x64xf32>
    %200 = arith.maximumf %198, %199 : vector<8x64xf32>
    %c0_164 = arith.constant 0 : index
    %c0_165 = arith.constant 0 : index
    %201 = vector.load %arg7[%c0_164, %c0_165] : memref<64x128xf32, #tpu.memory_space<vmem>>, vector<64x128xf32>
    %cst_166 = arith.constant dense<0.000000e+00> : vector<8x128xf32>
    %202 = tpu.matmul %200, %201, %cst_166 {dimension_numbers = #tpu.dot_dimension_numbers<[1], [0], [0], [1], [0, 0, 1, 1], [], []>} : vector<8x64xf32>, vector<64x128xf32>, vector<8x128xf32> -> vector<8x128xf32>
    %c0_167 = arith.constant 0 : index
    %c0_168 = arith.constant 0 : index
    %203 = vector.load %arg8[%c0_167, %c0_168] : memref<8x128xf32, #tpu.memory_space<vmem>>, vector<8x128xf32>
    tpu.vector_store %arg8[%c0_167, %c0_168], %202 {strides = array<i32>} : memref<8x128xf32, #tpu.memory_space<vmem>>, vector<8x128xf32>,
    return
  }
  func.func @transform_0(%arg0: i32) -> (i32, i32) {
    %c0_i32 = arith.constant 0 : i32
    %c0_i32_0 = arith.constant 0 : i32
    %c0_i32_1 = arith.constant 0 : i32
    return %c0_i32, %c0_i32_0 : i32, i32
  }
  func.func @transform_1(%arg0: i32) -> (i32, i32) {
    %c0_i32 = arith.constant 0 : i32
    %c0_i32_0 = arith.constant 0 : i32
    %c0_i32_1 = arith.constant 0 : i32
    return %c0_i32, %c0_i32_0 : i32, i32
  }
  func.func @transform_2(%arg0: i32) -> (i32, i32) {
    %c0_i32 = arith.constant 0 : i32
    %c0_i32_0 = arith.constant 0 : i32
    %c0_i32_1 = arith.constant 0 : i32
    return %c0_i32, %c0_i32_0 : i32, i32
  }
  func.func @transform_3(%arg0: i32) -> (i32, i32, i32) {
    %c0_i32 = arith.constant 0 : i32
    %c0_i32_0 = arith.constant 0 : i32
    %c0_i32_1 = arith.constant 0 : i32
    %c0_i32_2 = arith.constant 0 : i32
    return %c0_i32, %c0_i32_0, %c0_i32_1 : i32, i32, i32
  }
  func.func @transform_4(%arg0: i32) -> (i32, i32, i32) {
    %c0_i32 = arith.constant 0 : i32
    %c0_i32_0 = arith.constant 0 : i32
    %c0_i32_1 = arith.constant 0 : i32
    %c0_i32_2 = arith.constant 0 : i32
    return %c0_i32, %c0_i32_0, %c0_i32_1 : i32, i32, i32
  }
  func.func @transform_5(%arg0: i32) -> (i32, i32) {
    %c0_i32 = arith.constant 0 : i32
    %c0_i32_0 = arith.constant 0 : i32
    %c0_i32_1 = arith.constant 0 : i32
    return %c0_i32, %c0_i32_0 : i32, i32
  }
  func.func @transform_6(%arg0: i32) -> (i32, i32) {
    %c0_i32 = arith.constant 0 : i32
    %c0_i32_0 = arith.constant 0 : i32
    %c0_i32_1 = arith.constant 0 : i32
    return %c0_i32, %c0_i32_0 : i32, i32
  }
  func.func @transform_7(%arg0: i32) -> (i32, i32) {
    %c0_i32 = arith.constant 0 : i32
    %c0_i32_0 = arith.constant 0 : i32
    %c0_i32_1 = arith.constant 0 : i32
    return %c0_i32, %c0_i32_0 : i32, i32
  }
}

</mosaic_0001>

<llo_original>
// kernel: tpu_custom_call.1
$region0: #{tpu_custom_call.1}
  #allocation0 [shape = 'u32[]', space=smem, size = 0x4, offset = 0x4, fixed_abs, tag = 'smem constant byte address 0x4 - core index']
  #allocation1 [shape = 'u32[144,128]{1,0:T(1,128)}', space=vmem, size = 0x12000, scoped, tag = 'internal scratch']
  %s0 = inlined_call_operand.vmem [shape: s32[64,1], index: 0, kind: input, shape index: {}]
  %s1 = inlined_call_operand.hbm [shape: f32[8,8], index: 1, kind: input, shape index: {}]
  %s2 = inlined_call_operand.vmem [shape: f32[128,32], index: 2, kind: input, shape index: {}]
  %s3 = inlined_call_operand.vmem [shape: f32[2,32,32], index: 3, kind: input, shape index: {}]
  %s4 = inlined_call_operand.vmem [shape: f32[2,32,32], index: 4, kind: input, shape index: {}]
  %s5 = inlined_call_operand.hbm [shape: f32[32,64], index: 5, kind: input, shape index: {}]
  %s6 = inlined_call_operand.vmem [shape: f32[64,128], index: 6, kind: input, shape index: {}]
  %s7 = inlined_call_operand.hbm [shape: f32[8,128], index: 7, kind: output, shape index: {}]
  %s8 = sld [smem:[#allocation0]]
  $region46: #{tpu_custom_call.1} parent=0
    _
  %s10 = ssub.s32 1, %s8
  %s11 = scalar_select 0, %s10, %s8
  $region1: #{tpu_custom_call.1} parent=0
    #allocation2 [shape = 'u8[4096]{0}', space=vmem, size = 0x1000, scoped, tag = 'input window, operand 1, single buffered']
    #allocation3 [shape = 's32[1]{0}', space=sflag, size = 0x4, scoped, tag = 'scoped memory for tpu_custom_call.1']
    #allocation4 [shape = 's32[1]{0}', space=sflag, size = 0x4, scoped, tag = 'scoped memory for tpu_custom_call.1']
    #allocation5 [shape = 'u8[16384]{0}', space=vmem, size = 0x4000, scoped, tag = 'input window, operand 5, single buffered']
    #allocation6 [shape = 's32[1]{0}', space=sflag, size = 0x4, scoped, tag = 'scoped memory for tpu_custom_call.1']
    #allocation7 [shape = 'u8[4096]{0}', space=vmem, size = 0x1000, scoped, tag = 'output window, operand 0, single buffered']
    %12 = vsyncpa [#allocation3], 0
    %13 = vsyncpa [#allocation6], 0
    %14 = vsyncpa [#allocation4], 0
    // Predicated region
    $region2: #{tpu_custom_call.1} parent=1 // pred_check
      _
    $region3: #{tpu_custom_call.1} parent=1 // pred_check_branch
      %16 = sbr.rel (0) target = $region5
    $region4: #{tpu_custom_call.1} parent=1 // pred_region
      _
    $region5: #{tpu_custom_call.1} parent=1 // pred_fallthru
      _
    // Predicated region
    $region6: #{tpu_custom_call.1} parent=1 // pred_check
      _
    $region7: #{tpu_custom_call.1} parent=1 // pred_check_branch
      %18 = sbr.rel (0) target = $region9
    $region8: #{tpu_custom_call.1} parent=1 // pred_region
      %s20 = ssub.s32 128, 128
      %21 = vsyncadd [#allocation3], %s20
      %s23 = sshll.u32 [#allocation2], 4
      %s24 = int_to_ptr.vmem [resolvable:$true] %s23
      %26 = dma.hbm_to_vmem [thread:$0]  %s1, 128, %s24, [#allocation3]
    $region9: #{tpu_custom_call.1} parent=1 // pred_fallthru
      _
    // Predicated region
    $region10: #{tpu_custom_call.1} parent=1 // pred_check
      _
    $region11: #{tpu_custom_call.1} parent=1 // pred_check_branch
      %28 = sbr.rel (0) target = $region13
    $region12: #{tpu_custom_call.1} parent=1 // pred_region
      _
    $region13: #{tpu_custom_call.1} parent=1 // pred_fallthru
      _
    // Predicated region
    $region14: #{tpu_custom_call.1} parent=1 // pred_check
      _
    $region15: #{tpu_custom_call.1} parent=1 // pred_check_branch
      %30 = sbr.rel (0) target = $region17
    $region16: #{tpu_custom_call.1} parent=1 // pred_region
      _
    $region17: #{tpu_custom_call.1} parent=1 // pred_fallthru
      _
    // Predicated region
    $region18: #{tpu_custom_call.1} parent=1 // pred_check
      _
    $region19: #{tpu_custom_call.1} parent=1 // pred_check_branch
      %32 = sbr.rel (0) target = $region21
    $region20: #{tpu_custom_call.1} parent=1 // pred_region
      _
    $region21: #{tpu_custom_call.1} parent=1 // pred_fallthru
      _
    // Predicated region
    $region22: #{tpu_custom_call.1} parent=1 // pred_check
      _
    $region23: #{tpu_custom_call.1} parent=1 // pred_check_branch
      %34 = sbr.rel (0) target = $region25
    $region24: #{tpu_custom_call.1} parent=1 // pred_region
      %s36 = ssub.s32 512, 512
      %37 = vsyncadd [#allocation6], %s36
      %s38 = sshll.u32 [#allocation5], 4
      %s39 = int_to_ptr.vmem [resolvable:$true] %s38
      %44 = dma.hbm_to_vmem [thread:$0]  %s5, 512, %s39, [#allocation6], 128, 128, 8
    $region25: #{tpu_custom_call.1} parent=1 // pred_fallthru
      _
    // Predicated region
    $region26: #{tpu_custom_call.1} parent=1 // pred_check
      _
    $region27: #{tpu_custom_call.1} parent=1 // pred_check_branch
      %46 = sbr.rel (0) target = $region29
    $region28: #{tpu_custom_call.1} parent=1 // pred_region
      _
    $region29: #{tpu_custom_call.1} parent=1 // pred_fallthru
      _
    // Predicated region
    $region30: #{tpu_custom_call.1} parent=1 // pred_check
      _
    $region31: #{tpu_custom_call.1} parent=1 // pred_check_branch
      %48 = sbr.rel (0) target = $region33
    $region32: #{tpu_custom_call.1} parent=1 // pred_region
      %49 = dma.done [#allocation3], 128
    $region33: #{tpu_custom_call.1} parent=1 // pred_fallthru
      _
    // Predicated region
    $region34: #{tpu_custom_call.1} parent=1 // pred_check
      _
    $region35: #{tpu_custom_call.1} parent=1 // pred_check_branch
      %51 = sbr.rel (0) target = $region37
    $region36: #{tpu_custom_call.1} parent=1 // pred_region
      %52 = dma.done [#allocation6], 512
    $region37: #{tpu_custom_call.1} parent=1 // pred_fallthru
      _
    %v53 = vld [vmem:[%s0] sm:$0xff]
    %v54 = vld [vmem:[%s0 + $0x8] sm:$0xff]
    %v55 = vld [vmem:[%s0 + $0x10] sm:$0xff]
    %v56 = vld [vmem:[%s0 + $0x18] sm:$0xff]
    %v57 = vld [vmem:[%s0 + $0x20] sm:$0xff]
    %v58 = vld [vmem:[%s0 + $0x28] sm:$0xff]
    %v59 = vld [vmem:[%s0 + $0x30] sm:$0xff]
    %v60 = vld [vmem:[%s0 + $0x38] sm:$0xff]
    %v61 = vlaneseq
    %v62 = vand.u32 %v61, 127
    %63 = vset.pattern.permute.xlu0 0
    %64 = vperm.xlu0 %63, %v53
    %v65 = vpop.permute.xlu0 %64
    %66 = vset.pattern.permute.xlu0 0
    %67 = vperm.xlu0 %66, %v54
    %v68 = vpop.permute.xlu0 %67
    %69 = vset.pattern.permute.xlu0 0
    %70 = vperm.xlu0 %69, %v55
    %v71 = vpop.permute.xlu0 %70
    %72 = vset.pattern.permute.xlu0 0
    %73 = vperm.xlu0 %72, %v56
    %v74 = vpop.permute.xlu0 %73
    %75 = vset.pattern.permute.xlu0 0
    %76 = vperm.xlu0 %75, %v57
    %v77 = vpop.permute.xlu0 %76
    %78 = vset.pattern.permute.xlu0 0
    %79 = vperm.xlu0 %78, %v58
    %v80 = vpop.permute.xlu0 %79
    %81 = vset.pattern.permute.xlu0 0
    %82 = vperm.xlu0 %81, %v59
    %v83 = vpop.permute.xlu0 %82
    %84 = vset.pattern.permute.xlu0 0
    %85 = vperm.xlu0 %84, %v60
    %v86 = vpop.permute.xlu0 %85
    %vm87 = vcmp.eq.s32.totalorder %v65, %v62
    %vm88 = vcmp.eq.s32.totalorder %v68, %v62
    %vm89 = vcmp.eq.s32.totalorder %v71, %v62
    %vm90 = vcmp.eq.s32.totalorder %v74, %v62
    %vm91 = vcmp.eq.s32.totalorder %v77, %v62
    %vm92 = vcmp.eq.s32.totalorder %v80, %v62
    %vm93 = vcmp.eq.s32.totalorder %v83, %v62
    %vm94 = vcmp.eq.s32.totalorder %v86, %v62
    %v95 = vsel %vm87, 1, 0
    %v96 = vsel %vm88, 1, 0
    %v97 = vsel %vm89, 1, 0
    %v98 = vsel %vm90, 1, 0
    %v99 = vsel %vm91, 1, 0
    %v100 = vsel %vm92, 1, 0
    %v101 = vsel %vm93, 1, 0
    %v102 = vsel %vm94, 1, 0
    %v103 = vcvt.s32.f32 %v95
    %v104 = vcvt.s32.f32 %v96
    %v105 = vcvt.s32.f32 %v97
    %v106 = vcvt.s32.f32 %v98
    %v107 = vcvt.s32.f32 %v99
    %v108 = vcvt.s32.f32 %v100
    %v109 = vcvt.s32.f32 %v101
    %v110 = vcvt.s32.f32 %v102
    %v111 = vld [vmem:[%s2] sm:$0xff]
    %v112 = vld [vmem:[%s2 + $0x8] sm:$0xff]
    %v113 = vld [vmem:[%s2 + $0x10] sm:$0xff]
    %v114 = vld [vmem:[%s2 + $0x18] sm:$0xff]
    %v115 = vld [vmem:[%s2 + $0x20] sm:$0xff]
    %v116 = vld [vmem:[%s2 + $0x28] sm:$0xff]
    %v117 = vld [vmem:[%s2 + $0x30] sm:$0xff]
    %v118 = vld [vmem:[%s2 + $0x38] sm:$0xff]
    %v119 = vld [vmem:[%s2 + $0x40] sm:$0xff]
    %v120 = vld [vmem:[%s2 + $0x48] sm:$0xff]
    %v121 = vld [vmem:[%s2 + $0x50] sm:$0xff]
    %v122 = vld [vmem:[%s2 + $0x58] sm:$0xff]
    %v123 = vld [vmem:[%s2 + $0x60] sm:$0xff]
    %v124 = vld [vmem:[%s2 + $0x68] sm:$0xff]
    %v125 = vld [vmem:[%s2 + $0x70] sm:$0xff]
    %v126 = vld [vmem:[%s2 + $0x78] sm:$0xff]
    %127 = vmatprep.subr.mxu0 0.0
    %128 = vmatpush1.msra.mxu0 %v111
    %129 = vmatprep.subr.mxu0 0.0
    %130 = vmatpush1.msra.mxu0 %v112
    %131 = vmatprep.subr.mxu0 0.0
    %132 = vmatpush1.msra.mxu0 %v113
    %133 = vmatprep.subr.mxu0 0.0
    %134 = vmatpush1.msra.mxu0 %v114
    %135 = vmatprep.subr.mxu0 0.0
    %136 = vmatpush1.msra.mxu0 %v115
    %137 = vmatprep.subr.mxu0 0.0
    %138 = vmatpush1.msra.mxu0 %v116
    %139 = vmatprep.subr.mxu0 0.0
    %140 = vmatpush1.msra.mxu0 %v117
    %141 = vmatprep.subr.mxu0 0.0
    %142 = vmatpush1.msra.mxu0 %v118
    %143 = vmatprep.subr.mxu0 0.0
    %144 = vmatpush1.msra.mxu0 %v119
    %145 = vmatprep.subr.mxu0 0.0
    %146 = vmatpush1.msra.mxu0 %v120
    %147 = vmatprep.subr.mxu0 0.0
    %148 = vmatpush1.msra.mxu0 %v121
    %149 = vmatprep.subr.mxu0 0.0
    %150 = vmatpush1.msra.mxu0 %v122
    %151 = vmatprep.subr.mxu0 0.0
    %152 = vmatpush1.msra.mxu0 %v123
    %153 = vmatprep.subr.mxu0 0.0
    %154 = vmatpush1.msra.mxu0 %v124
    %155 = vmatprep.subr.mxu0 0.0
    %156 = vmatpush1.msra.mxu0 %v125
    %157 = vmatprep.subr.mxu0 0.0
    %158 = vmatpush1.msra.mxu0 %v126
    %159 = vmatprep.subr.mxu0 0.0
    %160 = vmatpush1.msra.mxu0 0.0
    %161 = vmatprep.subr.mxu0 0.0
    %162 = vmatpush1.msra.mxu0 0.0
    %163 = vmatprep.subr.mxu0 0.0
    %164 = vmatpush1.msra.mxu0 0.0
    %165 = vmatprep.subr.mxu0 0.0
    %166 = vmatpush1.msra.mxu0 0.0
    %167 = vmatprep.subr.mxu0 0.0
    %168 = vmatpush1.msra.mxu0 0.0
    %169 = vmatprep.subr.mxu0 0.0
    %170 = vmatpush1.msra.mxu0 0.0
    %171 = vmatprep.subr.mxu0 0.0
    %172 = vmatpush1.msra.mxu0 0.0
    %173 = vmatprep.subr.mxu0 0.0
    %174 = vmatpush1.msra.mxu0 0.0
    %175 = vmatprep.subr.mxu0 0.0
    %176 = vmatpush1.msra.mxu0 0.0
    %177 = vmatprep.subr.mxu0 0.0
    %178 = vmatpush1.msra.mxu0 0.0
    %179 = vmatprep.subr.mxu0 0.0
    %180 = vmatpush1.msra.mxu0 0.0
    %181 = vmatprep.subr.mxu0 0.0
    %182 = vmatpush1.msra.mxu0 0.0
    %183 = vmatprep.subr.mxu0 0.0
    %184 = vmatpush1.msra.mxu0 0.0
    %185 = vmatprep.subr.mxu0 0.0
    %186 = vmatpush1.msra.mxu0 0.0
    %187 = vmatprep.subr.mxu0 0.0
    %188 = vmatpush1.msra.mxu0 0.0
    %189 = vmatprep.subr.mxu0 0.0
    %190 = vmatpush1.msra.mxu0 0.0
    %191 = vmatprep.mubr.f32.mxu0 0.0
    %192 = vmatmul.mubr.f32.gmra.mrb[0].mxu0 %v103
    %v193 = vpop.f32.mrb[0].mxu0
    %v194 = vadd.f32 0.0, %v193
    %v195 = vpop.f32.mrb[0].mxu0
    %196 = vmatprep.mubr.f32.mxu0 0.0
    %197 = vmatmul.mubr.f32.gmra.mrb[0].mxu0 %v104
    %v198 = vpop.f32.mrb[0].mxu0
    %v199 = vadd.f32 0.0, %v198
    %v200 = vpop.f32.mrb[0].mxu0
    %201 = vmatprep.mubr.f32.mxu0 0.0
    %202 = vmatmul.mubr.f32.gmra.mrb[0].mxu0 %v105
    %v203 = vpop.f32.mrb[0].mxu0
    %v204 = vadd.f32 0.0, %v203
    %v205 = vpop.f32.mrb[0].mxu0
    %206 = vmatprep.mubr.f32.mxu0 0.0
    %207 = vmatmul.mubr.f32.gmra.mrb[0].mxu0 %v106
    %v208 = vpop.f32.mrb[0].mxu0
    %v209 = vadd.f32 0.0, %v208
    %v210 = vpop.f32.mrb[0].mxu0
    %211 = vmatprep.mubr.f32.mxu0 0.0
    %212 = vmatmul.mubr.f32.gmra.mrb[0].mxu0 %v107
    %v213 = vpop.f32.mrb[0].mxu0
    %v214 = vadd.f32 0.0, %v213
    %v215 = vpop.f32.mrb[0].mxu0
    %216 = vmatprep.mubr.f32.mxu0 0.0
    %217 = vmatmul.mubr.f32.gmra.mrb[0].mxu0 %v108
    %v218 = vpop.f32.mrb[0].mxu0
    %v219 = vadd.f32 0.0, %v218
    %v220 = vpop.f32.mrb[0].mxu0
    %221 = vmatprep.mubr.f32.mxu0 0.0
    %222 = vmatmul.mubr.f32.gmra.mrb[0].mxu0 %v109
    %v223 = vpop.f32.mrb[0].mxu0
    %v224 = vadd.f32 0.0, %v223
    %v225 = vpop.f32.mrb[0].mxu0
    %226 = vmatprep.mubr.f32.mxu0 0.0
    %227 = vmatmul.mubr.f32.gmra.mrb[0].mxu0 %v110
    %v228 = vpop.f32.mrb[0].mxu0
    %v229 = vadd.f32 0.0, %v228
    %v230 = vpop.f32.mrb[0].mxu0
    %231 = vdwg.mxu0
    %v232 = vmax.f32 %v194, 0.0
    %v233 = vmax.f32 %v199, 0.0
    %v234 = vmax.f32 %v204, 0.0
    %v235 = vmax.f32 %v209, 0.0
    %v236 = vmax.f32 %v214, 0.0
    %v237 = vmax.f32 %v219, 0.0
    %v238 = vmax.f32 %v224, 0.0
    %v239 = vmax.f32 %v229, 0.0
    %v240 = vld [vmem:[%s3] sm:$0xff]
    %v241 = vld [vmem:[%s3 + $0x8] sm:$0xff]
    %v242 = vld [vmem:[%s3 + $0x10] sm:$0xff]
    %v243 = vld [vmem:[%s3 + $0x18] sm:$0xff]
    %v244 = vld [vmem:[%s4] sm:$0xff]
    %v245 = vld [vmem:[%s4 + $0x8] sm:$0xff]
    %v246 = vld [vmem:[%s4 + $0x10] sm:$0xff]
    %v247 = vld [vmem:[%s4 + $0x18] sm:$0xff]
    %vm248 = vcmask 261120
    %v250 = vsel %vm248, 0.0, 0
    %252 = vmatprep.subr.mxu0 0.0
    %253 = vmatpush1.msra.mxu0 %v244
    %254 = vmatprep.subr.mxu0 0.0
    %255 = vmatpush1.msra.mxu0 %v245
    %256 = vmatprep.subr.mxu0 0.0
    %257 = vmatpush1.msra.mxu0 %v246
    %258 = vmatprep.subr.mxu0 0.0
    %259 = vmatpush1.msra.mxu0 %v247
    %260 = vmatprep.subr.mxu0 0.0
    %261 = vmatpush1.msra.mxu0 0.0
    %262 = vmatprep.subr.mxu0 0.0
    %263 = vmatpush1.msra.mxu0 0.0
    %264 = vmatprep.subr.mxu0 0.0
    %265 = vmatpush1.msra.mxu0 0.0
    %266 = vmatprep.subr.mxu0 0.0
    %267 = vmatpush1.msra.mxu0 0.0
    %268 = vmatprep.subr.mxu0 0.0
    %269 = vmatpush1.msra.mxu0 0.0
    %270 = vmatprep.subr.mxu0 0.0
    %271 = vmatpush1.msra.mxu0 0.0
    %272 = vmatprep.subr.mxu0 0.0
    %273 = vmatpush1.msra.mxu0 0.0
    %274 = vmatprep.subr.mxu0 0.0
    %275 = vmatpush1.msra.mxu0 0.0
    %276 = vmatprep.subr.mxu0 0.0
    %277 = vmatpush1.msra.mxu0 0.0
    %278 = vmatprep.subr.mxu0 0.0
    %279 = vmatpush1.msra.mxu0 0.0
    %280 = vmatprep.subr.mxu0 0.0
    %281 = vmatpush1.msra.mxu0 0.0
    %282 = vmatprep.subr.mxu0 0.0
    %283 = vmatpush1.msra.mxu0 0.0
    %284 = vmatprep.subr.mxu0 0.0
    %285 = vmatpush1.msra.mxu0 0.0
    %286 = vmatprep.subr.mxu0 0.0
    %287 = vmatpush1.msra.mxu0 0.0
    %288 = vmatprep.subr.mxu0 0.0
    %289 = vmatpush1.msra.mxu0 0.0
    %290 = vmatprep.subr.mxu0 0.0
    %291 = vmatpush1.msra.mxu0 0.0
    %292 = vmatprep.subr.mxu0 0.0
    %293 = vmatpush1.msra.mxu0 0.0
    %294 = vmatprep.subr.mxu0 0.0
    %295 = vmatpush1.msra.mxu0 0.0
    %296 = vmatprep.subr.mxu0 0.0
    %297 = vmatpush1.msra.mxu0 0.0
    %298 = vmatprep.subr.mxu0 0.0
    %299 = vmatpush1.msra.mxu0 0.0
    %300 = vmatprep.subr.mxu0 0.0
    %301 = vmatpush1.msra.mxu0 0.0
    %302 = vmatprep.subr.mxu0 0.0
    %303 = vmatpush1.msra.mxu0 0.0
    %304 = vmatprep.subr.mxu0 0.0
    %305 = vmatpush1.msra.mxu0 0.0
    %306 = vmatprep.subr.mxu0 0.0
    %307 = vmatpush1.msra.mxu0 0.0
    %308 = vmatprep.subr.mxu0 0.0
    %309 = vmatpush1.msra.mxu0 0.0
    %310 = vmatprep.subr.mxu0 0.0
    %311 = vmatpush1.msra.mxu0 0.0
    %312 = vmatprep.subr.mxu0 0.0
    %313 = vmatpush1.msra.mxu0 0.0
    %314 = vmatprep.subr.mxu0 0.0
    %315 = vmatpush1.msra.mxu0 0.0
    %316 = vmatprep.mubr.f32.mxu0 0.0
    %317 = vmatmul.mubr.f32.gmra.mrb[0].mxu0 %v250
    %v318 = vpop.f32.mrb[0].mxu0
    %v319 = vadd.f32 0.0, %v318
    %v320 = vpop.f32.mrb[0].mxu0
    %321 = vdwg.mxu0
    %v323 = vsel %vm248, %v232, 0
    %325 = vmatprep.subr.mxu0 0.0
    %326 = vmatpush1.msra.mxu0 %v240
    %327 = vmatprep.subr.mxu0 0.0
    %328 = vmatpush1.msra.mxu0 %v241
    %329 = vmatprep.subr.mxu0 0.0
    %330 = vmatpush1.msra.mxu0 %v242
    %331 = vmatprep.subr.mxu0 0.0
    %332 = vmatpush1.msra.mxu0 %v243
    %333 = vmatprep.subr.mxu0 0.0
    %334 = vmatpush1.msra.mxu0 0.0
    %335 = vmatprep.subr.mxu0 0.0
    %336 = vmatpush1.msra.mxu0 0.0
    %337 = vmatprep.subr.mxu0 0.0
    %338 = vmatpush1.msra.mxu0 0.0
    %339 = vmatprep.subr.mxu0 0.0
    %340 = vmatpush1.msra.mxu0 0.0
    %341 = vmatprep.subr.mxu0 0.0
    %342 = vmatpush1.msra.mxu0 0.0
    %343 = vmatprep.subr.mxu0 0.0
    %344 = vmatpush1.msra.mxu0 0.0
    %345 = vmatprep.subr.mxu0 0.0
    %346 = vmatpush1.msra.mxu0 0.0
    %347 = vmatprep.subr.mxu0 0.0
    %348 = vmatpush1.msra.mxu0 0.0
    %349 = vmatprep.subr.mxu0 0.0
    %350 = vmatpush1.msra.mxu0 0.0
    %351 = vmatprep.subr.mxu0 0.0
    %352 = vmatpush1.msra.mxu0 0.0
    %353 = vmatprep.subr.mxu0 0.0
    %354 = vmatpush1.msra.mxu0 0.0
    %355 = vmatprep.subr.mxu0 0.0
    %356 = vmatpush1.msra.mxu0 0.0
    %357 = vmatprep.subr.mxu0 0.0
    %358 = vmatpush1.msra.mxu0 0.0
    %359 = vmatprep.subr.mxu0 0.0
    %360 = vmatpush1.msra.mxu0 0.0
    %361 = vmatprep.subr.mxu0 0.0
    %362 = vmatpush1.msra.mxu0 0.0
    %363 = vmatprep.subr.mxu0 0.0
    %364 = vmatpush1.msra.mxu0 0.0
    %365 = vmatprep.subr.mxu0 0.0
    %366 = vmatpush1.msra.mxu0 0.0
    %367 = vmatprep.subr.mxu0 0.0
    %368 = vmatpush1.msra.mxu0 0.0
    %369 = vmatprep.subr.mxu0 0.0
    %370 = vmatpush1.msra.mxu0 0.0
    %371 = vmatprep.subr.mxu0 0.0
    %372 = vmatpush1.msra.mxu0 0.0
    %373 = vmatprep.subr.mxu0 0.0
    %374 = vmatpush1.msra.mxu0 0.0
    %375 = vmatprep.subr.mxu0 0.0
    %376 = vmatpush1.msra.mxu0 0.0
    %377 = vmatprep.subr.mxu0 0.0
    %378 = vmatpush1.msra.mxu0 0.0
    %379 = vmatprep.subr.mxu0 0.0
    %380 = vmatpush1.msra.mxu0 0.0
    %381 = vmatprep.subr.mxu0 0.0
    %382 = vmatpush1.msra.mxu0 0.0
    %383 = vmatprep.subr.mxu0 0.0
    %384 = vmatpush1.msra.mxu0 0.0
    %385 = vmatprep.subr.mxu0 0.0
    %386 = vmatpush1.msra.mxu0 0.0
    %387 = vmatprep.subr.mxu0 0.0
    %388 = vmatpush1.msra.mxu0 0.0
    %389 = vmatprep.mubr.f32.mxu0 0.0
    %390 = vmatmul.mubr.f32.gmra.mrb[0].mxu0 %v323
    %v391 = vpop.f32.mrb[0].mxu0
    %v392 = vadd.f32 %v319, %v391
    %v393 = vpop.f32.mrb[0].mxu0
    %394 = vdwg.mxu0
    %v395 = vmax.f32 %v392, 0.0
    %s396 = scalar_lea.vmem %s3, 32
    %v397 = vld [vmem:[%s396] sm:$0xff]
    %v398 = vld [vmem:[%s396 + $0x8] sm:$0xff]
    %v399 = vld [vmem:[%s396 + $0x10] sm:$0xff]
    %v400 = vld [vmem:[%s396 + $0x18] sm:$0xff]
    %s401 = scalar_lea.vmem %s4, 32
    %v402 = vld [vmem:[%s401] sm:$0xff]
    %v403 = vld [vmem:[%s401 + $0x8] sm:$0xff]
    %v404 = vld [vmem:[%s401 + $0x10] sm:$0xff]
    %v405 = vld [vmem:[%s401 + $0x18] sm:$0xff]
    %406 = vmatprep.subr.mxu0 0.0
    %407 = vmatpush1.msra.mxu0 %v402
    %408 = vmatprep.subr.mxu0 0.0
    %409 = vmatpush1.msra.mxu0 %v403
    %410 = vmatprep.subr.mxu0 0.0
    %411 = vmatpush1.msra.mxu0 %v404
    %412 = vmatprep.subr.mxu0 0.0
    %413 = vmatpush1.msra.mxu0 %v405
    %414 = vmatprep.subr.mxu0 0.0
    %415 = vmatpush1.msra.mxu0 0.0
    %416 = vmatprep.subr.mxu0 0.0
    %417 = vmatpush1.msra.mxu0 0.0
    %418 = vmatprep.subr.mxu0 0.0
    %419 = vmatpush1.msra.mxu0 0.0
    %420 = vmatprep.subr.mxu0 0.0
    %421 = vmatpush1.msra.mxu0 0.0
    %422 = vmatprep.subr.mxu0 0.0
    %423 = vmatpush1.msra.mxu0 0.0
    %424 = vmatprep.subr.mxu0 0.0
    %425 = vmatpush1.msra.mxu0 0.0
    %426 = vmatprep.subr.mxu0 0.0
    %427 = vmatpush1.msra.mxu0 0.0
    %428 = vmatprep.subr.mxu0 0.0
    %429 = vmatpush1.msra.mxu0 0.0
    %430 = vmatprep.subr.mxu0 0.0
    %431 = vmatpush1.msra.mxu0 0.0
    %432 = vmatprep.subr.mxu0 0.0
    %433 = vmatpush1.msra.mxu0 0.0
    %434 = vmatprep.subr.mxu0 0.0
    %435 = vmatpush1.msra.mxu0 0.0
    %436 = vmatprep.subr.mxu0 0.0
    %437 = vmatpush1.msra.mxu0 0.0
    %438 = vmatprep.subr.mxu0 0.0
    %439 = vmatpush1.msra.mxu0 0.0
    %440 = vmatprep.subr.mxu0 0.0
    %441 = vmatpush1.msra.mxu0 0.0
    %442 = vmatprep.subr.mxu0 0.0
    %443 = vmatpush1.msra.mxu0 0.0
    %444 = vmatprep.subr.mxu0 0.0
    %445 = vmatpush1.msra.mxu0 0.0
    %446 = vmatprep.subr.mxu0 0.0
    %447 = vmatpush1.msra.mxu0 0.0
    %448 = vmatprep.subr.mxu0 0.0
    %449 = vmatpush1.msra.mxu0 0.0
    %450 = vmatprep.subr.mxu0 0.0
    %451 = vmatpush1.msra.mxu0 0.0
    %452 = vmatprep.subr.mxu0 0.0
    %453 = vmatpush1.msra.mxu0 0.0
    %454 = vmatprep.subr.mxu0 0.0
    %455 = vmatpush1.msra.mxu0 0.0
    %456 = vmatprep.subr.mxu0 0.0
    %457 = vmatpush1.msra.mxu0 0.0
    %458 = vmatprep.subr.mxu0 0.0
    %459 = vmatpush1.msra.mxu0 0.0
    %460 = vmatprep.subr.mxu0 0.0
    %461 = vmatpush1.msra.mxu0 0.0
    %462 = vmatprep.subr.mxu0 0.0
    %463 = vmatpush1.msra.mxu0 0.0
    %464 = vmatprep.subr.mxu0 0.0
    %465 = vmatpush1.msra.mxu0 0.0
    %466 = vmatprep.subr.mxu0 0.0
    %467 = vmatpush1.msra.mxu0 0.0
    %468 = vmatprep.subr.mxu0 0.0
    %469 = vmatpush1.msra.mxu0 0.0
    %470 = vmatprep.mubr.f32.mxu0 0.0
    %471 = vmatmul.mubr.f32.gmra.mrb[0].mxu0 %v250
    %v472 = vpop.f32.mrb[0].mxu0
    %v473 = vadd.f32 0.0, %v472
    %v474 = vpop.f32.mrb[0].mxu0
    %475 = vdwg.mxu0
    %v477 = vsel %vm248, %v395, 0
    %479 = vmatprep.subr.mxu0 0.0
    %480 = vmatpush1.msra.mxu0 %v397
    %481 = vmatprep.subr.mxu0 0.0
    %482 = vmatpush1.msra.mxu0 %v398
    %483 = vmatprep.subr.mxu0 0.0
    %484 = vmatpush1.msra.mxu0 %v399
    %485 = vmatprep.subr.mxu0 0.0
    %486 = vmatpush1.msra.mxu0 %v400
    %487 = vmatprep.subr.mxu0 0.0
    %488 = vmatpush1.msra.mxu0 0.0
    %489 = vmatprep.subr.mxu0 0.0
    %490 = vmatpush1.msra.mxu0 0.0
    %491 = vmatprep.subr.mxu0 0.0
    %492 = vmatpush1.msra.mxu0 0.0
    %493 = vmatprep.subr.mxu0 0.0
    %494 = vmatpush1.msra.mxu0 0.0
    %495 = vmatprep.subr.mxu0 0.0
    %496 = vmatpush1.msra.mxu0 0.0
    %497 = vmatprep.subr.mxu0 0.0
    %498 = vmatpush1.msra.mxu0 0.0
    %499 = vmatprep.subr.mxu0 0.0
    %500 = vmatpush1.msra.mxu0 0.0
    %501 = vmatprep.subr.mxu0 0.0
    %502 = vmatpush1.msra.mxu0 0.0
    %503 = vmatprep.subr.mxu0 0.0
    %504 = vmatpush1.msra.mxu0 0.0
    %505 = vmatprep.subr.mxu0 0.0
    %506 = vmatpush1.msra.mxu0 0.0
    %507 = vmatprep.subr.mxu0 0.0
    %508 = vmatpush1.msra.mxu0 0.0
    %509 = vmatprep.subr.mxu0 0.0
    %510 = vmatpush1.msra.mxu0 0.0
    %511 = vmatprep.subr.mxu0 0.0
    %512 = vmatpush1.msra.mxu0 0.0
    %513 = vmatprep.subr.mxu0 0.0
    %514 = vmatpush1.msra.mxu0 0.0
    %515 = vmatprep.subr.mxu0 0.0
    %516 = vmatpush1.msra.mxu0 0.0
    %517 = vmatprep.subr.mxu0 0.0
    %518 = vmatpush1.msra.mxu0 0.0
    %519 = vmatprep.subr.mxu0 0.0
    %520 = vmatpush1.msra.mxu0 0.0
    %521 = vmatprep.subr.mxu0 0.0
    %522 = vmatpush1.msra.mxu0 0.0
    %523 = vmatprep.subr.mxu0 0.0
    %524 = vmatpush1.msra.mxu0 0.0
    %525 = vmatprep.subr.mxu0 0.0
    %526 = vmatpush1.msra.mxu0 0.0
    %527 = vmatprep.subr.mxu0 0.0
    %528 = vmatpush1.msra.mxu0 0.0
    %529 = vmatprep.subr.mxu0 0.0
    %530 = vmatpush1.msra.mxu0 0.0
    %531 = vmatprep.subr.mxu0 0.0
    %532 = vmatpush1.msra.mxu0 0.0
    %533 = vmatprep.subr.mxu0 0.0
    %534 = vmatpush1.msra.mxu0 0.0
    %535 = vmatprep.subr.mxu0 0.0
    %536 = vmatpush1.msra.mxu0 0.0
    %537 = vmatprep.subr.mxu0 0.0
    %538 = vmatpush1.msra.mxu0 0.0
    %539 = vmatprep.subr.mxu0 0.0
    %540 = vmatpush1.msra.mxu0 0.0
    %541 = vmatprep.subr.mxu0 0.0
    %542 = vmatpush1.msra.mxu0 0.0
    %543 = vmatprep.mubr.f32.mxu0 0.0
    %544 = vmatmul.mubr.f32.gmra.mrb[0].mxu0 %v477
    %v545 = vpop.f32.mrb[0].mxu0
    %v546 = vadd.f32 %v473, %v545
    %v547 = vpop.f32.mrb[0].mxu0
    %548 = vdwg.mxu0
    %v549 = vmax.f32 %v546, 0.0
    %v550 = vld [vmem:[#allocation2] sm:$0xff]
    %552 = vset.pattern.permute.xlu0 0
    %553 = vperm.xlu0 %552, %v550
    %v554 = vpop.permute.xlu0 %553
    %v556 = vmul.f32 %v554, %v549
    %v557 = vadd.f32 %v556, 0.0
    %558 = vmatprep.subr.mxu0 0.0
    %559 = vmatpush1.msra.mxu0 %v244
    %560 = vmatprep.subr.mxu0 0.0
    %561 = vmatpush1.msra.mxu0 %v245
    %562 = vmatprep.subr.mxu0 0.0
    %563 = vmatpush1.msra.mxu0 %v246
    %564 = vmatprep.subr.mxu0 0.0
    %565 = vmatpush1.msra.mxu0 %v247
    %566 = vmatprep.subr.mxu0 0.0
    %567 = vmatpush1.msra.mxu0 0.0
    %568 = vmatprep.subr.mxu0 0.0
    %569 = vmatpush1.msra.mxu0 0.0
    %570 = vmatprep.subr.mxu0 0.0
    %571 = vmatpush1.msra.mxu0 0.0
    %572 = vmatprep.subr.mxu0 0.0
    %573 = vmatpush1.msra.mxu0 0.0
    %574 = vmatprep.subr.mxu0 0.0
    %575 = vmatpush1.msra.mxu0 0.0
    %576 = vmatprep.subr.mxu0 0.0
    %577 = vmatpush1.msra.mxu0 0.0
    %578 = vmatprep.subr.mxu0 0.0
    %579 = vmatpush1.msra.mxu0 0.0
    %580 = vmatprep.subr.mxu0 0.0
    %581 = vmatpush1.msra.mxu0 0.0
    %582 = vmatprep.subr.mxu0 0.0
    %583 = vmatpush1.msra.mxu0 0.0
    %584 = vmatprep.subr.mxu0 0.0
    %585 = vmatpush1.msra.mxu0 0.0
    %586 = vmatprep.subr.mxu0 0.0
    %587 = vmatpush1.msra.mxu0 0.0
    %588 = vmatprep.subr.mxu0 0.0
    %589 = vmatpush1.msra.mxu0 0.0
    %590 = vmatprep.subr.mxu0 0.0
    %591 = vmatpush1.msra.mxu0 0.0
    %592 = vmatprep.subr.mxu0 0.0
    %593 = vmatpush1.msra.mxu0 0.0
    %594 = vmatprep.subr.mxu0 0.0
    %595 = vmatpush1.msra.mxu0 0.0
    %596 = vmatprep.subr.mxu0 0.0
    %597 = vmatpush1.msra.mxu0 0.0
    %598 = vmatprep.subr.mxu0 0.0
    %599 = vmatpush1.msra.mxu0 0.0
    %600 = vmatprep.subr.mxu0 0.0
    %601 = vmatpush1.msra.mxu0 0.0
    %602 = vmatprep.subr.mxu0 0.0
    %603 = vmatpush1.msra.mxu0 0.0
    %604 = vmatprep.subr.mxu0 0.0
    %605 = vmatpush1.msra.mxu0 0.0
    %606 = vmatprep.subr.mxu0 0.0
    %607 = vmatpush1.msra.mxu0 0.0
    %608 = vmatprep.subr.mxu0 0.0
    %609 = vmatpush1.msra.mxu0 0.0
    %610 = vmatprep.subr.mxu0 0.0
    %611 = vmatpush1.msra.mxu0 0.0
    %612 = vmatprep.subr.mxu0 0.0
    %613 = vmatpush1.msra.mxu0 0.0
    %614 = vmatprep.subr.mxu0 0.0
    %615 = vmatpush1.msra.mxu0 0.0
    %616 = vmatprep.subr.mxu0 0.0
    %617 = vmatpush1.msra.mxu0 0.0
    %618 = vmatprep.subr.mxu0 0.0
    %619 = vmatpush1.msra.mxu0 0.0
    %620 = vmatprep.subr.mxu0 0.0
    %621 = vmatpush1.msra.mxu0 0.0
    %622 = vmatprep.mubr.f32.mxu0 0.0
    %623 = vmatmul.mubr.f32.gmra.mrb[0].mxu0 %v477
    %v624 = vpop.f32.mrb[0].mxu0
    %v625 = vadd.f32 0.0, %v624
    %v626 = vpop.f32.mrb[0].mxu0
    %627 = vdwg.mxu0
    %v629 = vsel %vm248, %v233, 0
    %631 = vmatprep.subr.mxu0 0.0
    %632 = vmatpush1.msra.mxu0 %v240
    %633 = vmatprep.subr.mxu0 0.0
    %634 = vmatpush1.msra.mxu0 %v241
    %635 = vmatprep.subr.mxu0 0.0
    %636 = vmatpush1.msra.mxu0 %v242
    %637 = vmatprep.subr.mxu0 0.0
    %638 = vmatpush1.msra.mxu0 %v243
    %639 = vmatprep.subr.mxu0 0.0
    %640 = vmatpush1.msra.mxu0 0.0
    %641 = vmatprep.subr.mxu0 0.0
    %642 = vmatpush1.msra.mxu0 0.0
    %643 = vmatprep.subr.mxu0 0.0
    %644 = vmatpush1.msra.mxu0 0.0
    %645 = vmatprep.subr.mxu0 0.0
    %646 = vmatpush1.msra.mxu0 0.0
    %647 = vmatprep.subr.mxu0 0.0
    %648 = vmatpush1.msra.mxu0 0.0
    %649 = vmatprep.subr.mxu0 0.0
    %650 = vmatpush1.msra.mxu0 0.0
    %651 = vmatprep.subr.mxu0 0.0
    %652 = vmatpush1.msra.mxu0 0.0
    %653 = vmatprep.subr.mxu0 0.0
    %654 = vmatpush1.msra.mxu0 0.0
    %655 = vmatprep.subr.mxu0 0.0
    %656 = vmatpush1.msra.mxu0 0.0
    %657 = vmatprep.subr.mxu0 0.0
    %658 = vmatpush1.msra.mxu0 0.0
    %659 = vmatprep.subr.mxu0 0.0
    %660 = vmatpush1.msra.mxu0 0.0
    %661 = vmatprep.subr.mxu0 0.0
    %662 = vmatpush1.msra.mxu0 0.0
    %663 = vmatprep.subr.mxu0 0.0
    %664 = vmatpush1.msra.mxu0 0.0
    %665 = vmatprep.subr.mxu0 0.0
    %666 = vmatpush1.msra.mxu0 0.0
    %667 = vmatprep.subr.mxu0 0.0
    %668 = vmatpush1.msra.mxu0 0.0
    %669 = vmatprep.subr.mxu0 0.0
    %670 = vmatpush1.msra.mxu0 0.0
    %671 = vmatprep.subr.mxu0 0.0
    %672 = vmatpush1.msra.mxu0 0.0
    %673 = vmatprep.subr.mxu0 0.0
    %674 = vmatpush1.msra.mxu0 0.0
    %675 = vmatprep.subr.mxu0 0.0
    %676 = vmatpush1.msra.mxu0 0.0
    %677 = vmatprep.subr.mxu0 0.0
    %678 = vmatpush1.msra.mxu0 0.0
    %679 = vmatprep.subr.mxu0 0.0
    %680 = vmatpush1.msra.mxu0 0.0
    %681 = vmatprep.subr.mxu0 0.0
    %682 = vmatpush1.msra.mxu0 0.0
    %683 = vmatprep.subr.mxu0 0.0
    %684 = vmatpush1.msra.mxu0 0.0
    %685 = vmatprep.subr.mxu0 0.0
    %686 = vmatpush1.msra.mxu0 0.0
    %687 = vmatprep.subr.mxu0 0.0
    %688 = vmatpush1.msra.mxu0 0.0
    %689 = vmatprep.subr.mxu0 0.0
    %690 = vmatpush1.msra.mxu0 0.0
    %691 = vmatprep.subr.mxu0 0.0
    %692 = vmatpush1.msra.mxu0 0.0
    %693 = vmatprep.subr.mxu0 0.0
    %694 = vmatpush1.msra.mxu0 0.0
    %695 = vmatprep.mubr.f32.mxu0 0.0
    %696 = vmatmul.mubr.f32.gmra.mrb[0].mxu0 %v629
    %v697 = vpop.f32.mrb[0].mxu0
    %v698 = vadd.f32 %v625, %v697
    %v699 = vpop.f32.mrb[0].mxu0
    %700 = vdwg.mxu0
    %v701 = vmax.f32 %v698, 0.0
    %v703 = vsel %vm248, %v549, 0
    %705 = vmatprep.subr.mxu0 0.0
    %706 = vmatpush1.msra.mxu0 %v402
    %707 = vmatprep.subr.mxu0 0.0
    %708 = vmatpush1.msra.mxu0 %v403
    %709 = vmatprep.subr.mxu0 0.0
    %710 = vmatpush1.msra.mxu0 %v404
    %711 = vmatprep.subr.mxu0 0.0
    %712 = vmatpush1.msra.mxu0 %v405
    %713 = vmatprep.subr.mxu0 0.0
    %714 = vmatpush1.msra.mxu0 0.0
    %715 = vmatprep.subr.mxu0 0.0
    %716 = vmatpush1.msra.mxu0 0.0
    %717 = vmatprep.subr.mxu0 0.0
    %718 = vmatpush1.msra.mxu0 0.0
    %719 = vmatprep.subr.mxu0 0.0
    %720 = vmatpush1.msra.mxu0 0.0
    %721 = vmatprep.subr.mxu0 0.0
    %722 = vmatpush1.msra.mxu0 0.0
    %723 = vmatprep.subr.mxu0 0.0
    %724 = vmatpush1.msra.mxu0 0.0
    %725 = vmatprep.subr.mxu0 0.0
    %726 = vmatpush1.msra.mxu0 0.0
    %727 = vmatprep.subr.mxu0 0.0
    %728 = vmatpush1.msra.mxu0 0.0
    %729 = vmatprep.subr.mxu0 0.0
    %730 = vmatpush1.msra.mxu0 0.0
    %731 = vmatprep.subr.mxu0 0.0
    %732 = vmatpush1.msra.mxu0 0.0
    %733 = vmatprep.subr.mxu0 0.0
    %734 = vmatpush1.msra.mxu0 0.0
    %735 = vmatprep.subr.mxu0 0.0
    %736 = vmatpush1.msra.mxu0 0.0
    %737 = vmatprep.subr.mxu0 0.0
    %738 = vmatpush1.msra.mxu0 0.0
    %739 = vmatprep.subr.mxu0 0.0
    %740 = vmatpush1.msra.mxu0 0.0
    %741 = vmatprep.subr.mxu0 0.0
    %742 = vmatpush1.msra.mxu0 0.0
    %743 = vmatprep.subr.mxu0 0.0
    %744 = vmatpush1.msra.mxu0 0.0
    %745 = vmatprep.subr.mxu0 0.0
    %746 = vmatpush1.msra.mxu0 0.0
    %747 = vmatprep.subr.mxu0 0.0
    %748 = vmatpush1.msra.mxu0 0.0
    %749 = vmatprep.subr.mxu0 0.0
    %750 = vmatpush1.msra.mxu0 0.0
    %751 = vmatprep.subr.mxu0 0.0
    %752 = vmatpush1.msra.mxu0 0.0
    %753 = vmatprep.subr.mxu0 0.0
    %754 = vmatpush1.msra.mxu0 0.0
    %755 = vmatprep.subr.mxu0 0.0
    %756 = vmatpush1.msra.mxu0 0.0
    %757 = vmatprep.subr.mxu0 0.0
    %758 = vmatpush1.msra.mxu0 0.0
    %759 = vmatprep.subr.mxu0 0.0
    %760 = vmatpush1.msra.mxu0 0.0
    %761 = vmatprep.subr.mxu0 0.0
    %762 = vmatpush1.msra.mxu0 0.0
    %763 = vmatprep.subr.mxu0 0.0
    %764 = vmatpush1.msra.mxu0 0.0
    %765 = vmatprep.subr.mxu0 0.0
    %766 = vmatpush1.msra.mxu0 0.0
    %767 = vmatprep.subr.mxu0 0.0
    %768 = vmatpush1.msra.mxu0 0.0
    %769 = vmatprep.mubr.f32.mxu0 0.0
    %770 = vmatmul.mubr.f32.gmra.mrb[0].mxu0 %v703
    %v771 = vpop.f32.mrb[0].mxu0
    %v772 = vadd.f32 0.0, %v771
    %v773 = vpop.f32.mrb[0].mxu0
    %774 = vdwg.mxu0
    %v776 = vsel %vm248, %v701, 0
    %778 = vmatprep.subr.mxu0 0.0
    %779 = vmatpush1.msra.mxu0 %v397
    %780 = vmatprep.subr.mxu0 0.0
    %781 = vmatpush1.msra.mxu0 %v398
    %782 = vmatprep.subr.mxu0 0.0
    %783 = vmatpush1.msra.mxu0 %v399
    %784 = vmatprep.subr.mxu0 0.0
    %785 = vmatpush1.msra.mxu0 %v400
    %786 = vmatprep.subr.mxu0 0.0
    %787 = vmatpush1.msra.mxu0 0.0
    %788 = vmatprep.subr.mxu0 0.0
    %789 = vmatpush1.msra.mxu0 0.0
    %790 = vmatprep.subr.mxu0 0.0
    %791 = vmatpush1.msra.mxu0 0.0
    %792 = vmatprep.subr.mxu0 0.0
    %793 = vmatpush1.msra.mxu0 0.0
    %794 = vmatprep.subr.mxu0 0.0
    %795 = vmatpush1.msra.mxu0 0.0
    %796 = vmatprep.subr.mxu0 0.0
    %797 = vmatpush1.msra.mxu0 0.0
    %798 = vmatprep.subr.mxu0 0.0
    %799 = vmatpush1.msra.mxu0 0.0
    %800 = vmatprep.subr.mxu0 0.0
    %801 = vmatpush1.msra.mxu0 0.0
    %802 = vmatprep.subr.mxu0 0.0
    %803 = vmatpush1.msra.mxu0 0.0
    %804 = vmatprep.subr.mxu0 0.0
    %805 = vmatpush1.msra.mxu0 0.0
    %806 = vmatprep.subr.mxu0 0.0
    %807 = vmatpush1.msra.mxu0 0.0
    %808 = vmatprep.subr.mxu0 0.0
    %809 = vmatpush1.msra.mxu0 0.0
    %810 = vmatprep.subr.mxu0 0.0
    %811 = vmatpush1.msra.mxu0 0.0
    %812 = vmatprep.subr.mxu0 0.0
    %813 = vmatpush1.msra.mxu0 0.0
    %814 = vmatprep.subr.mxu0 0.0
    %815 = vmatpush1.msra.mxu0 0.0
    %816 = vmatprep.subr.mxu0 0.0
    %817 = vmatpush1.msra.mxu0 0.0
    %818 = vmatprep.subr.mxu0 0.0
    %819 = vmatpush1.msra.mxu0 0.0
    %820 = vmatprep.subr.mxu0 0.0
    %821 = vmatpush1.msra.mxu0 0.0
    %822 = vmatprep.subr.mxu0 0.0
    %823 = vmatpush1.msra.mxu0 0.0
    %824 = vmatprep.subr.mxu0 0.0
    %825 = vmatpush1.msra.mxu0 0.0
    %826 = vmatprep.subr.mxu0 0.0
    %827 = vmatpush1.msra.mxu0 0.0
    %828 = vmatprep.subr.mxu0 0.0
    %829 = vmatpush1.msra.mxu0 0.0
    %830 = vmatprep.subr.mxu0 0.0
    %831 = vmatpush1.msra.mxu0 0.0
    %832 = vmatprep.subr.mxu0 0.0
    %833 = vmatpush1.msra.mxu0 0.0
    %834 = vmatprep.subr.mxu0 0.0
    %835 = vmatpush1.msra.mxu0 0.0
    %836 = vmatprep.subr.mxu0 0.0
    %837 = vmatpush1.msra.mxu0 0.0
    %838 = vmatprep.subr.mxu0 0.0
    %839 = vmatpush1.msra.mxu0 0.0
    %840 = vmatprep.subr.mxu0 0.0
    %841 = vmatpush1.msra.mxu0 0.0
    %842 = vmatprep.mubr.f32.mxu0 0.0
    %843 = vmatmul.mubr.f32.gmra.mrb[0].mxu0 %v776
    %v844 = vpop.f32.mrb[0].mxu0
    %v845 = vadd.f32 %v772, %v844
    %v846 = vpop.f32.mrb[0].mxu0
    %847 = vdwg.mxu0
    %v848 = vmax.f32 %v845, 0.0
    %849 = vset.pattern.permute.xlu0 1
    %850 = vperm.xlu0 %849, %v550
    %v851 = vpop.permute.xlu0 %850
    %v853 = vmul.f32 %v851, %v848
    %v854 = vadd.f32 %v557, %v853
    %855 = vmatprep.subr.mxu0 0.0
    %856 = vmatpush1.msra.mxu0 %v244
    %857 = vmatprep.subr.mxu0 0.0
    %858 = vmatpush1.msra.mxu0 %v245
    %859 = vmatprep.subr.mxu0 0.0
    %860 = vmatpush1.msra.mxu0 %v246
    %861 = vmatprep.subr.mxu0 0.0
    %862 = vmatpush1.msra.mxu0 %v247
    %863 = vmatprep.subr.mxu0 0.0
    %864 = vmatpush1.msra.mxu0 0.0
    %865 = vmatprep.subr.mxu0 0.0
    %866 = vmatpush1.msra.mxu0 0.0
    %867 = vmatprep.subr.mxu0 0.0
    %868 = vmatpush1.msra.mxu0 0.0
    %869 = vmatprep.subr.mxu0 0.0
    %870 = vmatpush1.msra.mxu0 0.0
    %871 = vmatprep.subr.mxu0 0.0
    %872 = vmatpush1.msra.mxu0 0.0
    %873 = vmatprep.subr.mxu0 0.0
    %874 = vmatpush1.msra.mxu0 0.0
    %875 = vmatprep.subr.mxu0 0.0
    %876 = vmatpush1.msra.mxu0 0.0
    %877 = vmatprep.subr.mxu0 0.0
    %878 = vmatpush1.msra.mxu0 0.0
    %879 = vmatprep.subr.mxu0 0.0
    %880 = vmatpush1.msra.mxu0 0.0
    %881 = vmatprep.subr.mxu0 0.0
    %882 = vmatpush1.msra.mxu0 0.0
    %883 = vmatprep.subr.mxu0 0.0
    %884 = vmatpush1.msra.mxu0 0.0
    %885 = vmatprep.subr.mxu0 0.0
    %886 = vmatpush1.msra.mxu0 0.0
    %887 = vmatprep.subr.mxu0 0.0
    %888 = vmatpush1.msra.mxu0 0.0
    %889 = vmatprep.subr.mxu0 0.0
    %890 = vmatpush1.msra.mxu0 0.0
    %891 = vmatprep.subr.mxu0 0.0
    %892 = vmatpush1.msra.mxu0 0.0
    %893 = vmatprep.subr.mxu0 0.0
    %894 = vmatpush1.msra.mxu0 0.0
    %895 = vmatprep.subr.mxu0 0.0
    %896 = vmatpush1.msra.mxu0 0.0
    %897 = vmatprep.subr.mxu0 0.0
    %898 = vmatpush1.msra.mxu0 0.0
    %899 = vmatprep.subr.mxu0 0.0
    %900 = vmatpush1.msra.mxu0 0.0
    %901 = vmatprep.subr.mxu0 0.0
    %902 = vmatpush1.msra.mxu0 0.0
    %903 = vmatprep.subr.mxu0 0.0
    %904 = vmatpush1.msra.mxu0 0.0
    %905 = vmatprep.subr.mxu0 0.0
    %906 = vmatpush1.msra.mxu0 0.0
    %907 = vmatprep.subr.mxu0 0.0
    %908 = vmatpush1.msra.mxu0 0.0
    %909 = vmatprep.subr.mxu0 0.0
    %910 = vmatpush1.msra.mxu0 0.0
    %911 = vmatprep.subr.mxu0 0.0
    %912 = vmatpush1.msra.mxu0 0.0
    %913 = vmatprep.subr.mxu0 0.0
    %914 = vmatpush1.msra.mxu0 0.0
    %915 = vmatprep.subr.mxu0 0.0
    %916 = vmatpush1.msra.mxu0 0.0
    %917 = vmatprep.subr.mxu0 0.0
    %918 = vmatpush1.msra.mxu0 0.0
    %919 = vmatprep.mubr.f32.mxu0 0.0
    %920 = vmatmul.mubr.f32.gmra.mrb[0].mxu0 %v776
    %v921 = vpop.f32.mrb[0].mxu0
    %v922 = vadd.f32 0.0, %v921
    %v923 = vpop.f32.mrb[0].mxu0
    %924 = vdwg.mxu0
    %v926 = vsel %vm248, %v234, 0
    %928 = vmatprep.subr.mxu0 0.0
    %929 = vmatpush1.msra.mxu0 %v240
    %930 = vmatprep.subr.mxu0 0.0
    %931 = vmatpush1.msra.mxu0 %v241
    %932 = vmatprep.subr.mxu0 0.0
    %933 = vmatpush1.msra.mxu0 %v242
    %934 = vmatprep.subr.mxu0 0.0
    %935 = vmatpush1.msra.mxu0 %v243
    %936 = vmatprep.subr.mxu0 0.0
    %937 = vmatpush1.msra.mxu0 0.0
    %938 = vmatprep.subr.mxu0 0.0
    %939 = vmatpush1.msra.mxu0 0.0
    %940 = vmatprep.subr.mxu0 0.0
    %941 = vmatpush1.msra.mxu0 0.0
    %942 = vmatprep.subr.mxu0 0.0
    %943 = vmatpush1.msra.mxu0 0.0
    %944 = vmatprep.subr.mxu0 0.0
    %945 = vmatpush1.msra.mxu0 0.0
    %946 = vmatprep.subr.mxu0 0.0
    %947 = vmatpush1.msra.mxu0 0.0
    %948 = vmatprep.subr.mxu0 0.0
    %949 = vmatpush1.msra.mxu0 0.0
    %950 = vmatprep.subr.mxu0 0.0
    %951 = vmatpush1.msra.mxu0 0.0
    %952 = vmatprep.subr.mxu0 0.0
    %953 = vmatpush1.msra.mxu0 0.0
    %954 = vmatprep.subr.mxu0 0.0
    %955 = vmatpush1.msra.mxu0 0.0
    %956 = vmatprep.subr.mxu0 0.0
    %957 = vmatpush1.msra.mxu0 0.0
    %958 = vmatprep.subr.mxu0 0.0
    %959 = vmatpush1.msra.mxu0 0.0
    %960 = vmatprep.subr.mxu0 0.0
    %961 = vmatpush1.msra.mxu0 0.0
    %962 = vmatprep.subr.mxu0 0.0
    %963 = vmatpush1.msra.mxu0 0.0
    %964 = vmatprep.subr.mxu0 0.0
    %965 = vmatpush1.msra.mxu0 0.0
    %966 = vmatprep.subr.mxu0 0.0
    %967 = vmatpush1.msra.mxu0 0.0
    %968 = vmatprep.subr.mxu0 0.0
    %969 = vmatpush1.msra.mxu0 0.0
    %970 = vmatprep.subr.mxu0 0.0
    %971 = vmatpush1.msra.mxu0 0.0
    %972 = vmatprep.subr.mxu0 0.0
    %973 = vmatpush1.msra.mxu0 0.0
    %974 = vmatprep.subr.mxu0 0.0
    %975 = vmatpush1.msra.mxu0 0.0
    %976 = vmatprep.subr.mxu0 0.0
    %977 = vmatpush1.msra.mxu0 0.0
    %978 = vmatprep.subr.mxu0 0.0
    %979 = vmatpush1.msra.mxu0 0.0
    %980 = vmatprep.subr.mxu0 0.0
    %981 = vmatpush1.msra.mxu0 0.0
    %982 = vmatprep.subr.mxu0 0.0
    %983 = vmatpush1.msra.mxu0 0.0
    %984 = vmatprep.subr.mxu0 0.0
    %985 = vmatpush1.msra.mxu0 0.0
    %986 = vmatprep.subr.mxu0 0.0
    %987 = vmatpush1.msra.mxu0 0.0
    %988 = vmatprep.subr.mxu0 0.0
    %989 = vmatpush1.msra.mxu0 0.0
    %990 = vmatprep.subr.mxu0 0.0
    %991 = vmatpush1.msra.mxu0 0.0
    %992 = vmatprep.mubr.f32.mxu0 0.0
    %993 = vmatmul.mubr.f32.gmra.mrb[0].mxu0 %v926
    %v994 = vpop.f32.mrb[0].mxu0
    %v995 = vadd.f32 %v922, %v994
    %v996 = vpop.f32.mrb[0].mxu0
    %997 = vdwg.mxu0
    %v998 = vmax.f32 %v995, 0.0
    %v1000 = vsel %vm248, %v848, 0
    %1002 = vmatprep.subr.mxu0 0.0
    %1003 = vmatpush1.msra.mxu0 %v402
    %1004 = vmatprep.subr.mxu0 0.0
    %1005 = vmatpush1.msra.mxu0 %v403
    %1006 = vmatprep.subr.mxu0 0.0
    %1007 = vmatpush1.msra.mxu0 %v404
    %1008 = vmatprep.subr.mxu0 0.0
    %1009 = vmatpush1.msra.mxu0 %v405
    %1010 = vmatprep.subr.mxu0 0.0
    %1011 = vmatpush1.msra.mxu0 0.0
    %1012 = vmatprep.subr.mxu0 0.0
    %1013 = vmatpush1.msra.mxu0 0.0
    %1014 = vmatprep.subr.mxu0 0.0
    %1015 = vmatpush1.msra.mxu0 0.0
    %1016 = vmatprep.subr.mxu0 0.0
    %1017 = vmatpush1.msra.mxu0 0.0
    %1018 = vmatprep.subr.mxu0 0.0
    %1019 = vmatpush1.msra.mxu0 0.0
    %1020 = vmatprep.subr.mxu0 0.0
    %1021 = vmatpush1.msra.mxu0 0.0
    %1022 = vmatprep.subr.mxu0 0.0
    %1023 = vmatpush1.msra.mxu0 0.0
    %1024 = vmatprep.subr.mxu0 0.0
    %1025 = vmatpush1.msra.mxu0 0.0
    %1026 = vmatprep.subr.mxu0 0.0
    %1027 = vmatpush1.msra.mxu0 0.0
    %1028 = vmatprep.subr.mxu0 0.0
    %1029 = vmatpush1.msra.mxu0 0.0
    %1030 = vmatprep.subr.mxu0 0.0
    %1031 = vmatpush1.msra.mxu0 0.0
    %1032 = vmatprep.subr.mxu0 0.0
    %1033 = vmatpush1.msra.mxu0 0.0
    %1034 = vmatprep.subr.mxu0 0.0
    %1035 = vmatpush1.msra.mxu0 0.0
    %1036 = vmatprep.subr.mxu0 0.0
    %1037 = vmatpush1.msra.mxu0 0.0
    %1038 = vmatprep.subr.mxu0 0.0
    %1039 = vmatpush1.msra.mxu0 0.0
    %1040 = vmatprep.subr.mxu0 0.0
    %1041 = vmatpush1.msra.mxu0 0.0
    %1042 = vmatprep.subr.mxu0 0.0
    %1043 = vmatpush1.msra.mxu0 0.0
    %1044 = vmatprep.subr.mxu0 0.0
    %1045 = vmatpush1.msra.mxu0 0.0
    %1046 = vmatprep.subr.mxu0 0.0
    %1047 = vmatpush1.msra.mxu0 0.0
    %1048 = vmatprep.subr.mxu0 0.0
    %1049 = vmatpush1.msra.mxu0 0.0
    %1050 = vmatprep.subr.mxu0 0.0
    %1051 = vmatpush1.msra.mxu0 0.0
    %1052 = vmatprep.subr.mxu0 0.0
    %1053 = vmatpush1.msra.mxu0 0.0
    %1054 = vmatprep.subr.mxu0 0.0
    %1055 = vmatpush1.msra.mxu0 0.0
    %1056 = vmatprep.subr.mxu0 0.0
    %1057 = vmatpush1.msra.mxu0 0.0
    %1058 = vmatprep.subr.mxu0 0.0
    %1059 = vmatpush1.msra.mxu0 0.0
    %1060 = vmatprep.subr.mxu0 0.0
    %1061 = vmatpush1.msra.mxu0 0.0
    %1062 = vmatprep.subr.mxu0 0.0
    %1063 = vmatpush1.msra.mxu0 0.0
    %1064 = vmatprep.subr.mxu0 0.0
    %1065 = vmatpush1.msra.mxu0 0.0
    %1066 = vmatprep.mubr.f32.mxu0 0.0
    %1067 = vmatmul.mubr.f32.gmra.mrb[0].mxu0 %v1000
    %v1068 = vpop.f32.mrb[0].mxu0
    %v1069 = vadd.f32 0.0, %v1068
    %v1070 = vpop.f32.mrb[0].mxu0
    %1071 = vdwg.mxu0
    %v1073 = vsel %vm248, %v998, 0
    %1075 = vmatprep.subr.mxu0 0.0
    %1076 = vmatpush1.msra.mxu0 %v397
    %1077 = vmatprep.subr.mxu0 0.0
    %1078 = vmatpush1.msra.mxu0 %v398
    %1079 = vmatprep.subr.mxu0 0.0
    %1080 = vmatpush1.msra.mxu0 %v399
    %1081 = vmatprep.subr.mxu0 0.0
    %1082 = vmatpush1.msra.mxu0 %v400
    %1083 = vmatprep.subr.mxu0 0.0
    %1084 = vmatpush1.msra.mxu0 0.0
    %1085 = vmatprep.subr.mxu0 0.0
    %1086 = vmatpush1.msra.mxu0 0.0
    %1087 = vmatprep.subr.mxu0 0.0
    %1088 = vmatpush1.msra.mxu0 0.0
    %1089 = vmatprep.subr.mxu0 0.0
    %1090 = vmatpush1.msra.mxu0 0.0
    %1091 = vmatprep.subr.mxu0 0.0
    %1092 = vmatpush1.msra.mxu0 0.0
    %1093 = vmatprep.subr.mxu0 0.0
    %1094 = vmatpush1.msra.mxu0 0.0
    %1095 = vmatprep.subr.mxu0 0.0
    %1096 = vmatpush1.msra.mxu0 0.0
    %1097 = vmatprep.subr.mxu0 0.0
    %1098 = vmatpush1.msra.mxu0 0.0
    %1099 = vmatprep.subr.mxu0 0.0
    %1100 = vmatpush1.msra.mxu0 0.0
    %1101 = vmatprep.subr.mxu0 0.0
    %1102 = vmatpush1.msra.mxu0 0.0
    %1103 = vmatprep.subr.mxu0 0.0
    %1104 = vmatpush1.msra.mxu0 0.0
    %1105 = vmatprep.subr.mxu0 0.0
    %1106 = vmatpush1.msra.mxu0 0.0
    %1107 = vmatprep.subr.mxu0 0.0
    %1108 = vmatpush1.msra.mxu0 0.0
    %1109 = vmatprep.subr.mxu0 0.0
    %1110 = vmatpush1.msra.mxu0 0.0
    %1111 = vmatprep.subr.mxu0 0.0
    %1112 = vmatpush1.msra.mxu0 0.0
    %1113 = vmatprep.subr.mxu0 0.0
    %1114 = vmatpush1.msra.mxu0 0.0
    %1115 = vmatprep.subr.mxu0 0.0
    %1116 = vmatpush1.msra.mxu0 0.0
    %1117 = vmatprep.subr.mxu0 0.0
    %1118 = vmatpush1.msra.mxu0 0.0
    %1119 = vmatprep.subr.mxu0 0.0
    %1120 = vmatpush1.msra.mxu0 0.0
    %1121 = vmatprep.subr.mxu0 0.0
    %1122 = vmatpush1.msra.mxu0 0.0
    %1123 = vmatprep.subr.mxu0 0.0
    %1124 = vmatpush1.msra.mxu0 0.0
    %1125 = vmatprep.subr.mxu0 0.0
    %1126 = vmatpush1.msra.mxu0 0.0
    %1127 = vmatprep.subr.mxu0 0.0
    %1128 = vmatpush1.msra.mxu0 0.0
    %1129 = vmatprep.subr.mxu0 0.0
    %1130 = vmatpush1.msra.mxu0 0.0
    %1131 = vmatprep.subr.mxu0 0.0
    %1132 = vmatpush1.msra.mxu0 0.0
    %1133 = vmatprep.subr.mxu0 0.0
    %1134 = vmatpush1.msra.mxu0 0.0
    %1135 = vmatprep.subr.mxu0 0.0
    %1136 = vmatpush1.msra.mxu0 0.0
    %1137 = vmatprep.subr.mxu0 0.0
    %1138 = vmatpush1.msra.mxu0 0.0
    %1139 = vmatprep.mubr.f32.mxu0 0.0
    %1140 = vmatmul.mubr.f32.gmra.mrb[0].mxu0 %v1073
    %v1141 = vpop.f32.mrb[0].mxu0
    %v1142 = vadd.f32 %v1069, %v1141
    %v1143 = vpop.f32.mrb[0].mxu0
    %1144 = vdwg.mxu0
    %v1145 = vmax.f32 %v1142, 0.0
    %1146 = vset.pattern.permute.xlu0 2
    %1147 = vperm.xlu0 %1146, %v550
    %v1148 = vpop.permute.xlu0 %1147
    %v1150 = vmul.f32 %v1148, %v1145
    %v1151 = vadd.f32 %v854, %v1150
    %1152 = vmatprep.subr.mxu0 0.0
    %1153 = vmatpush1.msra.mxu0 %v244
    %1154 = vmatprep.subr.mxu0 0.0
    %1155 = vmatpush1.msra.mxu0 %v245
    %1156 = vmatprep.subr.mxu0 0.0
    %1157 = vmatpush1.msra.mxu0 %v246
    %1158 = vmatprep.subr.mxu0 0.0
    %1159 = vmatpush1.msra.mxu0 %v247
    %1160 = vmatprep.subr.mxu0 0.0
    %1161 = vmatpush1.msra.mxu0 0.0
    %1162 = vmatprep.subr.mxu0 0.0
    %1163 = vmatpush1.msra.mxu0 0.0
    %1164 = vmatprep.subr.mxu0 0.0
    %1165 = vmatpush1.msra.mxu0 0.0
    %1166 = vmatprep.subr.mxu0 0.0
    %1167 = vmatpush1.msra.mxu0 0.0
    %1168 = vmatprep.subr.mxu0 0.0
    %1169 = vmatpush1.msra.mxu0 0.0
    %1170 = vmatprep.subr.mxu0 0.0
    %1171 = vmatpush1.msra.mxu0 0.0
    %1172 = vmatprep.subr.mxu0 0.0
    %1173 = vmatpush1.msra.mxu0 0.0
    %1174 = vmatprep.subr.mxu0 0.0
    %1175 = vmatpush1.msra.mxu0 0.0
    %1176 = vmatprep.subr.mxu0 0.0
    %1177 = vmatpush1.msra.mxu0 0.0
    %1178 = vmatprep.subr.mxu0 0.0
    %1179 = vmatpush1.msra.mxu0 0.0
    %1180 = vmatprep.subr.mxu0 0.0
    %1181 = vmatpush1.msra.mxu0 0.0
    %1182 = vmatprep.subr.mxu0 0.0
    %1183 = vmatpush1.msra.mxu0 0.0
    %1184 = vmatprep.subr.mxu0 0.0
    %1185 = vmatpush1.msra.mxu0 0.0
    %1186 = vmatprep.subr.mxu0 0.0
    %1187 = vmatpush1.msra.mxu0 0.0
    %1188 = vmatprep.subr.mxu0 0.0
    %1189 = vmatpush1.msra.mxu0 0.0
    %1190 = vmatprep.subr.mxu0 0.0
    %1191 = vmatpush1.msra.mxu0 0.0
    %1192 = vmatprep.subr.mxu0 0.0
    %1193 = vmatpush1.msra.mxu0 0.0
    %1194 = vmatprep.subr.mxu0 0.0
    %1195 = vmatpush1.msra.mxu0 0.0
    %1196 = vmatprep.subr.mxu0 0.0
    %1197 = vmatpush1.msra.mxu0 0.0
    %1198 = vmatprep.subr.mxu0 0.0
    %1199 = vmatpush1.msra.mxu0 0.0
    %1200 = vmatprep.subr.mxu0 0.0
    %1201 = vmatpush1.msra.mxu0 0.0
    %1202 = vmatprep.subr.mxu0 0.0
    %1203 = vmatpush1.msra.mxu0 0.0
    %1204 = vmatprep.subr.mxu0 0.0
    %1205 = vmatpush1.msra.mxu0 0.0
    %1206 = vmatprep.subr.mxu0 0.0
    %1207 = vmatpush1.msra.mxu0 0.0
    %1208 = vmatprep.subr.mxu0 0.0
    %1209 = vmatpush1.msra.mxu0 0.0
    %1210 = vmatprep.subr.mxu0 0.0
    %1211 = vmatpush1.msra.mxu0 0.0
    %1212 = vmatprep.subr.mxu0 0.0
    %1213 = vmatpush1.msra.mxu0 0.0
    %1214 = vmatprep.subr.mxu0 0.0
    %1215 = vmatpush1.msra.mxu0 0.0
    %1216 = vmatprep.mubr.f32.mxu0 0.0
    %1217 = vmatmul.mubr.f32.gmra.mrb[0].mxu0 %v1073
    %v1218 = vpop.f32.mrb[0].mxu0
    %v1219 = vadd.f32 0.0, %v1218
    %v1220 = vpop.f32.mrb[0].mxu0
    %1221 = vdwg.mxu0
    %v1223 = vsel %vm248, %v235, 0
    %1225 = vmatprep.subr.mxu0 0.0
    %1226 = vmatpush1.msra.mxu0 %v240
    %1227 = vmatprep.subr.mxu0 0.0
    %1228 = vmatpush1.msra.mxu0 %v241
    %1229 = vmatprep.subr.mxu0 0.0
    %1230 = vmatpush1.msra.mxu0 %v242
    %1231 = vmatprep.subr.mxu0 0.0
    %1232 = vmatpush1.msra.mxu0 %v243
    %1233 = vmatprep.subr.mxu0 0.0
    %1234 = vmatpush1.msra.mxu0 0.0
    %1235 = vmatprep.subr.mxu0 0.0
    %1236 = vmatpush1.msra.mxu0 0.0
    %1237 = vmatprep.subr.mxu0 0.0
    %1238 = vmatpush1.msra.mxu0 0.0
    %1239 = vmatprep.subr.mxu0 0.0
    %1240 = vmatpush1.msra.mxu0 0.0
    %1241 = vmatprep.subr.mxu0 0.0
    %1242 = vmatpush1.msra.mxu0 0.0
    %1243 = vmatprep.subr.mxu0 0.0
    %1244 = vmatpush1.msra.mxu0 0.0
    %1245 = vmatprep.subr.mxu0 0.0
    %1246 = vmatpush1.msra.mxu0 0.0
    %1247 = vmatprep.subr.mxu0 0.0
    %1248 = vmatpush1.msra.mxu0 0.0
    %1249 = vmatprep.subr.mxu0 0.0
    %1250 = vmatpush1.msra.mxu0 0.0
    %1251 = vmatprep.subr.mxu0 0.0
    %1252 = vmatpush1.msra.mxu0 0.0
    %1253 = vmatprep.subr.mxu0 0.0
    %1254 = vmatpush1.msra.mxu0 0.0
    %1255 = vmatprep.subr.mxu0 0.0
    %1256 = vmatpush1.msra.mxu0 0.0
    %1257 = vmatprep.subr.mxu0 0.0
    %1258 = vmatpush1.msra.mxu0 0.0
    %1259 = vmatprep.subr.mxu0 0.0
    %1260 = vmatpush1.msra.mxu0 0.0
    %1261 = vmatprep.subr.mxu0 0.0
    %1262 = vmatpush1.msra.mxu0 0.0
    %1263 = vmatprep.subr.mxu0 0.0
    %1264 = vmatpush1.msra.mxu0 0.0
    %1265 = vmatprep.subr.mxu0 0.0
    %1266 = vmatpush1.msra.mxu0 0.0
    %1267 = vmatprep.subr.mxu0 0.0
    %1268 = vmatpush1.msra.mxu0 0.0
    %1269 = vmatprep.subr.mxu0 0.0
    %1270 = vmatpush1.msra.mxu0 0.0
    %1271 = vmatprep.subr.mxu0 0.0
    %1272 = vmatpush1.msra.mxu0 0.0
    %1273 = vmatprep.subr.mxu0 0.0
    %1274 = vmatpush1.msra.mxu0 0.0
    %1275 = vmatprep.subr.mxu0 0.0
    %1276 = vmatpush1.msra.mxu0 0.0
    %1277 = vmatprep.subr.mxu0 0.0
    %1278 = vmatpush1.msra.mxu0 0.0
    %1279 = vmatprep.subr.mxu0 0.0
    %1280 = vmatpush1.msra.mxu0 0.0
    %1281 = vmatprep.subr.mxu0 0.0
    %1282 = vmatpush1.msra.mxu0 0.0
    %1283 = vmatprep.subr.mxu0 0.0
    %1284 = vmatpush1.msra.mxu0 0.0
    %1285 = vmatprep.subr.mxu0 0.0
    %1286 = vmatpush1.msra.mxu0 0.0
    %1287 = vmatprep.subr.mxu0 0.0
    %1288 = vmatpush1.msra.mxu0 0.0
    %1289 = vmatprep.mubr.f32.mxu0 0.0
    %1290 = vmatmul.mubr.f32.gmra.mrb[0].mxu0 %v1223
    %v1291 = vpop.f32.mrb[0].mxu0
    %v1292 = vadd.f32 %v1219, %v1291
    %v1293 = vpop.f32.mrb[0].mxu0
    %1294 = vdwg.mxu0
    %v1295 = vmax.f32 %v1292, 0.0
    %v1297 = vsel %vm248, %v1145, 0
    %1299 = vmatprep.subr.mxu0 0.0
    %1300 = vmatpush1.msra.mxu0 %v402
    %1301 = vmatprep.subr.mxu0 0.0
    %1302 = vmatpush1.msra.mxu0 %v403
    %1303 = vmatprep.subr.mxu0 0.0
    %1304 = vmatpush1.msra.mxu0 %v404
    %1305 = vmatprep.subr.mxu0 0.0
    %1306 = vmatpush1.msra.mxu0 %v405
    %1307 = vmatprep.subr.mxu0 0.0
    %1308 = vmatpush1.msra.mxu0 0.0
    %1309 = vmatprep.subr.mxu0 0.0
    %1310 = vmatpush1.msra.mxu0 0.0
    %1311 = vmatprep.subr.mxu0 0.0
    %1312 = vmatpush1.msra.mxu0 0.0
    %1313 = vmatprep.subr.mxu0 0.0
    %1314 = vmatpush1.msra.mxu0 0.0
    %1315 = vmatprep.subr.mxu0 0.0
    %1316 = vmatpush1.msra.mxu0 0.0
    %1317 = vmatprep.subr.mxu0 0.0
    %1318 = vmatpush1.msra.mxu0 0.0
    %1319 = vmatprep.subr.mxu0 0.0
    %1320 = vmatpush1.msra.mxu0 0.0
    %1321 = vmatprep.subr.mxu0 0.0
    %1322 = vmatpush1.msra.mxu0 0.0
    %1323 = vmatprep.subr.mxu0 0.0
    %1324 = vmatpush1.msra.mxu0 0.0
    %1325 = vmatprep.subr.mxu0 0.0
    %1326 = vmatpush1.msra.mxu0 0.0
    %1327 = vmatprep.subr.mxu0 0.0
    %1328 = vmatpush1.msra.mxu0 0.0
    %1329 = vmatprep.subr.mxu0 0.0
    %1330 = vmatpush1.msra.mxu0 0.0
    %1331 = vmatprep.subr.mxu0 0.0
    %1332 = vmatpush1.msra.mxu0 0.0
    %1333 = vmatprep.subr.mxu0 0.0
    %1334 = vmatpush1.msra.mxu0 0.0
    %1335 = vmatprep.subr.mxu0 0.0
    %1336 = vmatpush1.msra.mxu0 0.0
    %1337 = vmatprep.subr.mxu0 0.0
    %1338 = vmatpush1.msra.mxu0 0.0
    %1339 = vmatprep.subr.mxu0 0.0
    %1340 = vmatpush1.msra.mxu0 0.0
    %1341 = vmatprep.subr.mxu0 0.0
    %1342 = vmatpush1.msra.mxu0 0.0
    %1343 = vmatprep.subr.mxu0 0.0
    %1344 = vmatpush1.msra.mxu0 0.0
    %1345 = vmatprep.subr.mxu0 0.0
    %1346 = vmatpush1.msra.mxu0 0.0
    %1347 = vmatprep.subr.mxu0 0.0
    %1348 = vmatpush1.msra.mxu0 0.0
    %1349 = vmatprep.subr.mxu0 0.0
    %1350 = vmatpush1.msra.mxu0 0.0
    %1351 = vmatprep.subr.mxu0 0.0
    %1352 = vmatpush1.msra.mxu0 0.0
    %1353 = vmatprep.subr.mxu0 0.0
    %1354 = vmatpush1.msra.mxu0 0.0
    %1355 = vmatprep.subr.mxu0 0.0
    %1356 = vmatpush1.msra.mxu0 0.0
    %1357 = vmatprep.subr.mxu0 0.0
    %1358 = vmatpush1.msra.mxu0 0.0
    %1359 = vmatprep.subr.mxu0 0.0
    %1360 = vmatpush1.msra.mxu0 0.0
    %1361 = vmatprep.subr.mxu0 0.0
    %1362 = vmatpush1.msra.mxu0 0.0
    %1363 = vmatprep.mubr.f32.mxu0 0.0
    %1364 = vmatmul.mubr.f32.gmra.mrb[0].mxu0 %v1297
    %v1365 = vpop.f32.mrb[0].mxu0
    %v1366 = vadd.f32 0.0, %v1365
    %v1367 = vpop.f32.mrb[0].mxu0
    %1368 = vdwg.mxu0
    %v1370 = vsel %vm248, %v1295, 0
    %1372 = vmatprep.subr.mxu0 0.0
    %1373 = vmatpush1.msra.mxu0 %v397
    %1374 = vmatprep.subr.mxu0 0.0
    %1375 = vmatpush1.msra.mxu0 %v398
    %1376 = vmatprep.subr.mxu0 0.0
    %1377 = vmatpush1.msra.mxu0 %v399
    %1378 = vmatprep.subr.mxu0 0.0
    %1379 = vmatpush1.msra.mxu0 %v400
    %1380 = vmatprep.subr.mxu0 0.0
    %1381 = vmatpush1.msra.mxu0 0.0
    %1382 = vmatprep.subr.mxu0 0.0
    %1383 = vmatpush1.msra.mxu0 0.0
    %1384 = vmatprep.subr.mxu0 0.0
    %1385 = vmatpush1.msra.mxu0 0.0
    %1386 = vmatprep.subr.mxu0 0.0
    %1387 = vmatpush1.msra.mxu0 0.0
    %1388 = vmatprep.subr.mxu0 0.0
    %1389 = vmatpush1.msra.mxu0 0.0
    %1390 = vmatprep.subr.mxu0 0.0
    %1391 = vmatpush1.msra.mxu0 0.0
    %1392 = vmatprep.subr.mxu0 0.0
    %1393 = vmatpush1.msra.mxu0 0.0
    %1394 = vmatprep.subr.mxu0 0.0
    %1395 = vmatpush1.msra.mxu0 0.0
    %1396 = vmatprep.subr.mxu0 0.0
    %1397 = vmatpush1.msra.mxu0 0.0
    %1398 = vmatprep.subr.mxu0 0.0
    %1399 = vmatpush1.msra.mxu0 0.0
    %1400 = vmatprep.subr.mxu0 0.0
    %1401 = vmatpush1.msra.mxu0 0.0
    %1402 = vmatprep.subr.mxu0 0.0
    %1403 = vmatpush1.msra.mxu0 0.0
    %1404 = vmatprep.subr.mxu0 0.0
    %1405 = vmatpush1.msra.mxu0 0.0
    %1406 = vmatprep.subr.mxu0 0.0
    %1407 = vmatpush1.msra.mxu0 0.0
    %1408 = vmatprep.subr.mxu0 0.0
    %1409 = vmatpush1.msra.mxu0 0.0
    %1410 = vmatprep.subr.mxu0 0.0
    %1411 = vmatpush1.msra.mxu0 0.0
    %1412 = vmatprep.subr.mxu0 0.0
    %1413 = vmatpush1.msra.mxu0 0.0
    %1414 = vmatprep.subr.mxu0 0.0
    %1415 = vmatpush1.msra.mxu0 0.0
    %1416 = vmatprep.subr.mxu0 0.0
    %1417 = vmatpush1.msra.mxu0 0.0
    %1418 = vmatprep.subr.mxu0 0.0
    %1419 = vmatpush1.msra.mxu0 0.0
    %1420 = vmatprep.subr.mxu0 0.0
    %1421 = vmatpush1.msra.mxu0 0.0
    %1422 = vmatprep.subr.mxu0 0.0
    %1423 = vmatpush1.msra.mxu0 0.0
    %1424 = vmatprep.subr.mxu0 0.0
    %1425 = vmatpush1.msra.mxu0 0.0
    %1426 = vmatprep.subr.mxu0 0.0
    %1427 = vmatpush1.msra.mxu0 0.0
    %1428 = vmatprep.subr.mxu0 0.0
    %1429 = vmatpush1.msra.mxu0 0.0
    %1430 = vmatprep.subr.mxu0 0.0
    %1431 = vmatpush1.msra.mxu0 0.0
    %1432 = vmatprep.subr.mxu0 0.0
    %1433 = vmatpush1.msra.mxu0 0.0
    %1434 = vmatprep.subr.mxu0 0.0
    %1435 = vmatpush1.msra.mxu0 0.0
    %1436 = vmatprep.mubr.f32.mxu0 0.0
    %1437 = vmatmul.mubr.f32.gmra.mrb[0].mxu0 %v1370
    %v1438 = vpop.f32.mrb[0].mxu0
    %v1439 = vadd.f32 %v1366, %v1438
    %v1440 = vpop.f32.mrb[0].mxu0
    %1441 = vdwg.mxu0
    %v1442 = vmax.f32 %v1439, 0.0
    %1443 = vset.pattern.permute.xlu0 3
    %1444 = vperm.xlu0 %1443, %v550
    %v1445 = vpop.permute.xlu0 %1444
    %v1447 = vmul.f32 %v1445, %v1442
    %v1448 = vadd.f32 %v1151, %v1447
    %1449 = vmatprep.subr.mxu0 0.0
    %1450 = vmatpush1.msra.mxu0 %v244
    %1451 = vmatprep.subr.mxu0 0.0
    %1452 = vmatpush1.msra.mxu0 %v245
    %1453 = vmatprep.subr.mxu0 0.0
    %1454 = vmatpush1.msra.mxu0 %v246
    %1455 = vmatprep.subr.mxu0 0.0
    %1456 = vmatpush1.msra.mxu0 %v247
    %1457 = vmatprep.subr.mxu0 0.0
    %1458 = vmatpush1.msra.mxu0 0.0
    %1459 = vmatprep.subr.mxu0 0.0
    %1460 = vmatpush1.msra.mxu0 0.0
    %1461 = vmatprep.subr.mxu0 0.0
    %1462 = vmatpush1.msra.mxu0 0.0
    %1463 = vmatprep.subr.mxu0 0.0
    %1464 = vmatpush1.msra.mxu0 0.0
    %1465 = vmatprep.subr.mxu0 0.0
    %1466 = vmatpush1.msra.mxu0 0.0
    %1467 = vmatprep.subr.mxu0 0.0
    %1468 = vmatpush1.msra.mxu0 0.0
    %1469 = vmatprep.subr.mxu0 0.0
    %1470 = vmatpush1.msra.mxu0 0.0
    %1471 = vmatprep.subr.mxu0 0.0
    %1472 = vmatpush1.msra.mxu0 0.0
    %1473 = vmatprep.subr.mxu0 0.0
    %1474 = vmatpush1.msra.mxu0 0.0
    %1475 = vmatprep.subr.mxu0 0.0
    %1476 = vmatpush1.msra.mxu0 0.0
    %1477 = vmatprep.subr.mxu0 0.0
    %1478 = vmatpush1.msra.mxu0 0.0
    %1479 = vmatprep.subr.mxu0 0.0
    %1480 = vmatpush1.msra.mxu0 0.0
    %1481 = vmatprep.subr.mxu0 0.0
    %1482 = vmatpush1.msra.mxu0 0.0
    %1483 = vmatprep.subr.mxu0 0.0
    %1484 = vmatpush1.msra.mxu0 0.0
    %1485 = vmatprep.subr.mxu0 0.0
    %1486 = vmatpush1.msra.mxu0 0.0
    %1487 = vmatprep.subr.mxu0 0.0
    %1488 = vmatpush1.msra.mxu0 0.0
    %1489 = vmatprep.subr.mxu0 0.0
    %1490 = vmatpush1.msra.mxu0 0.0
    %1491 = vmatprep.subr.mxu0 0.0
    %1492 = vmatpush1.msra.mxu0 0.0
    %1493 = vmatprep.subr.mxu0 0.0
    %1494 = vmatpush1.msra.mxu0 0.0
    %1495 = vmatprep.subr.mxu0 0.0
    %1496 = vmatpush1.msra.mxu0 0.0
    %1497 = vmatprep.subr.mxu0 0.0
    %1498 = vmatpush1.msra.mxu0 0.0
    %1499 = vmatprep.subr.mxu0 0.0
    %1500 = vmatpush1.msra.mxu0 0.0
    %1501 = vmatprep.subr.mxu0 0.0
    %1502 = vmatpush1.msra.mxu0 0.0
    %1503 = vmatprep.subr.mxu0 0.0
    %1504 = vmatpush1.msra.mxu0 0.0
    %1505 = vmatprep.subr.mxu0 0.0
    %1506 = vmatpush1.msra.mxu0 0.0
    %1507 = vmatprep.subr.mxu0 0.0
    %1508 = vmatpush1.msra.mxu0 0.0
    %1509 = vmatprep.subr.mxu0 0.0
    %1510 = vmatpush1.msra.mxu0 0.0
    %1511 = vmatprep.subr.mxu0 0.0
    %1512 = vmatpush1.msra.mxu0 0.0
    %1513 = vmatprep.mubr.f32.mxu0 0.0
    %1514 = vmatmul.mubr.f32.gmra.mrb[0].mxu0 %v1370
    %v1515 = vpop.f32.mrb[0].mxu0
    %v1516 = vadd.f32 0.0, %v1515
    %v1517 = vpop.f32.mrb[0].mxu0
    %1518 = vdwg.mxu0
    %v1520 = vsel %vm248, %v236, 0
    %1522 = vmatprep.subr.mxu0 0.0
    %1523 = vmatpush1.msra.mxu0 %v240
    %1524 = vmatprep.subr.mxu0 0.0
    %1525 = vmatpush1.msra.mxu0 %v241
    %1526 = vmatprep.subr.mxu0 0.0
    %1527 = vmatpush1.msra.mxu0 %v242
    %1528 = vmatprep.subr.mxu0 0.0
    %1529 = vmatpush1.msra.mxu0 %v243
    %1530 = vmatprep.subr.mxu0 0.0
    %1531 = vmatpush1.msra.mxu0 0.0
    %1532 = vmatprep.subr.mxu0 0.0
    %1533 = vmatpush1.msra.mxu0 0.0
    %1534 = vmatprep.subr.mxu0 0.0
    %1535 = vmatpush1.msra.mxu0 0.0
    %1536 = vmatprep.subr.mxu0 0.0
    %1537 = vmatpush1.msra.mxu0 0.0
    %1538 = vmatprep.subr.mxu0 0.0
    %1539 = vmatpush1.msra.mxu0 0.0
    %1540 = vmatprep.subr.mxu0 0.0
    %1541 = vmatpush1.msra.mxu0 0.0
    %1542 = vmatprep.subr.mxu0 0.0
    %1543 = vmatpush1.msra.mxu0 0.0
    %1544 = vmatprep.subr.mxu0 0.0
    %1545 = vmatpush1.msra.mxu0 0.0
    %1546 = vmatprep.subr.mxu0 0.0
    %1547 = vmatpush1.msra.mxu0 0.0
    %1548 = vmatprep.subr.mxu0 0.0
    %1549 = vmatpush1.msra.mxu0 0.0
    %1550 = vmatprep.subr.mxu0 0.0
    %1551 = vmatpush1.msra.mxu0 0.0
    %1552 = vmatprep.subr.mxu0 0.0
    %1553 = vmatpush1.msra.mxu0 0.0
    %1554 = vmatprep.subr.mxu0 0.0
    %1555 = vmatpush1.msra.mxu0 0.0
    %1556 = vmatprep.subr.mxu0 0.0
    %1557 = vmatpush1.msra.mxu0 0.0
    %1558 = vmatprep.subr.mxu0 0.0
    %1559 = vmatpush1.msra.mxu0 0.0
    %1560 = vmatprep.subr.mxu0 0.0
    %1561 = vmatpush1.msra.mxu0 0.0
    %1562 = vmatprep.subr.mxu0 0.0
    %1563 = vmatpush1.msra.mxu0 0.0
    %1564 = vmatprep.subr.mxu0 0.0
    %1565 = vmatpush1.msra.mxu0 0.0
    %1566 = vmatprep.subr.mxu0 0.0
    %1567 = vmatpush1.msra.mxu0 0.0
    %1568 = vmatprep.subr.mxu0 0.0
    %1569 = vmatpush1.msra.mxu0 0.0
    %1570 = vmatprep.subr.mxu0 0.0
    %1571 = vmatpush1.msra.mxu0 0.0
    %1572 = vmatprep.subr.mxu0 0.0
    %1573 = vmatpush1.msra.mxu0 0.0
    %1574 = vmatprep.subr.mxu0 0.0
    %1575 = vmatpush1.msra.mxu0 0.0
    %1576 = vmatprep.subr.mxu0 0.0
    %1577 = vmatpush1.msra.mxu0 0.0
    %1578 = vmatprep.subr.mxu0 0.0
    %1579 = vmatpush1.msra.mxu0 0.0
    %1580 = vmatprep.subr.mxu0 0.0
    %1581 = vmatpush1.msra.mxu0 0.0
    %1582 = vmatprep.subr.mxu0 0.0
    %1583 = vmatpush1.msra.mxu0 0.0
    %1584 = vmatprep.subr.mxu0 0.0
    %1585 = vmatpush1.msra.mxu0 0.0
    %1586 = vmatprep.mubr.f32.mxu0 0.0
    %1587 = vmatmul.mubr.f32.gmra.mrb[0].mxu0 %v1520
    %v1588 = vpop.f32.mrb[0].mxu0
    %v1589 = vadd.f32 %v1516, %v1588
    %v1590 = vpop.f32.mrb[0].mxu0
    %1591 = vdwg.mxu0
    %v1592 = vmax.f32 %v1589, 0.0
    %v1594 = vsel %vm248, %v1442, 0
    %1596 = vmatprep.subr.mxu0 0.0
    %1597 = vmatpush1.msra.mxu0 %v402
    %1598 = vmatprep.subr.mxu0 0.0
    %1599 = vmatpush1.msra.mxu0 %v403
    %1600 = vmatprep.subr.mxu0 0.0
    %1601 = vmatpush1.msra.mxu0 %v404
    %1602 = vmatprep.subr.mxu0 0.0
    %1603 = vmatpush1.msra.mxu0 %v405
    %1604 = vmatprep.subr.mxu0 0.0
    %1605 = vmatpush1.msra.mxu0 0.0
    %1606 = vmatprep.subr.mxu0 0.0
    %1607 = vmatpush1.msra.mxu0 0.0
    %1608 = vmatprep.subr.mxu0 0.0
    %1609 = vmatpush1.msra.mxu0 0.0
    %1610 = vmatprep.subr.mxu0 0.0
    %1611 = vmatpush1.msra.mxu0 0.0
    %1612 = vmatprep.subr.mxu0 0.0
    %1613 = vmatpush1.msra.mxu0 0.0
    %1614 = vmatprep.subr.mxu0 0.0
    %1615 = vmatpush1.msra.mxu0 0.0
    %1616 = vmatprep.subr.mxu0 0.0
    %1617 = vmatpush1.msra.mxu0 0.0
    %1618 = vmatprep.subr.mxu0 0.0
    %1619 = vmatpush1.msra.mxu0 0.0
    %1620 = vmatprep.subr.mxu0 0.0
    %1621 = vmatpush1.msra.mxu0 0.0
    %1622 = vmatprep.subr.mxu0 0.0
    %1623 = vmatpush1.msra.mxu0 0.0
    %1624 = vmatprep.subr.mxu0 0.0
    %1625 = vmatpush1.msra.mxu0 0.0
    %1626 = vmatprep.subr.mxu0 0.0
    %1627 = vmatpush1.msra.mxu0 0.0
    %1628 = vmatprep.subr.mxu0 0.0
    %1629 = vmatpush1.msra.mxu0 0.0
    %1630 = vmatprep.subr.mxu0 0.0
    %1631 = vmatpush1.msra.mxu0 0.0
    %1632 = vmatprep.subr.mxu0 0.0
    %1633 = vmatpush1.msra.mxu0 0.0
    %1634 = vmatprep.subr.mxu0 0.0
    %1635 = vmatpush1.msra.mxu0 0.0
    %1636 = vmatprep.subr.mxu0 0.0
    %1637 = vmatpush1.msra.mxu0 0.0
    %1638 = vmatprep.subr.mxu0 0.0
    %1639 = vmatpush1.msra.mxu0 0.0
    %1640 = vmatprep.subr.mxu0 0.0
    %1641 = vmatpush1.msra.mxu0 0.0
    %1642 = vmatprep.subr.mxu0 0.0
    %1643 = vmatpush1.msra.mxu0 0.0
    %1644 = vmatprep.subr.mxu0 0.0
    %1645 = vmatpush1.msra.mxu0 0.0
    %1646 = vmatprep.subr.mxu0 0.0
    %1647 = vmatpush1.msra.mxu0 0.0
    %1648 = vmatprep.subr.mxu0 0.0
    %1649 = vmatpush1.msra.mxu0 0.0
    %1650 = vmatprep.subr.mxu0 0.0
    %1651 = vmatpush1.msra.mxu0 0.0
    %1652 = vmatprep.subr.mxu0 0.0
    %1653 = vmatpush1.msra.mxu0 0.0
    %1654 = vmatprep.subr.mxu0 0.0
    %1655 = vmatpush1.msra.mxu0 0.0
    %1656 = vmatprep.subr.mxu0 0.0
    %1657 = vmatpush1.msra.mxu0 0.0
    %1658 = vmatprep.subr.mxu0 0.0
    %1659 = vmatpush1.msra.mxu0 0.0
    %1660 = vmatprep.mubr.f32.mxu0 0.0
    %1661 = vmatmul.mubr.f32.gmra.mrb[0].mxu0 %v1594
    %v1662 = vpop.f32.mrb[0].mxu0
    %v1663 = vadd.f32 0.0, %v1662
    %v1664 = vpop.f32.mrb[0].mxu0
    %1665 = vdwg.mxu0
    %v1667 = vsel %vm248, %v1592, 0
    %1669 = vmatprep.subr.mxu0 0.0
    %1670 = vmatpush1.msra.mxu0 %v397
    %1671 = vmatprep.subr.mxu0 0.0
    %1672 = vmatpush1.msra.mxu0 %v398
    %1673 = vmatprep.subr.mxu0 0.0
    %1674 = vmatpush1.msra.mxu0 %v399
    %1675 = vmatprep.subr.mxu0 0.0
    %1676 = vmatpush1.msra.mxu0 %v400
    %1677 = vmatprep.subr.mxu0 0.0
    %1678 = vmatpush1.msra.mxu0 0.0
    %1679 = vmatprep.subr.mxu0 0.0
    %1680 = vmatpush1.msra.mxu0 0.0
    %1681 = vmatprep.subr.mxu0 0.0
    %1682 = vmatpush1.msra.mxu0 0.0
    %1683 = vmatprep.subr.mxu0 0.0
    %1684 = vmatpush1.msra.mxu0 0.0
    %1685 = vmatprep.subr.mxu0 0.0
    %1686 = vmatpush1.msra.mxu0 0.0
    %1687 = vmatprep.subr.mxu0 0.0
    %1688 = vmatpush1.msra.mxu0 0.0
    %1689 = vmatprep.subr.mxu0 0.0
    %1690 = vmatpush1.msra.mxu0 0.0
    %1691 = vmatprep.subr.mxu0 0.0
    %1692 = vmatpush1.msra.mxu0 0.0
    %1693 = vmatprep.subr.mxu0 0.0
    %1694 = vmatpush1.msra.mxu0 0.0
    %1695 = vmatprep.subr.mxu0 0.0
    %1696 = vmatpush1.msra.mxu0 0.0
    %1697 = vmatprep.subr.mxu0 0.0
    %1698 = vmatpush1.msra.mxu0 0.0
    %1699 = vmatprep.subr.mxu0 0.0
    %1700 = vmatpush1.msra.mxu0 0.0
    %1701 = vmatprep.subr.mxu0 0.0
    %1702 = vmatpush1.msra.mxu0 0.0
    %1703 = vmatprep.subr.mxu0 0.0
    %1704 = vmatpush1.msra.mxu0 0.0
    %1705 = vmatprep.subr.mxu0 0.0
    %1706 = vmatpush1.msra.mxu0 0.0
    %1707 = vmatprep.subr.mxu0 0.0
    %1708 = vmatpush1.msra.mxu0 0.0
    %1709 = vmatprep.subr.mxu0 0.0
    %1710 = vmatpush1.msra.mxu0 0.0
    %1711 = vmatprep.subr.mxu0 0.0
    %1712 = vmatpush1.msra.mxu0 0.0
    %1713 = vmatprep.subr.mxu0 0.0
    %1714 = vmatpush1.msra.mxu0 0.0
    %1715 = vmatprep.subr.mxu0 0.0
    %1716 = vmatpush1.msra.mxu0 0.0
    %1717 = vmatprep.subr.mxu0 0.0
    %1718 = vmatpush1.msra.mxu0 0.0
    %1719 = vmatprep.subr.mxu0 0.0
    %1720 = vmatpush1.msra.mxu0 0.0
    %1721 = vmatprep.subr.mxu0 0.0
    %1722 = vmatpush1.msra.mxu0 0.0
    %1723 = vmatprep.subr.mxu0 0.0
    %1724 = vmatpush1.msra.mxu0 0.0
    %1725 = vmatprep.subr.mxu0 0.0
    %1726 = vmatpush1.msra.mxu0 0.0
    %1727 = vmatprep.subr.mxu0 0.0
    %1728 = vmatpush1.msra.mxu0 0.0
    %1729 = vmatprep.subr.mxu0 0.0
    %1730 = vmatpush1.msra.mxu0 0.0
    %1731 = vmatprep.subr.mxu0 0.0
    %1732 = vmatpush1.msra.mxu0 0.0
    %1733 = vmatprep.mubr.f32.mxu0 0.0
    %1734 = vmatmul.mubr.f32.gmra.mrb[0].mxu0 %v1667
    %v1735 = vpop.f32.mrb[0].mxu0
    %v1736 = vadd.f32 %v1663, %v1735
    %v1737 = vpop.f32.mrb[0].mxu0
    %1738 = vdwg.mxu0
    %v1739 = vmax.f32 %v1736, 0.0
    %1740 = vset.pattern.permute.xlu0 4
    %1741 = vperm.xlu0 %1740, %v550
    %v1742 = vpop.permute.xlu0 %1741
    %v1744 = vmul.f32 %v1742, %v1739
    %v1745 = vadd.f32 %v1448, %v1744
    %1746 = vmatprep.subr.mxu0 0.0
    %1747 = vmatpush1.msra.mxu0 %v244
    %1748 = vmatprep.subr.mxu0 0.0
    %1749 = vmatpush1.msra.mxu0 %v245
    %1750 = vmatprep.subr.mxu0 0.0
    %1751 = vmatpush1.msra.mxu0 %v246
    %1752 = vmatprep.subr.mxu0 0.0
    %1753 = vmatpush1.msra.mxu0 %v247
    %1754 = vmatprep.subr.mxu0 0.0
    %1755 = vmatpush1.msra.mxu0 0.0
    %1756 = vmatprep.subr.mxu0 0.0
    %1757 = vmatpush1.msra.mxu0 0.0
    %1758 = vmatprep.subr.mxu0 0.0
    %1759 = vmatpush1.msra.mxu0 0.0
    %1760 = vmatprep.subr.mxu0 0.0
    %1761 = vmatpush1.msra.mxu0 0.0
    %1762 = vmatprep.subr.mxu0 0.0
    %1763 = vmatpush1.msra.mxu0 0.0
    %1764 = vmatprep.subr.mxu0 0.0
    %1765 = vmatpush1.msra.mxu0 0.0
    %1766 = vmatprep.subr.mxu0 0.0
    %1767 = vmatpush1.msra.mxu0 0.0
    %1768 = vmatprep.subr.mxu0 0.0
    %1769 = vmatpush1.msra.mxu0 0.0
    %1770 = vmatprep.subr.mxu0 0.0
    %1771 = vmatpush1.msra.mxu0 0.0
    %1772 = vmatprep.subr.mxu0 0.0
    %1773 = vmatpush1.msra.mxu0 0.0
    %1774 = vmatprep.subr.mxu0 0.0
    %1775 = vmatpush1.msra.mxu0 0.0
    %1776 = vmatprep.subr.mxu0 0.0
    %1777 = vmatpush1.msra.mxu0 0.0
    %1778 = vmatprep.subr.mxu0 0.0
    %1779 = vmatpush1.msra.mxu0 0.0
    %1780 = vmatprep.subr.mxu0 0.0
    %1781 = vmatpush1.msra.mxu0 0.0
    %1782 = vmatprep.subr.mxu0 0.0
    %1783 = vmatpush1.msra.mxu0 0.0
    %1784 = vmatprep.subr.mxu0 0.0
    %1785 = vmatpush1.msra.mxu0 0.0
    %1786 = vmatprep.subr.mxu0 0.0
    %1787 = vmatpush1.msra.mxu0 0.0
    %1788 = vmatprep.subr.mxu0 0.0
    %1789 = vmatpush1.msra.mxu0 0.0
    %1790 = vmatprep.subr.mxu0 0.0
    %1791 = vmatpush1.msra.mxu0 0.0
    %1792 = vmatprep.subr.mxu0 0.0
    %1793 = vmatpush1.msra.mxu0 0.0
    %1794 = vmatprep.subr.mxu0 0.0
    %1795 = vmatpush1.msra.mxu0 0.0
    %1796 = vmatprep.subr.mxu0 0.0
    %1797 = vmatpush1.msra.mxu0 0.0
    %1798 = vmatprep.subr.mxu0 0.0
    %1799 = vmatpush1.msra.mxu0 0.0
    %1800 = vmatprep.subr.mxu0 0.0
    %1801 = vmatpush1.msra.mxu0 0.0
    %1802 = vmatprep.subr.mxu0 0.0
    %1803 = vmatpush1.msra.mxu0 0.0
    %1804 = vmatprep.subr.mxu0 0.0
    %1805 = vmatpush1.msra.mxu0 0.0
    %1806 = vmatprep.subr.mxu0 0.0
    %1807 = vmatpush1.msra.mxu0 0.0
    %1808 = vmatprep.subr.mxu0 0.0
    %1809 = vmatpush1.msra.mxu0 0.0
    %1810 = vmatprep.mubr.f32.mxu0 0.0
    %1811 = vmatmul.mubr.f32.gmra.mrb[0].mxu0 %v1667
    %v1812 = vpop.f32.mrb[0].mxu0
    %v1813 = vadd.f32 0.0, %v1812
    %v1814 = vpop.f32.mrb[0].mxu0
    %1815 = vdwg.mxu0
    %v1817 = vsel %vm248, %v237, 0
    %1819 = vmatprep.subr.mxu0 0.0
    %1820 = vmatpush1.msra.mxu0 %v240
    %1821 = vmatprep.subr.mxu0 0.0
    %1822 = vmatpush1.msra.mxu0 %v241
    %1823 = vmatprep.subr.mxu0 0.0
    %1824 = vmatpush1.msra.mxu0 %v242
    %1825 = vmatprep.subr.mxu0 0.0
    %1826 = vmatpush1.msra.mxu0 %v243
    %1827 = vmatprep.subr.mxu0 0.0
    %1828 = vmatpush1.msra.mxu0 0.0
    %1829 = vmatprep.subr.mxu0 0.0
    %1830 = vmatpush1.msra.mxu0 0.0
    %1831 = vmatprep.subr.mxu0 0.0
    %1832 = vmatpush1.msra.mxu0 0.0
    %1833 = vmatprep.subr.mxu0 0.0
    %1834 = vmatpush1.msra.mxu0 0.0
    %1835 = vmatprep.subr.mxu0 0.0
    %1836 = vmatpush1.msra.mxu0 0.0
    %1837 = vmatprep.subr.mxu0 0.0
    %1838 = vmatpush1.msra.mxu0 0.0
    %1839 = vmatprep.subr.mxu0 0.0
    %1840 = vmatpush1.msra.mxu0 0.0
    %1841 = vmatprep.subr.mxu0 0.0
    %1842 = vmatpush1.msra.mxu0 0.0
    %1843 = vmatprep.subr.mxu0 0.0
    %1844 = vmatpush1.msra.mxu0 0.0
    %1845 = vmatprep.subr.mxu0 0.0
    %1846 = vmatpush1.msra.mxu0 0.0
    %1847 = vmatprep.subr.mxu0 0.0
    %1848 = vmatpush1.msra.mxu0 0.0
    %1849 = vmatprep.subr.mxu0 0.0
    %1850 = vmatpush1.msra.mxu0 0.0
    %1851 = vmatprep.subr.mxu0 0.0
    %1852 = vmatpush1.msra.mxu0 0.0
    %1853 = vmatprep.subr.mxu0 0.0
    %1854 = vmatpush1.msra.mxu0 0.0
    %1855 = vmatprep.subr.mxu0 0.0
    %1856 = vmatpush1.msra.mxu0 0.0
    %1857 = vmatprep.subr.mxu0 0.0
    %1858 = vmatpush1.msra.mxu0 0.0
    %1859 = vmatprep.subr.mxu0 0.0
    %1860 = vmatpush1.msra.mxu0 0.0
    %1861 = vmatprep.subr.mxu0 0.0
    %1862 = vmatpush1.msra.mxu0 0.0
    %1863 = vmatprep.subr.mxu0 0.0
    %1864 = vmatpush1.msra.mxu0 0.0
    %1865 = vmatprep.subr.mxu0 0.0
    %1866 = vmatpush1.msra.mxu0 0.0
    %1867 = vmatprep.subr.mxu0 0.0
    %1868 = vmatpush1.msra.mxu0 0.0
    %1869 = vmatprep.subr.mxu0 0.0
    %1870 = vmatpush1.msra.mxu0 0.0
    %1871 = vmatprep.subr.mxu0 0.0
    %1872 = vmatpush1.msra.mxu0 0.0
    %1873 = vmatprep.subr.mxu0 0.0
    %1874 = vmatpush1.msra.mxu0 0.0
    %1875 = vmatprep.subr.mxu0 0.0
    %1876 = vmatpush1.msra.mxu0 0.0
    %1877 = vmatprep.subr.mxu0 0.0
    %1878 = vmatpush1.msra.mxu0 0.0
    %1879 = vmatprep.subr.mxu0 0.0
    %1880 = vmatpush1.msra.mxu0 0.0
    %1881 = vmatprep.subr.mxu0 0.0
    %1882 = vmatpush1.msra.mxu0 0.0
    %1883 = vmatprep.mubr.f32.mxu0 0.0
    %1884 = vmatmul.mubr.f32.gmra.mrb[0].mxu0 %v1817
    %v1885 = vpop.f32.mrb[0].mxu0
    %v1886 = vadd.f32 %v1813, %v1885
    %v1887 = vpop.f32.mrb[0].mxu0
    %1888 = vdwg.mxu0
    %v1889 = vmax.f32 %v1886, 0.0
    %v1891 = vsel %vm248, %v1739, 0
    %1893 = vmatprep.subr.mxu0 0.0
    %1894 = vmatpush1.msra.mxu0 %v402
    %1895 = vmatprep.subr.mxu0 0.0
    %1896 = vmatpush1.msra.mxu0 %v403
    %1897 = vmatprep.subr.mxu0 0.0
    %1898 = vmatpush1.msra.mxu0 %v404
    %1899 = vmatprep.subr.mxu0 0.0
    %1900 = vmatpush1.msra.mxu0 %v405
    %1901 = vmatprep.subr.mxu0 0.0
    %1902 = vmatpush1.msra.mxu0 0.0
    %1903 = vmatprep.subr.mxu0 0.0
    %1904 = vmatpush1.msra.mxu0 0.0
    %1905 = vmatprep.subr.mxu0 0.0
    %1906 = vmatpush1.msra.mxu0 0.0
    %1907 = vmatprep.subr.mxu0 0.0
    %1908 = vmatpush1.msra.mxu0 0.0
    %1909 = vmatprep.subr.mxu0 0.0
    %1910 = vmatpush1.msra.mxu0 0.0
    %1911 = vmatprep.subr.mxu0 0.0
    %1912 = vmatpush1.msra.mxu0 0.0
    %1913 = vmatprep.subr.mxu0 0.0
    %1914 = vmatpush1.msra.mxu0 0.0
    %1915 = vmatprep.subr.mxu0 0.0
    %1916 = vmatpush1.msra.mxu0 0.0
    %1917 = vmatprep.subr.mxu0 0.0
    %1918 = vmatpush1.msra.mxu0 0.0
    %1919 = vmatprep.subr.mxu0 0.0
    %1920 = vmatpush1.msra.mxu0 0.0
    %1921 = vmatprep.subr.mxu0 0.0
    %1922 = vmatpush1.msra.mxu0 0.0
    %1923 = vmatprep.subr.mxu0 0.0
    %1924 = vmatpush1.msra.mxu0 0.0
    %1925 = vmatprep.subr.mxu0 0.0
    %1926 = vmatpush1.msra.mxu0 0.0
    %1927 = vmatprep.subr.mxu0 0.0
    %1928 = vmatpush1.msra.mxu0 0.0
    %1929 = vmatprep.subr.mxu0 0.0
    %1930 = vmatpush1.msra.mxu0 0.0
    %1931 = vmatprep.subr.mxu0 0.0
    %1932 = vmatpush1.msra.mxu0 0.0
    %1933 = vmatprep.subr.mxu0 0.0
    %1934 = vmatpush1.msra.mxu0 0.0
    %1935 = vmatprep.subr.mxu0 0.0
    %1936 = vmatpush1.msra.mxu0 0.0
    %1937 = vmatprep.subr.mxu0 0.0
    %1938 = vmatpush1.msra.mxu0 0.0
    %1939 = vmatprep.subr.mxu0 0.0
    %1940 = vmatpush1.msra.mxu0 0.0
    %1941 = vmatprep.subr.mxu0 0.0
    %1942 = vmatpush1.msra.mxu0 0.0
    %1943 = vmatprep.subr.mxu0 0.0
    %1944 = vmatpush1.msra.mxu0 0.0
    %1945 = vmatprep.subr.mxu0 0.0
    %1946 = vmatpush1.msra.mxu0 0.0
    %1947 = vmatprep.subr.mxu0 0.0
    %1948 = vmatpush1.msra.mxu0 0.0
    %1949 = vmatprep.subr.mxu0 0.0
    %1950 = vmatpush1.msra.mxu0 0.0
    %1951 = vmatprep.subr.mxu0 0.0
    %1952 = vmatpush1.msra.mxu0 0.0
    %1953 = vmatprep.subr.mxu0 0.0
    %1954 = vmatpush1.msra.mxu0 0.0
    %1955 = vmatprep.subr.mxu0 0.0
    %1956 = vmatpush1.msra.mxu0 0.0
    %1957 = vmatprep.mubr.f32.mxu0 0.0
    %1958 = vmatmul.mubr.f32.gmra.mrb[0].mxu0 %v1891
    %v1959 = vpop.f32.mrb[0].mxu0
    %v1960 = vadd.f32 0.0, %v1959
    %v1961 = vpop.f32.mrb[0].mxu0
    %1962 = vdwg.mxu0
    %v1964 = vsel %vm248, %v1889, 0
    %1966 = vmatprep.subr.mxu0 0.0
    %1967 = vmatpush1.msra.mxu0 %v397
    %1968 = vmatprep.subr.mxu0 0.0
    %1969 = vmatpush1.msra.mxu0 %v398
    %1970 = vmatprep.subr.mxu0 0.0
    %1971 = vmatpush1.msra.mxu0 %v399
    %1972 = vmatprep.subr.mxu0 0.0
    %1973 = vmatpush1.msra.mxu0 %v400
    %1974 = vmatprep.subr.mxu0 0.0
    %1975 = vmatpush1.msra.mxu0 0.0
    %1976 = vmatprep.subr.mxu0 0.0
    %1977 = vmatpush1.msra.mxu0 0.0
    %1978 = vmatprep.subr.mxu0 0.0
    %1979 = vmatpush1.msra.mxu0 0.0
    %1980 = vmatprep.subr.mxu0 0.0
    %1981 = vmatpush1.msra.mxu0 0.0
    %1982 = vmatprep.subr.mxu0 0.0
    %1983 = vmatpush1.msra.mxu0 0.0
    %1984 = vmatprep.subr.mxu0 0.0
    %1985 = vmatpush1.msra.mxu0 0.0
    %1986 = vmatprep.subr.mxu0 0.0
    %1987 = vmatpush1.msra.mxu0 0.0
    %1988 = vmatprep.subr.mxu0 0.0
    %1989 = vmatpush1.msra.mxu0 0.0
    %1990 = vmatprep.subr.mxu0 0.0
    %1991 = vmatpush1.msra.mxu0 0.0
    %1992 = vmatprep.subr.mxu0 0.0
    %1993 = vmatpush1.msra.mxu0 0.0
    %1994 = vmatprep.subr.mxu0 0.0
    %1995 = vmatpush1.msra.mxu0 0.0
    %1996 = vmatprep.subr.mxu0 0.0
    %1997 = vmatpush1.msra.mxu0 0.0
    %1998 = vmatprep.subr.mxu0 0.0
    %1999 = vmatpush1.msra.mxu0 0.0
    %2000 = vmatprep.subr.mxu0 0.0
    %2001 = vmatpush1.msra.mxu0 0.0
    %2002 = vmatprep.subr.mxu0 0.0
    %2003 = vmatpush1.msra.mxu0 0.0
    %2004 = vmatprep.subr.mxu0 0.0
    %2005 = vmatpush1.msra.mxu0 0.0
    %2006 = vmatprep.subr.mxu0 0.0
    %2007 = vmatpush1.msra.mxu0 0.0
    %2008 = vmatprep.subr.mxu0 0.0
    %2009 = vmatpush1.msra.mxu0 0.0
    %2010 = vmatprep.subr.mxu0 0.0
    %2011 = vmatpush1.msra.mxu0 0.0
    %2012 = vmatprep.subr.mxu0 0.0
    %2013 = vmatpush1.msra.mxu0 0.0
    %2014 = vmatprep.subr.mxu0 0.0
    %2015 = vmatpush1.msra.mxu0 0.0
    %2016 = vmatprep.subr.mxu0 0.0
    %2017 = vmatpush1.msra.mxu0 0.0
    %2018 = vmatprep.subr.mxu0 0.0
    %2019 = vmatpush1.msra.mxu0 0.0
    %2020 = vmatprep.subr.mxu0 0.0
    %2021 = vmatpush1.msra.mxu0 0.0
    %2022 = vmatprep.subr.mxu0 0.0
    %2023 = vmatpush1.msra.mxu0 0.0
    %2024 = vmatprep.subr.mxu0 0.0
    %2025 = vmatpush1.msra.mxu0 0.0
    %2026 = vmatprep.subr.mxu0 0.0
    %2027 = vmatpush1.msra.mxu0 0.0
    %2028 = vmatprep.subr.mxu0 0.0
    %2029 = vmatpush1.msra.mxu0 0.0
    %2030 = vmatprep.mubr.f32.mxu0 0.0
    %2031 = vmatmul.mubr.f32.gmra.mrb[0].mxu0 %v1964
    %v2032 = vpop.f32.mrb[0].mxu0
    %v2033 = vadd.f32 %v1960, %v2032
    %v2034 = vpop.f32.mrb[0].mxu0
    %2035 = vdwg.mxu0
    %v2036 = vmax.f32 %v2033, 0.0
    %2037 = vset.pattern.permute.xlu0 5
    %2038 = vperm.xlu0 %2037, %v550
    %v2039 = vpop.permute.xlu0 %2038
    %v2041 = vmul.f32 %v2039, %v2036
    %v2042 = vadd.f32 %v1745, %v2041
    %2043 = vmatprep.subr.mxu0 0.0
    %2044 = vmatpush1.msra.mxu0 %v244
    %2045 = vmatprep.subr.mxu0 0.0
    %2046 = vmatpush1.msra.mxu0 %v245
    %2047 = vmatprep.subr.mxu0 0.0
    %2048 = vmatpush1.msra.mxu0 %v246
    %2049 = vmatprep.subr.mxu0 0.0
    %2050 = vmatpush1.msra.mxu0 %v247
    %2051 = vmatprep.subr.mxu0 0.0
    %2052 = vmatpush1.msra.mxu0 0.0
    %2053 = vmatprep.subr.mxu0 0.0
    %2054 = vmatpush1.msra.mxu0 0.0
    %2055 = vmatprep.subr.mxu0 0.0
    %2056 = vmatpush1.msra.mxu0 0.0
    %2057 = vmatprep.subr.mxu0 0.0
    %2058 = vmatpush1.msra.mxu0 0.0
    %2059 = vmatprep.subr.mxu0 0.0
    %2060 = vmatpush1.msra.mxu0 0.0
    %2061 = vmatprep.subr.mxu0 0.0
    %2062 = vmatpush1.msra.mxu0 0.0
    %2063 = vmatprep.subr.mxu0 0.0
    %2064 = vmatpush1.msra.mxu0 0.0
    %2065 = vmatprep.subr.mxu0 0.0
    %2066 = vmatpush1.msra.mxu0 0.0
    %2067 = vmatprep.subr.mxu0 0.0
    %2068 = vmatpush1.msra.mxu0 0.0
    %2069 = vmatprep.subr.mxu0 0.0
    %2070 = vmatpush1.msra.mxu0 0.0
    %2071 = vmatprep.subr.mxu0 0.0
    %2072 = vmatpush1.msra.mxu0 0.0
    %2073 = vmatprep.subr.mxu0 0.0
    %2074 = vmatpush1.msra.mxu0 0.0
    %2075 = vmatprep.subr.mxu0 0.0
    %2076 = vmatpush1.msra.mxu0 0.0
    %2077 = vmatprep.subr.mxu0 0.0
    %2078 = vmatpush1.msra.mxu0 0.0
    %2079 = vmatprep.subr.mxu0 0.0
    %2080 = vmatpush1.msra.mxu0 0.0
    %2081 = vmatprep.subr.mxu0 0.0
    %2082 = vmatpush1.msra.mxu0 0.0
    %2083 = vmatprep.subr.mxu0 0.0
    %2084 = vmatpush1.msra.mxu0 0.0
    %2085 = vmatprep.subr.mxu0 0.0
    %2086 = vmatpush1.msra.mxu0 0.0
    %2087 = vmatprep.subr.mxu0 0.0
    %2088 = vmatpush1.msra.mxu0 0.0
    %2089 = vmatprep.subr.mxu0 0.0
    %2090 = vmatpush1.msra.mxu0 0.0
    %2091 = vmatprep.subr.mxu0 0.0
    %2092 = vmatpush1.msra.mxu0 0.0
    %2093 = vmatprep.subr.mxu0 0.0
    %2094 = vmatpush1.msra.mxu0 0.0
    %2095 = vmatprep.subr.mxu0 0.0
    %2096 = vmatpush1.msra.mxu0 0.0
    %2097 = vmatprep.subr.mxu0 0.0
    %2098 = vmatpush1.msra.mxu0 0.0
    %2099 = vmatprep.subr.mxu0 0.0
    %2100 = vmatpush1.msra.mxu0 0.0
    %2101 = vmatprep.subr.mxu0 0.0
    %2102 = vmatpush1.msra.mxu0 0.0
    %2103 = vmatprep.subr.mxu0 0.0
    %2104 = vmatpush1.msra.mxu0 0.0
    %2105 = vmatprep.subr.mxu0 0.0
    %2106 = vmatpush1.msra.mxu0 0.0
    %2107 = vmatprep.mubr.f32.mxu0 0.0
    %2108 = vmatmul.mubr.f32.gmra.mrb[0].mxu0 %v1964
    %v2109 = vpop.f32.mrb[0].mxu0
    %v2110 = vadd.f32 0.0, %v2109
    %v2111 = vpop.f32.mrb[0].mxu0
    %2112 = vdwg.mxu0
    %v2114 = vsel %vm248, %v238, 0
    %2116 = vmatprep.subr.mxu0 0.0
    %2117 = vmatpush1.msra.mxu0 %v240
    %2118 = vmatprep.subr.mxu0 0.0
    %2119 = vmatpush1.msra.mxu0 %v241
    %2120 = vmatprep.subr.mxu0 0.0
    %2121 = vmatpush1.msra.mxu0 %v242
    %2122 = vmatprep.subr.mxu0 0.0
    %2123 = vmatpush1.msra.mxu0 %v243
    %2124 = vmatprep.subr.mxu0 0.0
    %2125 = vmatpush1.msra.mxu0 0.0
    %2126 = vmatprep.subr.mxu0 0.0
    %2127 = vmatpush1.msra.mxu0 0.0
    %2128 = vmatprep.subr.mxu0 0.0
    %2129 = vmatpush1.msra.mxu0 0.0
    %2130 = vmatprep.subr.mxu0 0.0
    %2131 = vmatpush1.msra.mxu0 0.0
    %2132 = vmatprep.subr.mxu0 0.0
    %2133 = vmatpush1.msra.mxu0 0.0
    %2134 = vmatprep.subr.mxu0 0.0
    %2135 = vmatpush1.msra.mxu0 0.0
    %2136 = vmatprep.subr.mxu0 0.0
    %2137 = vmatpush1.msra.mxu0 0.0
    %2138 = vmatprep.subr.mxu0 0.0
    %2139 = vmatpush1.msra.mxu0 0.0
    %2140 = vmatprep.subr.mxu0 0.0
    %2141 = vmatpush1.msra.mxu0 0.0
    %2142 = vmatprep.subr.mxu0 0.0
    %2143 = vmatpush1.msra.mxu0 0.0
    %2144 = vmatprep.subr.mxu0 0.0
    %2145 = vmatpush1.msra.mxu0 0.0
    %2146 = vmatprep.subr.mxu0 0.0
    %2147 = vmatpush1.msra.mxu0 0.0
    %2148 = vmatprep.subr.mxu0 0.0
    %2149 = vmatpush1.msra.mxu0 0.0
    %2150 = vmatprep.subr.mxu0 0.0
    %2151 = vmatpush1.msra.mxu0 0.0
    %2152 = vmatprep.subr.mxu0 0.0
    %2153 = vmatpush1.msra.mxu0 0.0
    %2154 = vmatprep.subr.mxu0 0.0
    %2155 = vmatpush1.msra.mxu0 0.0
    %2156 = vmatprep.subr.mxu0 0.0
    %2157 = vmatpush1.msra.mxu0 0.0
    %2158 = vmatprep.subr.mxu0 0.0
    %2159 = vmatpush1.msra.mxu0 0.0
    %2160 = vmatprep.subr.mxu0 0.0
    %2161 = vmatpush1.msra.mxu0 0.0
    %2162 = vmatprep.subr.mxu0 0.0
    %2163 = vmatpush1.msra.mxu0 0.0
    %2164 = vmatprep.subr.mxu0 0.0
    %2165 = vmatpush1.msra.mxu0 0.0
    %2166 = vmatprep.subr.mxu0 0.0
    %2167 = vmatpush1.msra.mxu0 0.0
    %2168 = vmatprep.subr.mxu0 0.0
    %2169 = vmatpush1.msra.mxu0 0.0
    %2170 = vmatprep.subr.mxu0 0.0
    %2171 = vmatpush1.msra.mxu0 0.0
    %2172 = vmatprep.subr.mxu0 0.0
    %2173 = vmatpush1.msra.mxu0 0.0
    %2174 = vmatprep.subr.mxu0 0.0
    %2175 = vmatpush1.msra.mxu0 0.0
    %2176 = vmatprep.subr.mxu0 0.0
    %2177 = vmatpush1.msra.mxu0 0.0
    %2178 = vmatprep.subr.mxu0 0.0
    %2179 = vmatpush1.msra.mxu0 0.0
    %2180 = vmatprep.mubr.f32.mxu0 0.0
    %2181 = vmatmul.mubr.f32.gmra.mrb[0].mxu0 %v2114
    %v2182 = vpop.f32.mrb[0].mxu0
    %v2183 = vadd.f32 %v2110, %v2182
    %v2184 = vpop.f32.mrb[0].mxu0
    %2185 = vdwg.mxu0
    %v2186 = vmax.f32 %v2183, 0.0
    %v2188 = vsel %vm248, %v2036, 0
    %2190 = vmatprep.subr.mxu0 0.0
    %2191 = vmatpush1.msra.mxu0 %v402
    %2192 = vmatprep.subr.mxu0 0.0
    %2193 = vmatpush1.msra.mxu0 %v403
    %2194 = vmatprep.subr.mxu0 0.0
    %2195 = vmatpush1.msra.mxu0 %v404
    %2196 = vmatprep.subr.mxu0 0.0
    %2197 = vmatpush1.msra.mxu0 %v405
    %2198 = vmatprep.subr.mxu0 0.0
    %2199 = vmatpush1.msra.mxu0 0.0
    %2200 = vmatprep.subr.mxu0 0.0
    %2201 = vmatpush1.msra.mxu0 0.0
    %2202 = vmatprep.subr.mxu0 0.0
    %2203 = vmatpush1.msra.mxu0 0.0
    %2204 = vmatprep.subr.mxu0 0.0
    %2205 = vmatpush1.msra.mxu0 0.0
    %2206 = vmatprep.subr.mxu0 0.0
    %2207 = vmatpush1.msra.mxu0 0.0
    %2208 = vmatprep.subr.mxu0 0.0
    %2209 = vmatpush1.msra.mxu0 0.0
    %2210 = vmatprep.subr.mxu0 0.0
    %2211 = vmatpush1.msra.mxu0 0.0
    %2212 = vmatprep.subr.mxu0 0.0
    %2213 = vmatpush1.msra.mxu0 0.0
    %2214 = vmatprep.subr.mxu0 0.0
    %2215 = vmatpush1.msra.mxu0 0.0
    %2216 = vmatprep.subr.mxu0 0.0
    %2217 = vmatpush1.msra.mxu0 0.0
    %2218 = vmatprep.subr.mxu0 0.0
    %2219 = vmatpush1.msra.mxu0 0.0
    %2220 = vmatprep.subr.mxu0 0.0
    %2221 = vmatpush1.msra.mxu0 0.0
    %2222 = vmatprep.subr.mxu0 0.0
    %2223 = vmatpush1.msra.mxu0 0.0
    %2224 = vmatprep.subr.mxu0 0.0
    %2225 = vmatpush1.msra.mxu0 0.0
    %2226 = vmatprep.subr.mxu0 0.0
    %2227 = vmatpush1.msra.mxu0 0.0
    %2228 = vmatprep.subr.mxu0 0.0
    %2229 = vmatpush1.msra.mxu0 0.0
    %2230 = vmatprep.subr.mxu0 0.0
    %2231 = vmatpush1.msra.mxu0 0.0
    %2232 = vmatprep.subr.mxu0 0.0
    %2233 = vmatpush1.msra.mxu0 0.0
    %2234 = vmatprep.subr.mxu0 0.0
    %2235 = vmatpush1.msra.mxu0 0.0
    %2236 = vmatprep.subr.mxu0 0.0
    %2237 = vmatpush1.msra.mxu0 0.0
    %2238 = vmatprep.subr.mxu0 0.0
    %2239 = vmatpush1.msra.mxu0 0.0
    %2240 = vmatprep.subr.mxu0 0.0
    %2241 = vmatpush1.msra.mxu0 0.0
    %2242 = vmatprep.subr.mxu0 0.0
    %2243 = vmatpush1.msra.mxu0 0.0
    %2244 = vmatprep.subr.mxu0 0.0
    %2245 = vmatpush1.msra.mxu0 0.0
    %2246 = vmatprep.subr.mxu0 0.0
    %2247 = vmatpush1.msra.mxu0 0.0
    %2248 = vmatprep.subr.mxu0 0.0
    %2249 = vmatpush1.msra.mxu0 0.0
    %2250 = vmatprep.subr.mxu0 0.0
    %2251 = vmatpush1.msra.mxu0 0.0
    %2252 = vmatprep.subr.mxu0 0.0
    %2253 = vmatpush1.msra.mxu0 0.0
    %2254 = vmatprep.mubr.f32.mxu0 0.0
    %2255 = vmatmul.mubr.f32.gmra.mrb[0].mxu0 %v2188
    %v2256 = vpop.f32.mrb[0].mxu0
    %v2257 = vadd.f32 0.0, %v2256
    %v2258 = vpop.f32.mrb[0].mxu0
    %2259 = vdwg.mxu0
    %v2261 = vsel %vm248, %v2186, 0
    %2263 = vmatprep.subr.mxu0 0.0
    %2264 = vmatpush1.msra.mxu0 %v397
    %2265 = vmatprep.subr.mxu0 0.0
    %2266 = vmatpush1.msra.mxu0 %v398
    %2267 = vmatprep.subr.mxu0 0.0
    %2268 = vmatpush1.msra.mxu0 %v399
    %2269 = vmatprep.subr.mxu0 0.0
    %2270 = vmatpush1.msra.mxu0 %v400
    %2271 = vmatprep.subr.mxu0 0.0
    %2272 = vmatpush1.msra.mxu0 0.0
    %2273 = vmatprep.subr.mxu0 0.0
    %2274 = vmatpush1.msra.mxu0 0.0
    %2275 = vmatprep.subr.mxu0 0.0
    %2276 = vmatpush1.msra.mxu0 0.0
    %2277 = vmatprep.subr.mxu0 0.0
    %2278 = vmatpush1.msra.mxu0 0.0
    %2279 = vmatprep.subr.mxu0 0.0
    %2280 = vmatpush1.msra.mxu0 0.0
    %2281 = vmatprep.subr.mxu0 0.0
    %2282 = vmatpush1.msra.mxu0 0.0
    %2283 = vmatprep.subr.mxu0 0.0
    %2284 = vmatpush1.msra.mxu0 0.0
    %2285 = vmatprep.subr.mxu0 0.0
    %2286 = vmatpush1.msra.mxu0 0.0
    %2287 = vmatprep.subr.mxu0 0.0
    %2288 = vmatpush1.msra.mxu0 0.0
    %2289 = vmatprep.subr.mxu0 0.0
    %2290 = vmatpush1.msra.mxu0 0.0
    %2291 = vmatprep.subr.mxu0 0.0
    %2292 = vmatpush1.msra.mxu0 0.0
    %2293 = vmatprep.subr.mxu0 0.0
    %2294 = vmatpush1.msra.mxu0 0.0
    %2295 = vmatprep.subr.mxu0 0.0
    %2296 = vmatpush1.msra.mxu0 0.0
    %2297 = vmatprep.subr.mxu0 0.0
    %2298 = vmatpush1.msra.mxu0 0.0
    %2299 = vmatprep.subr.mxu0 0.0
    %2300 = vmatpush1.msra.mxu0 0.0
    %2301 = vmatprep.subr.mxu0 0.0
    %2302 = vmatpush1.msra.mxu0 0.0
    %2303 = vmatprep.subr.mxu0 0.0
    %2304 = vmatpush1.msra.mxu0 0.0
    %2305 = vmatprep.subr.mxu0 0.0
    %2306 = vmatpush1.msra.mxu0 0.0
    %2307 = vmatprep.subr.mxu0 0.0
    %2308 = vmatpush1.msra.mxu0 0.0
    %2309 = vmatprep.subr.mxu0 0.0
    %2310 = vmatpush1.msra.mxu0 0.0
    %2311 = vmatprep.subr.mxu0 0.0
    %2312 = vmatpush1.msra.mxu0 0.0
    %2313 = vmatprep.subr.mxu0 0.0
    %2314 = vmatpush1.msra.mxu0 0.0
    %2315 = vmatprep.subr.mxu0 0.0
    %2316 = vmatpush1.msra.mxu0 0.0
    %2317 = vmatprep.subr.mxu0 0.0
    %2318 = vmatpush1.msra.mxu0 0.0
    %2319 = vmatprep.subr.mxu0 0.0
    %2320 = vmatpush1.msra.mxu0 0.0
    %2321 = vmatprep.subr.mxu0 0.0
    %2322 = vmatpush1.msra.mxu0 0.0
    %2323 = vmatprep.subr.mxu0 0.0
    %2324 = vmatpush1.msra.mxu0 0.0
    %2325 = vmatprep.subr.mxu0 0.0
    %2326 = vmatpush1.msra.mxu0 0.0
    %2327 = vmatprep.mubr.f32.mxu0 0.0
    %2328 = vmatmul.mubr.f32.gmra.mrb[0].mxu0 %v2261
    %v2329 = vpop.f32.mrb[0].mxu0
    %v2330 = vadd.f32 %v2257, %v2329
    %v2331 = vpop.f32.mrb[0].mxu0
    %2332 = vdwg.mxu0
    %v2333 = vmax.f32 %v2330, 0.0
    %2334 = vset.pattern.permute.xlu0 6
    %2335 = vperm.xlu0 %2334, %v550
    %v2336 = vpop.permute.xlu0 %2335
    %v2338 = vmul.f32 %v2336, %v2333
    %v2339 = vadd.f32 %v2042, %v2338
    %2340 = vmatprep.subr.mxu0 0.0
    %2341 = vmatpush1.msra.mxu0 %v244
    %2342 = vmatprep.subr.mxu0 0.0
    %2343 = vmatpush1.msra.mxu0 %v245
    %2344 = vmatprep.subr.mxu0 0.0
    %2345 = vmatpush1.msra.mxu0 %v246
    %2346 = vmatprep.subr.mxu0 0.0
    %2347 = vmatpush1.msra.mxu0 %v247
    %2348 = vmatprep.subr.mxu0 0.0
    %2349 = vmatpush1.msra.mxu0 0.0
    %2350 = vmatprep.subr.mxu0 0.0
    %2351 = vmatpush1.msra.mxu0 0.0
    %2352 = vmatprep.subr.mxu0 0.0
    %2353 = vmatpush1.msra.mxu0 0.0
    %2354 = vmatprep.subr.mxu0 0.0
    %2355 = vmatpush1.msra.mxu0 0.0
    %2356 = vmatprep.subr.mxu0 0.0
    %2357 = vmatpush1.msra.mxu0 0.0
    %2358 = vmatprep.subr.mxu0 0.0
    %2359 = vmatpush1.msra.mxu0 0.0
    %2360 = vmatprep.subr.mxu0 0.0
    %2361 = vmatpush1.msra.mxu0 0.0
    %2362 = vmatprep.subr.mxu0 0.0
    %2363 = vmatpush1.msra.mxu0 0.0
    %2364 = vmatprep.subr.mxu0 0.0
    %2365 = vmatpush1.msra.mxu0 0.0
    %2366 = vmatprep.subr.mxu0 0.0
    %2367 = vmatpush1.msra.mxu0 0.0
    %2368 = vmatprep.subr.mxu0 0.0
    %2369 = vmatpush1.msra.mxu0 0.0
    %2370 = vmatprep.subr.mxu0 0.0
    %2371 = vmatpush1.msra.mxu0 0.0
    %2372 = vmatprep.subr.mxu0 0.0
    %2373 = vmatpush1.msra.mxu0 0.0
    %2374 = vmatprep.subr.mxu0 0.0
    %2375 = vmatpush1.msra.mxu0 0.0
    %2376 = vmatprep.subr.mxu0 0.0
    %2377 = vmatpush1.msra.mxu0 0.0
    %2378 = vmatprep.subr.mxu0 0.0
    %2379 = vmatpush1.msra.mxu0 0.0
    %2380 = vmatprep.subr.mxu0 0.0
    %2381 = vmatpush1.msra.mxu0 0.0
    %2382 = vmatprep.subr.mxu0 0.0
    %2383 = vmatpush1.msra.mxu0 0.0
    %2384 = vmatprep.subr.mxu0 0.0
    %2385 = vmatpush1.msra.mxu0 0.0
    %2386 = vmatprep.subr.mxu0 0.0
    %2387 = vmatpush1.msra.mxu0 0.0
    %2388 = vmatprep.subr.mxu0 0.0
    %2389 = vmatpush1.msra.mxu0 0.0
    %2390 = vmatprep.subr.mxu0 0.0
    %2391 = vmatpush1.msra.mxu0 0.0
    %2392 = vmatprep.subr.mxu0 0.0
    %2393 = vmatpush1.msra.mxu0 0.0
    %2394 = vmatprep.subr.mxu0 0.0
    %2395 = vmatpush1.msra.mxu0 0.0
    %2396 = vmatprep.subr.mxu0 0.0
    %2397 = vmatpush1.msra.mxu0 0.0
    %2398 = vmatprep.subr.mxu0 0.0
    %2399 = vmatpush1.msra.mxu0 0.0
    %2400 = vmatprep.subr.mxu0 0.0
    %2401 = vmatpush1.msra.mxu0 0.0
    %2402 = vmatprep.subr.mxu0 0.0
    %2403 = vmatpush1.msra.mxu0 0.0
    %2404 = vmatprep.mubr.f32.mxu0 0.0
    %2405 = vmatmul.mubr.f32.gmra.mrb[0].mxu0 %v2261
    %v2406 = vpop.f32.mrb[0].mxu0
    %v2407 = vadd.f32 0.0, %v2406
    %v2408 = vpop.f32.mrb[0].mxu0
    %2409 = vdwg.mxu0
    %v2411 = vsel %vm248, %v239, 0
    %2413 = vmatprep.subr.mxu0 0.0
    %2414 = vmatpush1.msra.mxu0 %v240
    %2415 = vmatprep.subr.mxu0 0.0
    %2416 = vmatpush1.msra.mxu0 %v241
    %2417 = vmatprep.subr.mxu0 0.0
    %2418 = vmatpush1.msra.mxu0 %v242
    %2419 = vmatprep.subr.mxu0 0.0
    %2420 = vmatpush1.msra.mxu0 %v243
    %2421 = vmatprep.subr.mxu0 0.0
    %2422 = vmatpush1.msra.mxu0 0.0
    %2423 = vmatprep.subr.mxu0 0.0
    %2424 = vmatpush1.msra.mxu0 0.0
    %2425 = vmatprep.subr.mxu0 0.0
    %2426 = vmatpush1.msra.mxu0 0.0
    %2427 = vmatprep.subr.mxu0 0.0
    %2428 = vmatpush1.msra.mxu0 0.0
    %2429 = vmatprep.subr.mxu0 0.0
    %2430 = vmatpush1.msra.mxu0 0.0
    %2431 = vmatprep.subr.mxu0 0.0
    %2432 = vmatpush1.msra.mxu0 0.0
    %2433 = vmatprep.subr.mxu0 0.0
    %2434 = vmatpush1.msra.mxu0 0.0
    %2435 = vmatprep.subr.mxu0 0.0
    %2436 = vmatpush1.msra.mxu0 0.0
    %2437 = vmatprep.subr.mxu0 0.0
    %2438 = vmatpush1.msra.mxu0 0.0
    %2439 = vmatprep.subr.mxu0 0.0
    %2440 = vmatpush1.msra.mxu0 0.0
    %2441 = vmatprep.subr.mxu0 0.0
    %2442 = vmatpush1.msra.mxu0 0.0
    %2443 = vmatprep.subr.mxu0 0.0
    %2444 = vmatpush1.msra.mxu0 0.0
    %2445 = vmatprep.subr.mxu0 0.0
    %2446 = vmatpush1.msra.mxu0 0.0
    %2447 = vmatprep.subr.mxu0 0.0
    %2448 = vmatpush1.msra.mxu0 0.0
    %2449 = vmatprep.subr.mxu0 0.0
    %2450 = vmatpush1.msra.mxu0 0.0
    %2451 = vmatprep.subr.mxu0 0.0
    %2452 = vmatpush1.msra.mxu0 0.0
    %2453 = vmatprep.subr.mxu0 0.0
    %2454 = vmatpush1.msra.mxu0 0.0
    %2455 = vmatprep.subr.mxu0 0.0
    %2456 = vmatpush1.msra.mxu0 0.0
    %2457 = vmatprep.subr.mxu0 0.0
    %2458 = vmatpush1.msra.mxu0 0.0
    %2459 = vmatprep.subr.mxu0 0.0
    %2460 = vmatpush1.msra.mxu0 0.0
    %2461 = vmatprep.subr.mxu0 0.0
    %2462 = vmatpush1.msra.mxu0 0.0
    %2463 = vmatprep.subr.mxu0 0.0
    %2464 = vmatpush1.msra.mxu0 0.0
    %2465 = vmatprep.subr.mxu0 0.0
    %2466 = vmatpush1.msra.mxu0 0.0
    %2467 = vmatprep.subr.mxu0 0.0
    %2468 = vmatpush1.msra.mxu0 0.0
    %2469 = vmatprep.subr.mxu0 0.0
    %2470 = vmatpush1.msra.mxu0 0.0
    %2471 = vmatprep.subr.mxu0 0.0
    %2472 = vmatpush1.msra.mxu0 0.0
    %2473 = vmatprep.subr.mxu0 0.0
    %2474 = vmatpush1.msra.mxu0 0.0
    %2475 = vmatprep.subr.mxu0 0.0
    %2476 = vmatpush1.msra.mxu0 0.0
    %2477 = vmatprep.mubr.f32.mxu0 0.0
    %2478 = vmatmul.mubr.f32.gmra.mrb[0].mxu0 %v2411
    %v2479 = vpop.f32.mrb[0].mxu0
    %v2480 = vadd.f32 %v2407, %v2479
    %v2481 = vpop.f32.mrb[0].mxu0
    %2482 = vdwg.mxu0
    %v2483 = vmax.f32 %v2480, 0.0
    %v2485 = vsel %vm248, %v2333, 0
    %2487 = vmatprep.subr.mxu0 0.0
    %2488 = vmatpush1.msra.mxu0 %v402
    %2489 = vmatprep.subr.mxu0 0.0
    %2490 = vmatpush1.msra.mxu0 %v403
    %2491 = vmatprep.subr.mxu0 0.0
    %2492 = vmatpush1.msra.mxu0 %v404
    %2493 = vmatprep.subr.mxu0 0.0
    %2494 = vmatpush1.msra.mxu0 %v405
    %2495 = vmatprep.subr.mxu0 0.0
    %2496 = vmatpush1.msra.mxu0 0.0
    %2497 = vmatprep.subr.mxu0 0.0
    %2498 = vmatpush1.msra.mxu0 0.0
    %2499 = vmatprep.subr.mxu0 0.0
    %2500 = vmatpush1.msra.mxu0 0.0
    %2501 = vmatprep.subr.mxu0 0.0
    %2502 = vmatpush1.msra.mxu0 0.0
    %2503 = vmatprep.subr.mxu0 0.0
    %2504 = vmatpush1.msra.mxu0 0.0
    %2505 = vmatprep.subr.mxu0 0.0
    %2506 = vmatpush1.msra.mxu0 0.0
    %2507 = vmatprep.subr.mxu0 0.0
    %2508 = vmatpush1.msra.mxu0 0.0
    %2509 = vmatprep.subr.mxu0 0.0
    %2510 = vmatpush1.msra.mxu0 0.0
    %2511 = vmatprep.subr.mxu0 0.0
    %2512 = vmatpush1.msra.mxu0 0.0
    %2513 = vmatprep.subr.mxu0 0.0
    %2514 = vmatpush1.msra.mxu0 0.0
    %2515 = vmatprep.subr.mxu0 0.0
    %2516 = vmatpush1.msra.mxu0 0.0
    %2517 = vmatprep.subr.mxu0 0.0
    %2518 = vmatpush1.msra.mxu0 0.0
    %2519 = vmatprep.subr.mxu0 0.0
    %2520 = vmatpush1.msra.mxu0 0.0
    %2521 = vmatprep.subr.mxu0 0.0
    %2522 = vmatpush1.msra.mxu0 0.0
    %2523 = vmatprep.subr.mxu0 0.0
    %2524 = vmatpush1.msra.mxu0 0.0
    %2525 = vmatprep.subr.mxu0 0.0
    %2526 = vmatpush1.msra.mxu0 0.0
    %2527 = vmatprep.subr.mxu0 0.0
    %2528 = vmatpush1.msra.mxu0 0.0
    %2529 = vmatprep.subr.mxu0 0.0
    %2530 = vmatpush1.msra.mxu0 0.0
    %2531 = vmatprep.subr.mxu0 0.0
    %2532 = vmatpush1.msra.mxu0 0.0
    %2533 = vmatprep.subr.mxu0 0.0
    %2534 = vmatpush1.msra.mxu0 0.0
    %2535 = vmatprep.subr.mxu0 0.0
    %2536 = vmatpush1.msra.mxu0 0.0
    %2537 = vmatprep.subr.mxu0 0.0
    %2538 = vmatpush1.msra.mxu0 0.0
    %2539 = vmatprep.subr.mxu0 0.0
    %2540 = vmatpush1.msra.mxu0 0.0
    %2541 = vmatprep.subr.mxu0 0.0
    %2542 = vmatpush1.msra.mxu0 0.0
    %2543 = vmatprep.subr.mxu0 0.0
    %2544 = vmatpush1.msra.mxu0 0.0
    %2545 = vmatprep.subr.mxu0 0.0
    %2546 = vmatpush1.msra.mxu0 0.0
    %2547 = vmatprep.subr.mxu0 0.0
    %2548 = vmatpush1.msra.mxu0 0.0
    %2549 = vmatprep.subr.mxu0 0.0
    %2550 = vmatpush1.msra.mxu0 0.0
    %2551 = vmatprep.mubr.f32.mxu0 0.0
    %2552 = vmatmul.mubr.f32.gmra.mrb[0].mxu0 %v2485
    %v2553 = vpop.f32.mrb[0].mxu0
    %v2554 = vadd.f32 0.0, %v2553
    %v2555 = vpop.f32.mrb[0].mxu0
    %2556 = vdwg.mxu0
    %v2558 = vsel %vm248, %v2483, 0
    %2560 = vmatprep.subr.mxu0 0.0
    %2561 = vmatpush1.msra.mxu0 %v397
    %2562 = vmatprep.subr.mxu0 0.0
    %2563 = vmatpush1.msra.mxu0 %v398
    %2564 = vmatprep.subr.mxu0 0.0
    %2565 = vmatpush1.msra.mxu0 %v399
    %2566 = vmatprep.subr.mxu0 0.0
    %2567 = vmatpush1.msra.mxu0 %v400
    %2568 = vmatprep.subr.mxu0 0.0
    %2569 = vmatpush1.msra.mxu0 0.0
    %2570 = vmatprep.subr.mxu0 0.0
    %2571 = vmatpush1.msra.mxu0 0.0
    %2572 = vmatprep.subr.mxu0 0.0
    %2573 = vmatpush1.msra.mxu0 0.0
    %2574 = vmatprep.subr.mxu0 0.0
    %2575 = vmatpush1.msra.mxu0 0.0
    %2576 = vmatprep.subr.mxu0 0.0
    %2577 = vmatpush1.msra.mxu0 0.0
    %2578 = vmatprep.subr.mxu0 0.0
    %2579 = vmatpush1.msra.mxu0 0.0
    %2580 = vmatprep.subr.mxu0 0.0
    %2581 = vmatpush1.msra.mxu0 0.0
    %2582 = vmatprep.subr.mxu0 0.0
    %2583 = vmatpush1.msra.mxu0 0.0
    %2584 = vmatprep.subr.mxu0 0.0
    %2585 = vmatpush1.msra.mxu0 0.0
    %2586 = vmatprep.subr.mxu0 0.0
    %2587 = vmatpush1.msra.mxu0 0.0
    %2588 = vmatprep.subr.mxu0 0.0
    %2589 = vmatpush1.msra.mxu0 0.0
    %2590 = vmatprep.subr.mxu0 0.0
    %2591 = vmatpush1.msra.mxu0 0.0
    %2592 = vmatprep.subr.mxu0 0.0
    %2593 = vmatpush1.msra.mxu0 0.0
    %2594 = vmatprep.subr.mxu0 0.0
    %2595 = vmatpush1.msra.mxu0 0.0
    %2596 = vmatprep.subr.mxu0 0.0
    %2597 = vmatpush1.msra.mxu0 0.0
    %2598 = vmatprep.subr.mxu0 0.0
    %2599 = vmatpush1.msra.mxu0 0.0
    %2600 = vmatprep.subr.mxu0 0.0
    %2601 = vmatpush1.msra.mxu0 0.0
    %2602 = vmatprep.subr.mxu0 0.0
    %2603 = vmatpush1.msra.mxu0 0.0
    %2604 = vmatprep.subr.mxu0 0.0
    %2605 = vmatpush1.msra.mxu0 0.0
    %2606 = vmatprep.subr.mxu0 0.0
    %2607 = vmatpush1.msra.mxu0 0.0
    %2608 = vmatprep.subr.mxu0 0.0
    %2609 = vmatpush1.msra.mxu0 0.0
    %2610 = vmatprep.subr.mxu0 0.0
    %2611 = vmatpush1.msra.mxu0 0.0
    %2612 = vmatprep.subr.mxu0 0.0
    %2613 = vmatpush1.msra.mxu0 0.0
    %2614 = vmatprep.subr.mxu0 0.0
    %2615 = vmatpush1.msra.mxu0 0.0
    %2616 = vmatprep.subr.mxu0 0.0
    %2617 = vmatpush1.msra.mxu0 0.0
    %2618 = vmatprep.subr.mxu0 0.0
    %2619 = vmatpush1.msra.mxu0 0.0
    %2620 = vmatprep.subr.mxu0 0.0
    %2621 = vmatpush1.msra.mxu0 0.0
    %2622 = vmatprep.subr.mxu0 0.0
    %2623 = vmatpush1.msra.mxu0 0.0
    %2624 = vmatprep.mubr.f32.mxu0 0.0
    %2625 = vmatmul.mubr.f32.gmra.mrb[0].mxu0 %v2558
    %v2626 = vpop.f32.mrb[0].mxu0
    %v2627 = vadd.f32 %v2554, %v2626
    %v2628 = vpop.f32.mrb[0].mxu0
    %2629 = vdwg.mxu0
    %v2630 = vmax.f32 %v2627, 0.0
    %2631 = vset.pattern.permute.xlu0 7
    %2632 = vperm.xlu0 %2631, %v550
    %v2633 = vpop.permute.xlu0 %2632
    %v2635 = vmul.f32 %v2633, %v2630
    %v2636 = vadd.f32 %v2339, %v2635
    %v2637 = vld [vmem:[#allocation5] sm:$0xff]
    %v2638 = vld [vmem:[#allocation5 + $0x8] sm:$0xff]
    %v2639 = vld [vmem:[#allocation5 + $0x10] sm:$0xff]
    %v2640 = vld [vmem:[#allocation5 + $0x18] sm:$0xff]
    %v2642 = vsel %vm248, %v2636, 0
    %2644 = vmatprep.subr.mxu0 0.0
    %2645 = vmatpush1.msra.mxu0 %v2637
    %2646 = vmatprep.subr.mxu0 0.0
    %2647 = vmatpush1.msra.mxu0 %v2638
    %2648 = vmatprep.subr.mxu0 0.0
    %2649 = vmatpush1.msra.mxu0 %v2639
    %2650 = vmatprep.subr.mxu0 0.0
    %2651 = vmatpush1.msra.mxu0 %v2640
    %2652 = vmatprep.subr.mxu0 0.0
    %2653 = vmatpush1.msra.mxu0 0.0
    %2654 = vmatprep.subr.mxu0 0.0
    %2655 = vmatpush1.msra.mxu0 0.0
    %2656 = vmatprep.subr.mxu0 0.0
    %2657 = vmatpush1.msra.mxu0 0.0
    %2658 = vmatprep.subr.mxu0 0.0
    %2659 = vmatpush1.msra.mxu0 0.0
    %2660 = vmatprep.subr.mxu0 0.0
    %2661 = vmatpush1.msra.mxu0 0.0
    %2662 = vmatprep.subr.mxu0 0.0
    %2663 = vmatpush1.msra.mxu0 0.0
    %2664 = vmatprep.subr.mxu0 0.0
    %2665 = vmatpush1.msra.mxu0 0.0
    %2666 = vmatprep.subr.mxu0 0.0
    %2667 = vmatpush1.msra.mxu0 0.0
    %2668 = vmatprep.subr.mxu0 0.0
    %2669 = vmatpush1.msra.mxu0 0.0
    %2670 = vmatprep.subr.mxu0 0.0
    %2671 = vmatpush1.msra.mxu0 0.0
    %2672 = vmatprep.subr.mxu0 0.0
    %2673 = vmatpush1.msra.mxu0 0.0
    %2674 = vmatprep.subr.mxu0 0.0
    %2675 = vmatpush1.msra.mxu0 0.0
    %2676 = vmatprep.subr.mxu0 0.0
    %2677 = vmatpush1.msra.mxu0 0.0
    %2678 = vmatprep.subr.mxu0 0.0
    %2679 = vmatpush1.msra.mxu0 0.0
    %2680 = vmatprep.subr.mxu0 0.0
    %2681 = vmatpush1.msra.mxu0 0.0
    %2682 = vmatprep.subr.mxu0 0.0
    %2683 = vmatpush1.msra.mxu0 0.0
    %2684 = vmatprep.subr.mxu0 0.0
    %2685 = vmatpush1.msra.mxu0 0.0
    %2686 = vmatprep.subr.mxu0 0.0
    %2687 = vmatpush1.msra.mxu0 0.0
    %2688 = vmatprep.subr.mxu0 0.0
    %2689 = vmatpush1.msra.mxu0 0.0
    %2690 = vmatprep.subr.mxu0 0.0
    %2691 = vmatpush1.msra.mxu0 0.0
    %2692 = vmatprep.subr.mxu0 0.0
    %2693 = vmatpush1.msra.mxu0 0.0
    %2694 = vmatprep.subr.mxu0 0.0
    %2695 = vmatpush1.msra.mxu0 0.0
    %2696 = vmatprep.subr.mxu0 0.0
    %2697 = vmatpush1.msra.mxu0 0.0
    %2698 = vmatprep.subr.mxu0 0.0
    %2699 = vmatpush1.msra.mxu0 0.0
    %2700 = vmatprep.subr.mxu0 0.0
    %2701 = vmatpush1.msra.mxu0 0.0
    %2702 = vmatprep.subr.mxu0 0.0
    %2703 = vmatpush1.msra.mxu0 0.0
    %2704 = vmatprep.subr.mxu0 0.0
    %2705 = vmatpush1.msra.mxu0 0.0
    %2706 = vmatprep.subr.mxu0 0.0
    %2707 = vmatpush1.msra.mxu0 0.0
    %2708 = vmatprep.mubr.f32.mxu0 0.0
    %2709 = vmatmul.mubr.f32.gmra.mrb[0].mxu0 %v2642
    %v2710 = vpop.f32.mrb[0].mxu0
    %v2711 = vadd.f32 0.0, %v2710
    %v2712 = vpop.f32.mrb[0].mxu0
    %2713 = vdwg.mxu0
    %v2714 = vmax.f32 %v2711, 0.0
    %v2715 = vld [vmem:[%s6] sm:$0xff]
    %v2716 = vld [vmem:[%s6 + $0x8] sm:$0xff]
    %v2717 = vld [vmem:[%s6 + $0x10] sm:$0xff]
    %v2718 = vld [vmem:[%s6 + $0x18] sm:$0xff]
    %v2719 = vld [vmem:[%s6 + $0x20] sm:$0xff]
    %v2720 = vld [vmem:[%s6 + $0x28] sm:$0xff]
    %v2721 = vld [vmem:[%s6 + $0x30] sm:$0xff]
    %v2722 = vld [vmem:[%s6 + $0x38] sm:$0xff]
    %vm2723 = vcmask 523264
    %v2725 = vsel %vm2723, %v2714, 0
    %2727 = vmatprep.subr.mxu0 0.0
    %2728 = vmatpush1.msra.mxu0 %v2715
    %2729 = vmatprep.subr.mxu0 0.0
    %2730 = vmatpush1.msra.mxu0 %v2716
    %2731 = vmatprep.subr.mxu0 0.0
    %2732 = vmatpush1.msra.mxu0 %v2717
    %2733 = vmatprep.subr.mxu0 0.0
    %2734 = vmatpush1.msra.mxu0 %v2718
    %2735 = vmatprep.subr.mxu0 0.0
    %2736 = vmatpush1.msra.mxu0 %v2719
    %2737 = vmatprep.subr.mxu0 0.0
    %2738 = vmatpush1.msra.mxu0 %v2720
    %2739 = vmatprep.subr.mxu0 0.0
    %2740 = vmatpush1.msra.mxu0 %v2721
    %2741 = vmatprep.subr.mxu0 0.0
    %2742 = vmatpush1.msra.mxu0 %v2722
    %2743 = vmatprep.subr.mxu0 0.0
    %2744 = vmatpush1.msra.mxu0 0.0
    %2745 = vmatprep.subr.mxu0 0.0
    %2746 = vmatpush1.msra.mxu0 0.0
    %2747 = vmatprep.subr.mxu0 0.0
    %2748 = vmatpush1.msra.mxu0 0.0
    %2749 = vmatprep.subr.mxu0 0.0
    %2750 = vmatpush1.msra.mxu0 0.0
    %2751 = vmatprep.subr.mxu0 0.0
    %2752 = vmatpush1.msra.mxu0 0.0
    %2753 = vmatprep.subr.mxu0 0.0
    %2754 = vmatpush1.msra.mxu0 0.0
    %2755 = vmatprep.subr.mxu0 0.0
    %2756 = vmatpush1.msra.mxu0 0.0
    %2757 = vmatprep.subr.mxu0 0.0
    %2758 = vmatpush1.msra.mxu0 0.0
    %2759 = vmatprep.subr.mxu0 0.0
    %2760 = vmatpush1.msra.mxu0 0.0
    %2761 = vmatprep.subr.mxu0 0.0
    %2762 = vmatpush1.msra.mxu0 0.0
    %2763 = vmatprep.subr.mxu0 0.0
    %2764 = vmatpush1.msra.mxu0 0.0
    %2765 = vmatprep.subr.mxu0 0.0
    %2766 = vmatpush1.msra.mxu0 0.0
    %2767 = vmatprep.subr.mxu0 0.0
    %2768 = vmatpush1.msra.mxu0 0.0
    %2769 = vmatprep.subr.mxu0 0.0
    %2770 = vmatpush1.msra.mxu0 0.0
    %2771 = vmatprep.subr.mxu0 0.0
    %2772 = vmatpush1.msra.mxu0 0.0
    %2773 = vmatprep.subr.mxu0 0.0
    %2774 = vmatpush1.msra.mxu0 0.0
    %2775 = vmatprep.subr.mxu0 0.0
    %2776 = vmatpush1.msra.mxu0 0.0
    %2777 = vmatprep.subr.mxu0 0.0
    %2778 = vmatpush1.msra.mxu0 0.0
    %2779 = vmatprep.subr.mxu0 0.0
    %2780 = vmatpush1.msra.mxu0 0.0
    %2781 = vmatprep.subr.mxu0 0.0
    %2782 = vmatpush1.msra.mxu0 0.0
    %2783 = vmatprep.subr.mxu0 0.0
    %2784 = vmatpush1.msra.mxu0 0.0
    %2785 = vmatprep.subr.mxu0 0.0
    %2786 = vmatpush1.msra.mxu0 0.0
    %2787 = vmatprep.subr.mxu0 0.0
    %2788 = vmatpush1.msra.mxu0 0.0
    %2789 = vmatprep.subr.mxu0 0.0
    %2790 = vmatpush1.msra.mxu0 0.0
    %2791 = vmatprep.mubr.f32.mxu0 0.0
    %2792 = vmatmul.mubr.f32.gmra.mrb[0].mxu0 %v2725
    %v2793 = vpop.f32.mrb[0].mxu0
    %v2794 = vadd.f32 0.0, %v2793
    %v2795 = vpop.f32.mrb[0].mxu0
    %2796 = vdwg.mxu0
    %2797 = vst [vmem:[#allocation7] sm:$0xff] %v2794
    // Predicated region
    $region38: #{tpu_custom_call.1} parent=1 // pred_check
      _
    $region39: #{tpu_custom_call.1} parent=1 // pred_check_branch
      %2799 = sbr.rel (0) target = $region41
    $region40: #{tpu_custom_call.1} parent=1 // pred_region
      %s2801 = ssub.s32 128, 128
      %2802 = vsyncadd [#allocation4], %s2801
      %s2804 = sshll.u32 [#allocation7], 4
      %s2805 = int_to_ptr.vmem [resolvable:$true] %s2804
      %2807 = dma.vmem_to_hbm [thread:$0]  %s2805, 128, %s7, [#allocation4]
    $region41: #{tpu_custom_call.1} parent=1 // pred_fallthru
      _
    // Predicated region
    $region42: #{tpu_custom_call.1} parent=1 // pred_check
      _
    $region43: #{tpu_custom_call.1} parent=1 // pred_check_branch
      %2809 = sbr.rel (0) target = $region45
    $region44: #{tpu_custom_call.1} parent=1 // pred_region
      %2810 = dma.done [#allocation4], 128
    $region45: #{tpu_custom_call.1} parent=1 // pred_fallthru
      _
    %2811 = vsyncpa [#allocation3], 1
    %2812 = vsyncpa [#allocation6], 1
    %2813 = vsyncpa [#allocation4], 1

</llo_original>
